<compile_context>
chip_gen: v5e
topology: v5e:2x2
jax: 0.10.0
libtpu: 0.0.40
codegen_flags: <defaults>
</compile_context>

<pallas_src>
import numpy as np
import jax
import jax.numpy as jnp
from jax import lax
from jax.experimental import pallas as pl
from jax.experimental.pallas import tpu as pltpu


def _round_up(x, m):
    return (x + m - 1) // m * m


def _choose_tb(batch, tb_max):
    """Batch tile: as large as allowed, multiple of 8, and >= 2 grid tiles
    whenever the batch permits (v7x has 2 TensorCores sharing the grid)."""
    b8 = _round_up(max(batch, 1), 8)
    tb = min(tb_max, b8)
    if b8 >= 16 and b8 // tb < 2:
        tb = max(8, (b8 // 2) // 8 * 8)
    return tb


# ---------------------------------------------------------------------------
# One-time weight preprocessing (hoisted out of the per-step forward)
# ---------------------------------------------------------------------------
def prepare_params(params, H, W):
    """Build bf16 block-Toeplitz GEMM weights (kh folded into K) for the kernel."""
    w1 = np.asarray(params["w1"], np.float32)     # (32, C, 8, 8), stride 4
    w2 = np.asarray(params["w2"], np.float32)     # (64, 32, 4, 4), stride 2
    w3 = np.asarray(params["w3"], np.float32)     # (64, 64, 3, 3), stride 1
    wfc = np.asarray(params["w_fc"], np.float32)  # (F, 64)
    b1 = np.asarray(params["b1"], np.float32)
    b2 = np.asarray(params["b2"], np.float32)
    b3 = np.asarray(params["b3"], np.float32)
    bfc = np.asarray(params["b_fc"], np.float32)

    Co1, C, K1, _ = w1.shape
    Co2, Ci2, K2, _ = w2.shape
    Co3, Ci3, K3, _ = w3.shape
    F = wfc.shape[0]
    H1 = (H - K1) // 4 + 1      # conv1 output spatial (8 for 36x36 input)
    H2 = (H1 - K2) // 2 + 1     # conv2 output spatial (3)
    H3 = (H2 - K3) // 1 + 1     # conv3 output spatial (1)
    assert H == W and H3 == 1, "fused kernel specialized for the 36x36 config"
    assert Ci2 == Co1 and Ci3 == Co2 and wfc.shape[1] == Co3 * H3 * H3

    N1, N2 = H1 * Co1, H2 * Co2

    # conv1: maps K1 stacked input rows (each W*C wide) to one full conv1
    # output row (H1*Co1 wide).  Block-Toeplitz along W (stride 4).
    T1 = np.zeros((K1, W * C, N1), np.float32)
    for kh in range(K1):
        blk = np.transpose(w1[:, :, kh, :], (2, 1, 0)).reshape(K1 * C, Co1)  # rows=(kw,ci)
        for ow in range(H1):
            T1[kh, (4 * ow) * C:(4 * ow + K1) * C, ow * Co1:(ow + 1) * Co1] = blk

    # conv2: K2 stacked conv1 rows (H1*Co1 each) -> one conv2 row (H2*Co2), stride 2.
    T2 = np.zeros((K2, N1, N2), np.float32)
    for kh in range(K2):
        blk = np.transpose(w2[:, :, kh, :], (2, 1, 0)).reshape(K2 * Ci2, Co2)  # rows=(kw,c1)
        for q in range(H2):
            T2[kh, (2 * q) * Ci2:(2 * q + K2) * Ci2, q * Co2:(q + 1) * Co2] = blk

    # conv3: all H2 conv2 rows (stacked) -> the single 1x1 output (Co3), stride 1.
    T3 = np.zeros((K3, N2, Co3), np.float32)
    for kh in range(K3):
        T3[kh] = np.transpose(w3[:, :, kh, :], (2, 1, 0)).reshape(K3 * Ci3, Co3)

    # Fold kh into the contraction dimension (MXU accumulates over kh).
    T1c = T1.reshape(K1 * W * C, N1)          # (1152, 256)
    T2c = T2.reshape(K2 * N1, N2)             # (1024, 192)
    T3c = T3.reshape(K3 * N2, Co3)            # (576, 64)

    return {
        "t1": jnp.asarray(T1c, jnp.bfloat16),
        "t2": jnp.asarray(T2c, jnp.bfloat16),
        "t3": jnp.asarray(T3c, jnp.bfloat16),
        "wfc": jnp.asarray(wfc.T, jnp.bfloat16),                        # (64, F)
        "b1": jnp.asarray(np.tile(b1, H1 * H1)[None, :], jnp.float32),  # (1, H1*H1*Co1)
        "b2": jnp.asarray(np.tile(b2, H2 * H2)[None, :], jnp.float32),  # (1, H2*H2*Co2)
        "b3": jnp.asarray(b3[None, :], jnp.float32),                    # (1, Co3)
        "bfc": jnp.asarray(bfc[None, :], jnp.float32),                  # (1, F)
        "dims": (C, H1, H2, Co1, Co2, Co3, F, K1, K2, K3),
    }


# ---------------------------------------------------------------------------
# Fused forward: single Pallas kernel, batch-tiled grid
# ---------------------------------------------------------------------------
def build_forward(params, in_shape, tb=256, input_buffers=2):
    # tb: max batch tile. 256 targets v6e/v7x MXU rows; use 128 on v5e.
    # input_buffers: set 3 on v6e if the input DMA shows up exposed in a trace.
    C_in, H, W = in_shape
    pp = prepare_params(params, H, W)
    C, H1, H2, Co1, Co2, Co3, F, K1, K2, K3 = pp["dims"]
    assert C == C_in
    N1, N2 = H1 * Co1, H2 * Co2
    KWC = K1 * W * C

    def kernel(x_ref, t1_ref, t2_ref, t3_ref, wfc_ref,
               b1_ref, b2_ref, b3_ref, bfc_ref, o_ref):
        f32, bf16 = jnp.float32, jnp.bfloat16

        # conv1 + ReLU: one GEMM per output row with K = K1*W*C (=1152); the
        # MXU accumulates over kh internally (no per-kh f32 VALU adds).
        y1 = jnp.concatenate(
            [jnp.dot(x_ref[oh], t1_ref[...], preferred_element_type=f32)
             for oh in range(H1)], axis=-1)                      # (tb, H1*N1)
        y1 = jnp.maximum(y1 + b1_ref[...], 0.0).astype(bf16)

        # conv2 + ReLU: operands are contiguous lane slices of y1
        # (offsets 2*p*N1 are multiples of 128), K = K2*N1 (=1024).
        y2 = jnp.concatenate(
            [jnp.dot(y1[:, 2 * p * N1:(2 * p + K2) * N1], t2_ref[...],
                     preferred_element_type=f32)
             for p in range(H2)], axis=-1)                       # (tb, H2*N2)
        y2 = jnp.maximum(y2 + b2_ref[...], 0.0).astype(bf16)

        # conv3 (3x3 window -> 1x1 output) + ReLU: one GEMM over all of y2.
        y3 = jnp.dot(y2, t3_ref[...], preferred_element_type=f32)
        y3 = jnp.maximum(y3 + b3_ref[...], 0.0).astype(bf16)     # (tb, Co3)

        # fc + ReLU (torch flatten(1) order == channel order since H3 = W3 = 1)
        out = jnp.dot(y3, wfc_ref[...], preferred_element_type=f32)
        o_ref[...] = jnp.maximum(out + bfc_ref[...], 0.0)

    @jax.jit
    def forward(x_nchw):
        batch_shape = x_nchw.shape[:-3]
        # Cast to bf16 BEFORE the layout transpose/gather (halves wrapper bytes).
        x = x_nchw.reshape((-1, C, H, W)).astype(jnp.bfloat16)
        B = x.shape[0]
        tbe = _choose_tb(B, tb)
        Bp = _round_up(B, tbe)

        # NCHW -> NHWC -> (B, H, W*C): pure layout permutation.
        x = jnp.transpose(x, (0, 2, 3, 1)).reshape(B, H, W * C)
        # H-only im2col laid out (H1, B, K1*W*C): x_im[oh] is the contiguous
        # slab of the K1 consecutive input rows feeding conv1 output row oh.
        x_im = jnp.stack(
            [x[:, 4 * oh:4 * oh + K1, :].reshape(B, KWC) for oh in range(H1)],
            axis=0)
        x_im = jnp.pad(x_im, ((0, 0), (0, Bp - B), (0, 0)))

        x_spec_kwargs = {}
        if input_buffers != 2:
            x_spec_kwargs["pipeline_mode"] = pl.Buffered(input_buffers)

        out = pl.pallas_call(
            kernel,
            out_shape=jax.ShapeDtypeStruct((Bp, F), jnp.float32),
            grid=(Bp // tbe,),
            in_specs=[
                pl.BlockSpec((H1, tbe, KWC), lambda i: (0, i, 0),
                             **x_spec_kwargs),
                pl.BlockSpec(pp["t1"].shape, lambda i: (0, 0)),
                pl.BlockSpec(pp["t2"].shape, lambda i: (0, 0)),
                pl.BlockSpec(pp["t3"].shape, lambda i: (0, 0)),
                pl.BlockSpec(pp["wfc"].shape, lambda i: (0, 0)),
                pl.BlockSpec(pp["b1"].shape, lambda i: (0, 0)),
                pl.BlockSpec(pp["b2"].shape, lambda i: (0, 0)),
                pl.BlockSpec(pp["b3"].shape, lambda i: (0, 0)),
                pl.BlockSpec(pp["bfc"].shape, lambda i: (0, 0)),
            ],
            out_specs=pl.BlockSpec((tbe, F), lambda i: (i, 0)),
            compiler_params=pltpu.CompilerParams(
                dimension_semantics=("parallel",),
                vmem_limit_bytes=32 * 1024 * 1024),
        )(x_im, pp["t1"], pp["t2"], pp["t3"], pp["wfc"],
          pp["b1"], pp["b2"], pp["b3"], pp["bfc"])
        return out[:B].reshape(*batch_shape, F)

    return forward


# ---------------------------------------------------------------------------
# Parameter init (PyTorch layouts) and pure-JAX fp32 reference
# ---------------------------------------------------------------------------
def init_params(key, in_channels, features_dim, flat_dim):
    ks = jax.random.split(key, 8)
    scale = 0.05
    return {
        "w1": scale * jax.random.normal(ks[0], (32, in_channels, 8, 8), jnp.float32),
        "b1": scale * jax.random.normal(ks[1], (32,), jnp.float32),
        "w2": scale * jax.random.normal(ks[2], (64, 32, 4, 4), jnp.float32),
        "b2": scale * jax.random.normal(ks[3], (64,), jnp.float32),
        "w3": scale * jax.random.normal(ks[4], (64, 64, 3, 3), jnp.float32),
        "b3": scale * jax.random.normal(ks[5], (64,), jnp.float32),
        "w_fc": scale * jax.random.normal(ks[6], (features_dim, flat_dim), jnp.float32),
        "b_fc": scale * jax.random.normal(ks[7], (features_dim,), jnp.float32),
    }


def nature_cnn_reference(x_nchw, params):
    batch_shape = x_nchw.shape[:-3]
    C, H, W = x_nchw.shape[-3:]
    x = x_nchw.reshape((-1, C, H, W)).astype(jnp.float32)

    def conv(x, w, b, s):
        y = lax.conv_general_dilated(
            x, w, window_strides=(s, s), padding="VALID",
            dimension_numbers=("NCHW", "OIHW", "NCHW"))
        return jax.nn.relu(y + b[None, :, None, None])

    x = conv(x, params["w1"], params["b1"], 4)
    x = conv(x, params["w2"], params["b2"], 2)
    x = conv(x, params["w3"], params["b3"], 1)
    x = x.reshape(x.shape[0], -1)
    x = jax.nn.relu(x @ params["w_fc"].T + params["b_fc"])
    return x.reshape(*batch_shape, -1)


if __name__ == "__main__":
    # Small shapes: in_channels=4, features_dim=32, screen=36
    # conv dims: 36 -(k8,s4)-> 8 -(k4,s2)-> 3 -(k3,s1)-> 1  => flat_dim = 64
    in_channels, features_dim, screen = 4, 32, 36
    flat_dim = 64
    batch = 2

    key = jax.random.PRNGKey(0)
    k_x, k_p = jax.random.split(key)
    x = jax.random.uniform(k_x, (batch, in_channels, screen, screen), jnp.float32)
    params = init_params(k_p, in_channels, features_dim, flat_dim)

    forward = build_forward(params, (in_channels, screen, screen), tb=256)
    out = jax.block_until_ready(forward(x))
    assert out.shape == (batch, features_dim), out.shape

    ref = jax.block_until_ready(nature_cnn_reference(x, params))
    err = float(jnp.max(jnp.abs(out - ref)))
    # bf16 MXU operands with fp32 accumulation: allow a few 1e-3 of drift.
    assert err < 3e-2, err

    print("KERNEL_OK")
</pallas_src>

<mosaic_0001>
module attributes {stable_mosaic.version = 11 : i64} {
  func.func @kernel(%arg0: i32, %arg1: memref<8x8x1152xbf16, #tpu.memory_space<vmem>>, %arg2: memref<1152x256xbf16, #tpu.memory_space<vmem>>, %arg3: memref<1024x192xbf16, #tpu.memory_space<vmem>>, %arg4: memref<576x64xbf16, #tpu.memory_space<vmem>>, %arg5: memref<64x32xbf16, #tpu.memory_space<vmem>>, %arg6: memref<1x2048xf32, #tpu.memory_space<vmem>>, %arg7: memref<1x576xf32, #tpu.memory_space<vmem>>, %arg8: memref<1x64xf32, #tpu.memory_space<vmem>>, %arg9: memref<1x32xf32, #tpu.memory_space<vmem>>, %arg10: memref<8x32xf32, #tpu.memory_space<vmem>>) attributes {dimension_semantics = [#tpu.dimension_semantics<parallel>], iteration_bounds = array<i64: 1>, scalar_prefetch = 0 : i64, scratch_operands = 0 : i64, tpu.core_type = #tpu.core_type<tc>, window_params = [{transform_indices = @transform_0, window_bounds = array<i64: 8, 8, 1152>}, {pipeline_mode = #tpu.pipeline_mode<synchronous>, transform_indices = @transform_1, window_bounds = array<i64: 1152, 256>}, {pipeline_mode = #tpu.pipeline_mode<synchronous>, transform_indices = @transform_2, window_bounds = array<i64: 1024, 192>}, {pipeline_mode = #tpu.pipeline_mode<synchronous>, transform_indices = @transform_3, window_bounds = array<i64: 576, 64>}, {pipeline_mode = #tpu.pipeline_mode<synchronous>, transform_indices = @transform_4, window_bounds = array<i64: 64, 32>}, {pipeline_mode = #tpu.pipeline_mode<synchronous>, transform_indices = @transform_5, window_bounds = array<i64: 1, 2048>}, {pipeline_mode = #tpu.pipeline_mode<synchronous>, transform_indices = @transform_6, window_bounds = array<i64: 1, 576>}, {pipeline_mode = #tpu.pipeline_mode<synchronous>, transform_indices = @transform_7, window_bounds = array<i64: 1, 64>}, {pipeline_mode = #tpu.pipeline_mode<synchronous>, transform_indices = @transform_8, window_bounds = array<i64: 1, 32>}, {transform_indices = @transform_9, window_bounds = array<i64: 8, 32>}]} {
    %c0 = arith.constant 0 : index
    %c0_0 = arith.constant 0 : index
    %c0_1 = arith.constant 0 : index
    %0 = vector.load %arg1[%c0, %c0_0, %c0_1] : memref<8x8x1152xbf16, #tpu.memory_space<vmem>>, vector<1x8x1152xbf16>
    %1 = vector.shape_cast %0 : vector<1x8x1152xbf16> to vector<8x1152xbf16>
    %c0_2 = arith.constant 0 : index
    %c0_3 = arith.constant 0 : index
    %2 = vector.load %arg2[%c0_2, %c0_3] : memref<1152x256xbf16, #tpu.memory_space<vmem>>, vector<1152x256xbf16>
    %cst = arith.constant dense<0.000000e+00> : vector<8x256xf32>
    %3 = tpu.matmul %1, %2, %cst {dimension_numbers = #tpu.dot_dimension_numbers<[1], [0], [0], [1], [0, 0, 1, 1], [], []>} : vector<8x1152xbf16>, vector<1152x256xbf16>, vector<8x256xf32> -> vector<8x256xf32>
    %c1 = arith.constant 1 : index
    %c0_4 = arith.constant 0 : index
    %c0_5 = arith.constant 0 : index
    %4 = vector.load %arg1[%c1, %c0_4, %c0_5] : memref<8x8x1152xbf16, #tpu.memory_space<vmem>>, vector<1x8x1152xbf16>
    %5 = vector.shape_cast %4 : vector<1x8x1152xbf16> to vector<8x1152xbf16>
    %c0_6 = arith.constant 0 : index
    %c0_7 = arith.constant 0 : index
    %6 = vector.load %arg2[%c0_6, %c0_7] : memref<1152x256xbf16, #tpu.memory_space<vmem>>, vector<1152x256xbf16>
    %cst_8 = arith.constant dense<0.000000e+00> : vector<8x256xf32>
    %7 = tpu.matmul %5, %6, %cst_8 {dimension_numbers = #tpu.dot_dimension_numbers<[1], [0], [0], [1], [0, 0, 1, 1], [], []>} : vector<8x1152xbf16>, vector<1152x256xbf16>, vector<8x256xf32> -> vector<8x256xf32>
    %c2 = arith.constant 2 : index
    %c0_9 = arith.constant 0 : index
    %c0_10 = arith.constant 0 : index
    %8 = vector.load %arg1[%c2, %c0_9, %c0_10] : memref<8x8x1152xbf16, #tpu.memory_space<vmem>>, vector<1x8x1152xbf16>
    %9 = vector.shape_cast %8 : vector<1x8x1152xbf16> to vector<8x1152xbf16>
    %c0_11 = arith.constant 0 : index
    %c0_12 = arith.constant 0 : index
    %10 = vector.load %arg2[%c0_11, %c0_12] : memref<1152x256xbf16, #tpu.memory_space<vmem>>, vector<1152x256xbf16>
    %cst_13 = arith.constant dense<0.000000e+00> : vector<8x256xf32>
    %11 = tpu.matmul %9, %10, %cst_13 {dimension_numbers = #tpu.dot_dimension_numbers<[1], [0], [0], [1], [0, 0, 1, 1], [], []>} : vector<8x1152xbf16>, vector<1152x256xbf16>, vector<8x256xf32> -> vector<8x256xf32>
    %c3 = arith.constant 3 : index
    %c0_14 = arith.constant 0 : index
    %c0_15 = arith.constant 0 : index
    %12 = vector.load %arg1[%c3, %c0_14, %c0_15] : memref<8x8x1152xbf16, #tpu.memory_space<vmem>>, vector<1x8x1152xbf16>
    %13 = vector.shape_cast %12 : vector<1x8x1152xbf16> to vector<8x1152xbf16>
    %c0_16 = arith.constant 0 : index
    %c0_17 = arith.constant 0 : index
    %14 = vector.load %arg2[%c0_16, %c0_17] : memref<1152x256xbf16, #tpu.memory_space<vmem>>, vector<1152x256xbf16>
    %cst_18 = arith.constant dense<0.000000e+00> : vector<8x256xf32>
    %15 = tpu.matmul %13, %14, %cst_18 {dimension_numbers = #tpu.dot_dimension_numbers<[1], [0], [0], [1], [0, 0, 1, 1], [], []>} : vector<8x1152xbf16>, vector<1152x256xbf16>, vector<8x256xf32> -> vector<8x256xf32>
    %c4 = arith.constant 4 : index
    %c0_19 = arith.constant 0 : index
    %c0_20 = arith.constant 0 : index
    %16 = vector.load %arg1[%c4, %c0_19, %c0_20] : memref<8x8x1152xbf16, #tpu.memory_space<vmem>>, vector<1x8x1152xbf16>
    %17 = vector.shape_cast %16 : vector<1x8x1152xbf16> to vector<8x1152xbf16>
    %c0_21 = arith.constant 0 : index
    %c0_22 = arith.constant 0 : index
    %18 = vector.load %arg2[%c0_21, %c0_22] : memref<1152x256xbf16, #tpu.memory_space<vmem>>, vector<1152x256xbf16>
    %cst_23 = arith.constant dense<0.000000e+00> : vector<8x256xf32>
    %19 = tpu.matmul %17, %18, %cst_23 {dimension_numbers = #tpu.dot_dimension_numbers<[1], [0], [0], [1], [0, 0, 1, 1], [], []>} : vector<8x1152xbf16>, vector<1152x256xbf16>, vector<8x256xf32> -> vector<8x256xf32>
    %c5 = arith.constant 5 : index
    %c0_24 = arith.constant 0 : index
    %c0_25 = arith.constant 0 : index
    %20 = vector.load %arg1[%c5, %c0_24, %c0_25] : memref<8x8x1152xbf16, #tpu.memory_space<vmem>>, vector<1x8x1152xbf16>
    %21 = vector.shape_cast %20 : vector<1x8x1152xbf16> to vector<8x1152xbf16>
    %c0_26 = arith.constant 0 : index
    %c0_27 = arith.constant 0 : index
    %22 = vector.load %arg2[%c0_26, %c0_27] : memref<1152x256xbf16, #tpu.memory_space<vmem>>, vector<1152x256xbf16>
    %cst_28 = arith.constant dense<0.000000e+00> : vector<8x256xf32>
    %23 = tpu.matmul %21, %22, %cst_28 {dimension_numbers = #tpu.dot_dimension_numbers<[1], [0], [0], [1], [0, 0, 1, 1], [], []>} : vector<8x1152xbf16>, vector<1152x256xbf16>, vector<8x256xf32> -> vector<8x256xf32>
    %c6 = arith.constant 6 : index
    %c0_29 = arith.constant 0 : index
    %c0_30 = arith.constant 0 : index
    %24 = vector.load %arg1[%c6, %c0_29, %c0_30] : memref<8x8x1152xbf16, #tpu.memory_space<vmem>>, vector<1x8x1152xbf16>
    %25 = vector.shape_cast %24 : vector<1x8x1152xbf16> to vector<8x1152xbf16>
    %c0_31 = arith.constant 0 : index
    %c0_32 = arith.constant 0 : index
    %26 = vector.load %arg2[%c0_31, %c0_32] : memref<1152x256xbf16, #tpu.memory_space<vmem>>, vector<1152x256xbf16>
    %cst_33 = arith.constant dense<0.000000e+00> : vector<8x256xf32>
    %27 = tpu.matmul %25, %26, %cst_33 {dimension_numbers = #tpu.dot_dimension_numbers<[1], [0], [0], [1], [0, 0, 1, 1], [], []>} : vector<8x1152xbf16>, vector<1152x256xbf16>, vector<8x256xf32> -> vector<8x256xf32>
    %c7 = arith.constant 7 : index
    %c0_34 = arith.constant 0 : index
    %c0_35 = arith.constant 0 : index
    %28 = vector.load %arg1[%c7, %c0_34, %c0_35] : memref<8x8x1152xbf16, #tpu.memory_space<vmem>>, vector<1x8x1152xbf16>
    %29 = vector.shape_cast %28 : vector<1x8x1152xbf16> to vector<8x1152xbf16>
    %c0_36 = arith.constant 0 : index
    %c0_37 = arith.constant 0 : index
    %30 = vector.load %arg2[%c0_36, %c0_37] : memref<1152x256xbf16, #tpu.memory_space<vmem>>, vector<1152x256xbf16>
    %cst_38 = arith.constant dense<0.000000e+00> : vector<8x256xf32>
    %31 = tpu.matmul %29, %30, %cst_38 {dimension_numbers = #tpu.dot_dimension_numbers<[1], [0], [0], [1], [0, 0, 1, 1], [], []>} : vector<8x1152xbf16>, vector<1152x256xbf16>, vector<8x256xf32> -> vector<8x256xf32>
    %32 = tpu.concatenate %3, %7, %11, %15, %19, %23, %27, %31 in 1 : vector<8x256xf32>, vector<8x256xf32>, vector<8x256xf32>, vector<8x256xf32>, vector<8x256xf32>, vector<8x256xf32>, vector<8x256xf32>, vector<8x256xf32> -> vector<8x2048xf32>
    %c0_39 = arith.constant 0 : index
    %c0_40 = arith.constant 0 : index
    %33 = vector.load %arg6[%c0_39, %c0_40] : memref<1x2048xf32, #tpu.memory_space<vmem>>, vector<1x2048xf32>
    %34 = vector.broadcast %33 : vector<1x2048xf32> to vector<8x2048xf32>
    %35 = arith.addf %32, %34 : vector<8x2048xf32>
    %cst_41 = arith.constant 0.000000e+00 : f32
    %36 = vector.broadcast %cst_41 : f32 to vector<8x2048xf32>
    %37 = arith.maximumf %35, %36 : vector<8x2048xf32>
    %38 = arith.truncf %37 : vector<8x2048xf32> to vector<8x2048xbf16>
    %39 = vector.extract_strided_slice %38 {offsets = [0, 0], sizes = [8, 1024], strides = [1, 1]} : vector<8x2048xbf16> to vector<8x1024xbf16>
    %c0_42 = arith.constant 0 : index
    %c0_43 = arith.constant 0 : index
    %40 = vector.load %arg3[%c0_42, %c0_43] : memref<1024x192xbf16, #tpu.memory_space<vmem>>, vector<1024x192xbf16>
    %cst_44 = arith.constant dense<0.000000e+00> : vector<8x192xf32>
    %41 = tpu.matmul %39, %40, %cst_44 {dimension_numbers = #tpu.dot_dimension_numbers<[1], [0], [0], [1], [0, 0, 1, 1], [], []>} : vector<8x1024xbf16>, vector<1024x192xbf16>, vector<8x192xf32> -> vector<8x192xf32>
    %42 = vector.extract_strided_slice %38 {offsets = [0, 512], sizes = [8, 1024], strides = [1, 1]} : vector<8x2048xbf16> to vector<8x1024xbf16>
    %c0_45 = arith.constant 0 : index
    %c0_46 = arith.constant 0 : index
    %43 = vector.load %arg3[%c0_45, %c0_46] : memref<1024x192xbf16, #tpu.memory_space<vmem>>, vector<1024x192xbf16>
    %cst_47 = arith.constant dense<0.000000e+00> : vector<8x192xf32>
    %44 = tpu.matmul %42, %43, %cst_47 {dimension_numbers = #tpu.dot_dimension_numbers<[1], [0], [0], [1], [0, 0, 1, 1], [], []>} : vector<8x1024xbf16>, vector<1024x192xbf16>, vector<8x192xf32> -> vector<8x192xf32>
    %45 = vector.extract_strided_slice %38 {offsets = [0, 1024], sizes = [8, 1024], strides = [1, 1]} : vector<8x2048xbf16> to vector<8x1024xbf16>
    %c0_48 = arith.constant 0 : index
    %c0_49 = arith.constant 0 : index
    %46 = vector.load %arg3[%c0_48, %c0_49] : memref<1024x192xbf16, #tpu.memory_space<vmem>>, vector<1024x192xbf16>
    %cst_50 = arith.constant dense<0.000000e+00> : vector<8x192xf32>
    %47 = tpu.matmul %45, %46, %cst_50 {dimension_numbers = #tpu.dot_dimension_numbers<[1], [0], [0], [1], [0, 0, 1, 1], [], []>} : vector<8x1024xbf16>, vector<1024x192xbf16>, vector<8x192xf32> -> vector<8x192xf32>
    %48 = tpu.concatenate %41, %44, %47 in 1 : vector<8x192xf32>, vector<8x192xf32>, vector<8x192xf32> -> vector<8x576xf32>
    %c0_51 = arith.constant 0 : index
    %c0_52 = arith.constant 0 : index
    %49 = vector.load %arg7[%c0_51, %c0_52] : memref<1x576xf32, #tpu.memory_space<vmem>>, vector<1x576xf32>
    %50 = vector.broadcast %49 : vector<1x576xf32> to vector<8x576xf32>
    %51 = arith.addf %48, %50 : vector<8x576xf32>
    %cst_53 = arith.constant 0.000000e+00 : f32
    %52 = vector.broadcast %cst_53 : f32 to vector<8x576xf32>
    %53 = arith.maximumf %51, %52 : vector<8x576xf32>
    %54 = arith.truncf %53 : vector<8x576xf32> to vector<8x576xbf16>
    %c0_54 = arith.constant 0 : index
    %c0_55 = arith.constant 0 : index
    %55 = vector.load %arg4[%c0_54, %c0_55] : memref<576x64xbf16, #tpu.memory_space<vmem>>, vector<576x64xbf16>
    %cst_56 = arith.constant dense<0.000000e+00> : vector<8x64xf32>
    %56 = tpu.matmul %54, %55, %cst_56 {dimension_numbers = #tpu.dot_dimension_numbers<[1], [0], [0], [1], [0, 0, 1, 1], [], []>} : vector<8x576xbf16>, vector<576x64xbf16>, vector<8x64xf32> -> vector<8x64xf32>
    %c0_57 = arith.constant 0 : index
    %c0_58 = arith.constant 0 : index
    %57 = vector.load %arg8[%c0_57, %c0_58] : memref<1x64xf32, #tpu.memory_space<vmem>>, vector<1x64xf32>
    %58 = vector.broadcast %57 : vector<1x64xf32> to vector<8x64xf32>
    %59 = arith.addf %56, %58 : vector<8x64xf32>
    %cst_59 = arith.constant 0.000000e+00 : f32
    %60 = vector.broadcast %cst_59 : f32 to vector<8x64xf32>
    %61 = arith.maximumf %59, %60 : vector<8x64xf32>
    %62 = arith.truncf %61 : vector<8x64xf32> to vector<8x64xbf16>
    %c0_60 = arith.constant 0 : index
    %c0_61 = arith.constant 0 : index
    %63 = vector.load %arg5[%c0_60, %c0_61] : memref<64x32xbf16, #tpu.memory_space<vmem>>, vector<64x32xbf16>
    %cst_62 = arith.constant dense<0.000000e+00> : vector<8x32xf32>
    %64 = tpu.matmul %62, %63, %cst_62 {dimension_numbers = #tpu.dot_dimension_numbers<[1], [0], [0], [1], [0, 0, 1, 1], [], []>} : vector<8x64xbf16>, vector<64x32xbf16>, vector<8x32xf32> -> vector<8x32xf32>
    %c0_63 = arith.constant 0 : index
    %c0_64 = arith.constant 0 : index
    %65 = vector.load %arg9[%c0_63, %c0_64] : memref<1x32xf32, #tpu.memory_space<vmem>>, vector<1x32xf32>
    %66 = vector.broadcast %65 : vector<1x32xf32> to vector<8x32xf32>
    %67 = arith.addf %64, %66 : vector<8x32xf32>
    %cst_65 = arith.constant 0.000000e+00 : f32
    %68 = vector.broadcast %cst_65 : f32 to vector<8x32xf32>
    %69 = arith.maximumf %67, %68 : vector<8x32xf32>
    %c0_66 = arith.constant 0 : index
    %c0_67 = arith.constant 0 : index
    %70 = vector.load %arg10[%c0_66, %c0_67] : memref<8x32xf32, #tpu.memory_space<vmem>>, vector<8x32xf32>
    tpu.vector_store %arg10[%c0_66, %c0_67], %69 {strides = array<i32>} : memref<8x32xf32, #tpu.memory_space<vmem>>, vector<8x32xf32>,
    return
  }
  func.func @transform_0(%arg0: i32) -> (i32, i32, i32) {
    %c0_i32 = arith.constant 0 : i32
    %c0_i32_0 = arith.constant 0 : i32
    %c0_i32_1 = arith.constant 0 : i32
    return %c0_i32, %arg0, %c0_i32_0 : i32, i32, i32
  }
  func.func @transform_1(%arg0: i32) -> (i32, i32) {
    %c0_i32 = arith.constant 0 : i32
    %c0_i32_0 = arith.constant 0 : i32
    %c0_i32_1 = arith.constant 0 : i32
    return %c0_i32, %c0_i32_0 : i32, i32
  }
  func.func @transform_2(%arg0: i32) -> (i32, i32) {
    %c0_i32 = arith.constant 0 : i32
    %c0_i32_0 = arith.constant 0 : i32
    %c0_i32_1 = arith.constant 0 : i32
    return %c0_i32, %c0_i32_0 : i32, i32
  }
  func.func @transform_3(%arg0: i32) -> (i32, i32) {
    %c0_i32 = arith.constant 0 : i32
    %c0_i32_0 = arith.constant 0 : i32
    %c0_i32_1 = arith.constant 0 : i32
    return %c0_i32, %c0_i32_0 : i32, i32
  }
  func.func @transform_4(%arg0: i32) -> (i32, i32) {
    %c0_i32 = arith.constant 0 : i32
    %c0_i32_0 = arith.constant 0 : i32
    %c0_i32_1 = arith.constant 0 : i32
    return %c0_i32, %c0_i32_0 : i32, i32
  }
  func.func @transform_5(%arg0: i32) -> (i32, i32) {
    %c0_i32 = arith.constant 0 : i32
    %c0_i32_0 = arith.constant 0 : i32
    %c0_i32_1 = arith.constant 0 : i32
    return %c0_i32, %c0_i32_0 : i32, i32
  }
  func.func @transform_6(%arg0: i32) -> (i32, i32) {
    %c0_i32 = arith.constant 0 : i32
    %c0_i32_0 = arith.constant 0 : i32
    %c0_i32_1 = arith.constant 0 : i32
    return %c0_i32, %c0_i32_0 : i32, i32
  }
  func.func @transform_7(%arg0: i32) -> (i32, i32) {
    %c0_i32 = arith.constant 0 : i32
    %c0_i32_0 = arith.constant 0 : i32
    %c0_i32_1 = arith.constant 0 : i32
    return %c0_i32, %c0_i32_0 : i32, i32
  }
  func.func @transform_8(%arg0: i32) -> (i32, i32) {
    %c0_i32 = arith.constant 0 : i32
    %c0_i32_0 = arith.constant 0 : i32
    %c0_i32_1 = arith.constant 0 : i32
    return %c0_i32, %c0_i32_0 : i32, i32
  }
  func.func @transform_9(%arg0: i32) -> (i32, i32) {
    %c0_i32 = arith.constant 0 : i32
    %c0_i32_0 = arith.constant 0 : i32
    return %arg0, %c0_i32 : i32, i32
  }
}

</mosaic_0001>

<llo_original>
// kernel: forward.1
$region0: #{forward.1}
  #allocation0 [shape = 'u32[]', space=smem, size = 0x4, offset = 0x4, fixed_abs, tag = 'smem constant byte address 0x4 - core index']
  #allocation1 [shape = 'u32[72,128]{1,0:T(1,128)}', space=vmem, size = 0x9000, scoped, tag = 'internal scratch']
  %s0 = inlined_call_operand.vmem [shape: bf16[8,8,1152], index: 0, kind: input, shape index: {}]
  %s1 = inlined_call_operand.vmem [shape: bf16[1152,256], index: 1, kind: input, shape index: {}]
  %s2 = inlined_call_operand.vmem [shape: bf16[1024,192], index: 2, kind: input, shape index: {}]
  %s3 = inlined_call_operand.vmem [shape: bf16[576,64], index: 3, kind: input, shape index: {}]
  %s4 = inlined_call_operand.vmem [shape: bf16[64,32], index: 4, kind: input, shape index: {}]
  %s5 = inlined_call_operand.vmem [shape: f32[1,2048], index: 5, kind: input, shape index: {}]
  %s6 = inlined_call_operand.vmem [shape: f32[1,576], index: 6, kind: input, shape index: {}]
  %s7 = inlined_call_operand.vmem [shape: f32[1,64], index: 7, kind: input, shape index: {}]
  %s8 = inlined_call_operand.vmem [shape: f32[1,32], index: 8, kind: input, shape index: {}]
  %s9 = inlined_call_operand.vmem [shape: f32[8,32], index: 9, kind: output, shape index: {}]
  %s10 = sld [smem:[#allocation0]]
  $region46: #{forward.1} parent=0
    _
  %s12 = ssub.s32 1, %s10
  %s13 = scalar_select 0, %s12, %s10
  // Predicated region
  $region2: #{forward.1} parent=0 // pred_check
    _
  $region3: #{forward.1} parent=0 // pred_check_branch
    %15 = sbr.rel (0) target = $region5
  $region4: #{forward.1} parent=0 // pred_region
    _
  $region5: #{forward.1} parent=0 // pred_fallthru
    _
  // Predicated region
  $region6: #{forward.1} parent=0 // pred_check
    _
  $region7: #{forward.1} parent=0 // pred_check_branch
    %17 = sbr.rel (0) target = $region9
  $region8: #{forward.1} parent=0 // pred_region
    _
  $region9: #{forward.1} parent=0 // pred_fallthru
    _
  // Predicated region
  $region10: #{forward.1} parent=0 // pred_check
    _
  $region11: #{forward.1} parent=0 // pred_check_branch
    %19 = sbr.rel (0) target = $region13
  $region12: #{forward.1} parent=0 // pred_region
    _
  $region13: #{forward.1} parent=0 // pred_fallthru
    _
  // Predicated region
  $region14: #{forward.1} parent=0 // pred_check
    _
  $region15: #{forward.1} parent=0 // pred_check_branch
    %21 = sbr.rel (0) target = $region17
  $region16: #{forward.1} parent=0 // pred_region
    _
  $region17: #{forward.1} parent=0 // pred_fallthru
    _
  // Predicated region
  $region18: #{forward.1} parent=0 // pred_check
    _
  $region19: #{forward.1} parent=0 // pred_check_branch
    %23 = sbr.rel (0) target = $region21
  $region20: #{forward.1} parent=0 // pred_region
    _
  $region21: #{forward.1} parent=0 // pred_fallthru
    _
  // Predicated region
  $region22: #{forward.1} parent=0 // pred_check
    _
  $region23: #{forward.1} parent=0 // pred_check_branch
    %25 = sbr.rel (0) target = $region25
  $region24: #{forward.1} parent=0 // pred_region
    _
  $region25: #{forward.1} parent=0 // pred_fallthru
    _
  // Predicated region
  $region26: #{forward.1} parent=0 // pred_check
    _
  $region27: #{forward.1} parent=0 // pred_check_branch
    %27 = sbr.rel (0) target = $region29
  $region28: #{forward.1} parent=0 // pred_region
    _
  $region29: #{forward.1} parent=0 // pred_fallthru
    _
  // Predicated region
  $region30: #{forward.1} parent=0 // pred_check
    _
  $region31: #{forward.1} parent=0 // pred_check_branch
    %29 = sbr.rel (0) target = $region33
  $region32: #{forward.1} parent=0 // pred_region
    _
  $region33: #{forward.1} parent=0 // pred_fallthru
    _
  // Predicated region
  $region34: #{forward.1} parent=0 // pred_check
    _
  $region35: #{forward.1} parent=0 // pred_check_branch
    %31 = sbr.rel (0) target = $region37
  $region36: #{forward.1} parent=0 // pred_region
    _
  $region37: #{forward.1} parent=0 // pred_fallthru
    _
  %v33 = vld [vmem:[%s0] sm:$0xff]
  %v34 = vld [vmem:[%s0 + $0x8] sm:$0xff]
  %v35 = vld [vmem:[%s0 + $0x10] sm:$0xff]
  %v36 = vld [vmem:[%s0 + $0x18] sm:$0xff]
  %v37 = vld [vmem:[%s0 + $0x20] sm:$0xf]
  %v38 = vld [vmem:[%s1] sm:$0xff]
  %v39 = vld [vmem:[%s1 + $0x8] sm:$0xff]
  %v40 = vld [vmem:[%s1 + $0x10] sm:$0xff]
  %v41 = vld [vmem:[%s1 + $0x18] sm:$0xff]
  %v42 = vld [vmem:[%s1 + $0x20] sm:$0xff]
  %v43 = vld [vmem:[%s1 + $0x28] sm:$0xff]
  %v44 = vld [vmem:[%s1 + $0x30] sm:$0xff]
  %v45 = vld [vmem:[%s1 + $0x38] sm:$0xff]
  %v46 = vld [vmem:[%s1 + $0x40] sm:$0xff]
  %v47 = vld [vmem:[%s1 + $0x48] sm:$0xff]
  %v48 = vld [vmem:[%s1 + $0x50] sm:$0xff]
  %v49 = vld [vmem:[%s1 + $0x58] sm:$0xff]
  %v50 = vld [vmem:[%s1 + $0x60] sm:$0xff]
  %v51 = vld [vmem:[%s1 + $0x68] sm:$0xff]
  %v52 = vld [vmem:[%s1 + $0x70] sm:$0xff]
  %v53 = vld [vmem:[%s1 + $0x78] sm:$0xff]
  %v54 = vld [vmem:[%s1 + $0x80] sm:$0xff]
  %v55 = vld [vmem:[%s1 + $0x88] sm:$0xff]
  %v56 = vld [vmem:[%s1 + $0x90] sm:$0xff]
  %v57 = vld [vmem:[%s1 + $0x98] sm:$0xff]
  %v58 = vld [vmem:[%s1 + $0xa0] sm:$0xff]
  %v59 = vld [vmem:[%s1 + $0xa8] sm:$0xff]
  %v60 = vld [vmem:[%s1 + $0xb0] sm:$0xff]
  %v61 = vld [vmem:[%s1 + $0xb8] sm:$0xff]
  %v62 = vld [vmem:[%s1 + $0xc0] sm:$0xff]
  %v63 = vld [vmem:[%s1 + $0xc8] sm:$0xff]
  %v64 = vld [vmem:[%s1 + $0xd0] sm:$0xff]
  %v65 = vld [vmem:[%s1 + $0xd8] sm:$0xff]
  %v66 = vld [vmem:[%s1 + $0xe0] sm:$0xff]
  %v67 = vld [vmem:[%s1 + $0xe8] sm:$0xff]
  %v68 = vld [vmem:[%s1 + $0xf0] sm:$0xff]
  %v69 = vld [vmem:[%s1 + $0xf8] sm:$0xff]
  %v70 = vld [vmem:[%s1 + $0x100] sm:$0xff]
  %v71 = vld [vmem:[%s1 + $0x108] sm:$0xff]
  %v72 = vld [vmem:[%s1 + $0x110] sm:$0xff]
  %v73 = vld [vmem:[%s1 + $0x118] sm:$0xff]
  %v74 = vld [vmem:[%s1 + $0x120] sm:$0xff]
  %v75 = vld [vmem:[%s1 + $0x128] sm:$0xff]
  %v76 = vld [vmem:[%s1 + $0x130] sm:$0xff]
  %v77 = vld [vmem:[%s1 + $0x138] sm:$0xff]
  %v78 = vld [vmem:[%s1 + $0x140] sm:$0xff]
  %v79 = vld [vmem:[%s1 + $0x148] sm:$0xff]
  %v80 = vld [vmem:[%s1 + $0x150] sm:$0xff]
  %v81 = vld [vmem:[%s1 + $0x158] sm:$0xff]
  %v82 = vld [vmem:[%s1 + $0x160] sm:$0xff]
  %v83 = vld [vmem:[%s1 + $0x168] sm:$0xff]
  %v84 = vld [vmem:[%s1 + $0x170] sm:$0xff]
  %v85 = vld [vmem:[%s1 + $0x178] sm:$0xff]
  %v86 = vld [vmem:[%s1 + $0x180] sm:$0xff]
  %v87 = vld [vmem:[%s1 + $0x188] sm:$0xff]
  %v88 = vld [vmem:[%s1 + $0x190] sm:$0xff]
  %v89 = vld [vmem:[%s1 + $0x198] sm:$0xff]
  %v90 = vld [vmem:[%s1 + $0x1a0] sm:$0xff]
  %v91 = vld [vmem:[%s1 + $0x1a8] sm:$0xff]
  %v92 = vld [vmem:[%s1 + $0x1b0] sm:$0xff]
  %v93 = vld [vmem:[%s1 + $0x1b8] sm:$0xff]
  %v94 = vld [vmem:[%s1 + $0x1c0] sm:$0xff]
  %v95 = vld [vmem:[%s1 + $0x1c8] sm:$0xff]
  %v96 = vld [vmem:[%s1 + $0x1d0] sm:$0xff]
  %v97 = vld [vmem:[%s1 + $0x1d8] sm:$0xff]
  %v98 = vld [vmem:[%s1 + $0x1e0] sm:$0xff]
  %v99 = vld [vmem:[%s1 + $0x1e8] sm:$0xff]
  %v100 = vld [vmem:[%s1 + $0x1f0] sm:$0xff]
  %v101 = vld [vmem:[%s1 + $0x1f8] sm:$0xff]
  %v102 = vld [vmem:[%s1 + $0x200] sm:$0xff]
  %v103 = vld [vmem:[%s1 + $0x208] sm:$0xff]
  %v104 = vld [vmem:[%s1 + $0x210] sm:$0xff]
  %v105 = vld [vmem:[%s1 + $0x218] sm:$0xff]
  %v106 = vld [vmem:[%s1 + $0x220] sm:$0xff]
  %v107 = vld [vmem:[%s1 + $0x228] sm:$0xff]
  %v108 = vld [vmem:[%s1 + $0x230] sm:$0xff]
  %v109 = vld [vmem:[%s1 + $0x238] sm:$0xff]
  %v110 = vld [vmem:[%s1 + $0x240] sm:$0xff]
  %v111 = vld [vmem:[%s1 + $0x248] sm:$0xff]
  %v112 = vld [vmem:[%s1 + $0x250] sm:$0xff]
  %v113 = vld [vmem:[%s1 + $0x258] sm:$0xff]
  %v114 = vld [vmem:[%s1 + $0x260] sm:$0xff]
  %v115 = vld [vmem:[%s1 + $0x268] sm:$0xff]
  %v116 = vld [vmem:[%s1 + $0x270] sm:$0xff]
  %v117 = vld [vmem:[%s1 + $0x278] sm:$0xff]
  %v118 = vld [vmem:[%s1 + $0x280] sm:$0xff]
  %v119 = vld [vmem:[%s1 + $0x288] sm:$0xff]
  %v120 = vld [vmem:[%s1 + $0x290] sm:$0xff]
  %v121 = vld [vmem:[%s1 + $0x298] sm:$0xff]
  %v122 = vld [vmem:[%s1 + $0x2a0] sm:$0xff]
  %v123 = vld [vmem:[%s1 + $0x2a8] sm:$0xff]
  %v124 = vld [vmem:[%s1 + $0x2b0] sm:$0xff]
  %v125 = vld [vmem:[%s1 + $0x2b8] sm:$0xff]
  %v126 = vld [vmem:[%s1 + $0x2c0] sm:$0xff]
  %v127 = vld [vmem:[%s1 + $0x2c8] sm:$0xff]
  %v128 = vld [vmem:[%s1 + $0x2d0] sm:$0xff]
  %v129 = vld [vmem:[%s1 + $0x2d8] sm:$0xff]
  %v130 = vld [vmem:[%s1 + $0x2e0] sm:$0xff]
  %v131 = vld [vmem:[%s1 + $0x2e8] sm:$0xff]
  %v132 = vld [vmem:[%s1 + $0x2f0] sm:$0xff]
  %v133 = vld [vmem:[%s1 + $0x2f8] sm:$0xff]
  %v134 = vld [vmem:[%s1 + $0x300] sm:$0xff]
  %v135 = vld [vmem:[%s1 + $0x308] sm:$0xff]
  %v136 = vld [vmem:[%s1 + $0x310] sm:$0xff]
  %v137 = vld [vmem:[%s1 + $0x318] sm:$0xff]
  %v138 = vld [vmem:[%s1 + $0x320] sm:$0xff]
  %v139 = vld [vmem:[%s1 + $0x328] sm:$0xff]
  %v140 = vld [vmem:[%s1 + $0x330] sm:$0xff]
  %v141 = vld [vmem:[%s1 + $0x338] sm:$0xff]
  %v142 = vld [vmem:[%s1 + $0x340] sm:$0xff]
  %v143 = vld [vmem:[%s1 + $0x348] sm:$0xff]
  %v144 = vld [vmem:[%s1 + $0x350] sm:$0xff]
  %v145 = vld [vmem:[%s1 + $0x358] sm:$0xff]
  %v146 = vld [vmem:[%s1 + $0x360] sm:$0xff]
  %v147 = vld [vmem:[%s1 + $0x368] sm:$0xff]
  %v148 = vld [vmem:[%s1 + $0x370] sm:$0xff]
  %v149 = vld [vmem:[%s1 + $0x378] sm:$0xff]
  %v150 = vld [vmem:[%s1 + $0x380] sm:$0xff]
  %v151 = vld [vmem:[%s1 + $0x388] sm:$0xff]
  %v152 = vld [vmem:[%s1 + $0x390] sm:$0xff]
  %v153 = vld [vmem:[%s1 + $0x398] sm:$0xff]
  %v154 = vld [vmem:[%s1 + $0x3a0] sm:$0xff]
  %v155 = vld [vmem:[%s1 + $0x3a8] sm:$0xff]
  %v156 = vld [vmem:[%s1 + $0x3b0] sm:$0xff]
  %v157 = vld [vmem:[%s1 + $0x3b8] sm:$0xff]
  %v158 = vld [vmem:[%s1 + $0x3c0] sm:$0xff]
  %v159 = vld [vmem:[%s1 + $0x3c8] sm:$0xff]
  %v160 = vld [vmem:[%s1 + $0x3d0] sm:$0xff]
  %v161 = vld [vmem:[%s1 + $0x3d8] sm:$0xff]
  %v162 = vld [vmem:[%s1 + $0x3e0] sm:$0xff]
  %v163 = vld [vmem:[%s1 + $0x3e8] sm:$0xff]
  %v164 = vld [vmem:[%s1 + $0x3f0] sm:$0xff]
  %v165 = vld [vmem:[%s1 + $0x3f8] sm:$0xff]
  %v166 = vld [vmem:[%s1 + $0x400] sm:$0xff]
  %v167 = vld [vmem:[%s1 + $0x408] sm:$0xff]
  %v168 = vld [vmem:[%s1 + $0x410] sm:$0xff]
  %v169 = vld [vmem:[%s1 + $0x418] sm:$0xff]
  %v170 = vld [vmem:[%s1 + $0x420] sm:$0xff]
  %v171 = vld [vmem:[%s1 + $0x428] sm:$0xff]
  %v172 = vld [vmem:[%s1 + $0x430] sm:$0xff]
  %v173 = vld [vmem:[%s1 + $0x438] sm:$0xff]
  %v174 = vld [vmem:[%s1 + $0x440] sm:$0xff]
  %v175 = vld [vmem:[%s1 + $0x448] sm:$0xff]
  %v176 = vld [vmem:[%s1 + $0x450] sm:$0xff]
  %v177 = vld [vmem:[%s1 + $0x458] sm:$0xff]
  %v178 = vld [vmem:[%s1 + $0x460] sm:$0xff]
  %v179 = vld [vmem:[%s1 + $0x468] sm:$0xff]
  %v180 = vld [vmem:[%s1 + $0x470] sm:$0xff]
  %v181 = vld [vmem:[%s1 + $0x478] sm:$0xff]
  %v187 = vunpack.c.l.b16 %v33
  %v188 = vunpack.c.h.b16 %v33
  %v189 = vunpack.c.l.b16 %v34
  %v190 = vunpack.c.h.b16 %v34
  %v191 = vunpack.c.l.b16 %v35
  %v192 = vunpack.c.h.b16 %v35
  %v193 = vunpack.c.l.b16 %v36
  %v194 = vunpack.c.h.b16 %v36
  %v195 = vunpack.c.l.b16 %v37
  %v196 = vpack.c.b16 %v187, %v187
  %v197 = vpack.c.b16 %v188, %v188
  %v198 = vpack.c.b16 %v189, %v189
  %v199 = vpack.c.b16 %v190, %v190
  %v200 = vpack.c.b16 %v191, %v191
  %v201 = vpack.c.b16 %v192, %v192
  %v202 = vpack.c.b16 %v193, %v193
  %v203 = vpack.c.b16 %v194, %v194
  %v204 = vpack.c.b16 %v195, %v195
  %v358 = vunpack.c.l.b16 %v38
  %v359 = vunpack.c.h.b16 %v38
  %v360 = vunpack.c.l.b16 %v39
  %v361 = vunpack.c.h.b16 %v39
  %v362 = vunpack.c.l.b16 %v40
  %v363 = vunpack.c.h.b16 %v40
  %v364 = vunpack.c.l.b16 %v41
  %v365 = vunpack.c.h.b16 %v41
  %v366 = vunpack.c.l.b16 %v42
  %v367 = vunpack.c.h.b16 %v42
  %v368 = vunpack.c.l.b16 %v43
  %v369 = vunpack.c.h.b16 %v43
  %v370 = vunpack.c.l.b16 %v44
  %v371 = vunpack.c.h.b16 %v44
  %v372 = vunpack.c.l.b16 %v45
  %v373 = vunpack.c.h.b16 %v45
  %v374 = vunpack.c.l.b16 %v46
  %v375 = vunpack.c.h.b16 %v46
  %v376 = vunpack.c.l.b16 %v47
  %v377 = vunpack.c.h.b16 %v47
  %v378 = vunpack.c.l.b16 %v48
  %v379 = vunpack.c.h.b16 %v48
  %v380 = vunpack.c.l.b16 %v49
  %v381 = vunpack.c.h.b16 %v49
  %v382 = vunpack.c.l.b16 %v50
  %v383 = vunpack.c.h.b16 %v50
  %v384 = vunpack.c.l.b16 %v51
  %v385 = vunpack.c.h.b16 %v51
  %v386 = vunpack.c.l.b16 %v52
  %v387 = vunpack.c.h.b16 %v52
  %v388 = vunpack.c.l.b16 %v53
  %v389 = vunpack.c.h.b16 %v53
  %v390 = vunpack.c.l.b16 %v54
  %v391 = vunpack.c.h.b16 %v54
  %v392 = vunpack.c.l.b16 %v55
  %v393 = vunpack.c.h.b16 %v55
  %v394 = vunpack.c.l.b16 %v56
  %v395 = vunpack.c.h.b16 %v56
  %v396 = vunpack.c.l.b16 %v57
  %v397 = vunpack.c.h.b16 %v57
  %v398 = vunpack.c.l.b16 %v58
  %v399 = vunpack.c.h.b16 %v58
  %v400 = vunpack.c.l.b16 %v59
  %v401 = vunpack.c.h.b16 %v59
  %v402 = vunpack.c.l.b16 %v60
  %v403 = vunpack.c.h.b16 %v60
  %v404 = vunpack.c.l.b16 %v61
  %v405 = vunpack.c.h.b16 %v61
  %v406 = vunpack.c.l.b16 %v62
  %v407 = vunpack.c.h.b16 %v62
  %v408 = vunpack.c.l.b16 %v63
  %v409 = vunpack.c.h.b16 %v63
  %v410 = vunpack.c.l.b16 %v64
  %v411 = vunpack.c.h.b16 %v64
  %v412 = vunpack.c.l.b16 %v65
  %v413 = vunpack.c.h.b16 %v65
  %v414 = vunpack.c.l.b16 %v66
  %v415 = vunpack.c.h.b16 %v66
  %v416 = vunpack.c.l.b16 %v67
  %v417 = vunpack.c.h.b16 %v67
  %v418 = vunpack.c.l.b16 %v68
  %v419 = vunpack.c.h.b16 %v68
  %v420 = vunpack.c.l.b16 %v69
  %v421 = vunpack.c.h.b16 %v69
  %v422 = vunpack.c.l.b16 %v70
  %v423 = vunpack.c.h.b16 %v70
  %v424 = vunpack.c.l.b16 %v71
  %v425 = vunpack.c.h.b16 %v71
  %v426 = vunpack.c.l.b16 %v72
  %v427 = vunpack.c.h.b16 %v72
  %v428 = vunpack.c.l.b16 %v73
  %v429 = vunpack.c.h.b16 %v73
  %v430 = vunpack.c.l.b16 %v74
  %v431 = vunpack.c.h.b16 %v74
  %v432 = vunpack.c.l.b16 %v75
  %v433 = vunpack.c.h.b16 %v75
  %v434 = vunpack.c.l.b16 %v76
  %v435 = vunpack.c.h.b16 %v76
  %v436 = vunpack.c.l.b16 %v77
  %v437 = vunpack.c.h.b16 %v77
  %v438 = vunpack.c.l.b16 %v78
  %v439 = vunpack.c.h.b16 %v78
  %v440 = vunpack.c.l.b16 %v79
  %v441 = vunpack.c.h.b16 %v79
  %v442 = vunpack.c.l.b16 %v80
  %v443 = vunpack.c.h.b16 %v80
  %v444 = vunpack.c.l.b16 %v81
  %v445 = vunpack.c.h.b16 %v81
  %v446 = vunpack.c.l.b16 %v82
  %v447 = vunpack.c.h.b16 %v82
  %v448 = vunpack.c.l.b16 %v83
  %v449 = vunpack.c.h.b16 %v83
  %v450 = vunpack.c.l.b16 %v84
  %v451 = vunpack.c.h.b16 %v84
  %v452 = vunpack.c.l.b16 %v85
  %v453 = vunpack.c.h.b16 %v85
  %v454 = vunpack.c.l.b16 %v86
  %v455 = vunpack.c.h.b16 %v86
  %v456 = vunpack.c.l.b16 %v87
  %v457 = vunpack.c.h.b16 %v87
  %v458 = vunpack.c.l.b16 %v88
  %v459 = vunpack.c.h.b16 %v88
  %v460 = vunpack.c.l.b16 %v89
  %v461 = vunpack.c.h.b16 %v89
  %v462 = vunpack.c.l.b16 %v90
  %v463 = vunpack.c.h.b16 %v90
  %v464 = vunpack.c.l.b16 %v91
  %v465 = vunpack.c.h.b16 %v91
  %v466 = vunpack.c.l.b16 %v92
  %v467 = vunpack.c.h.b16 %v92
  %v468 = vunpack.c.l.b16 %v93
  %v469 = vunpack.c.h.b16 %v93
  %v470 = vunpack.c.l.b16 %v94
  %v471 = vunpack.c.h.b16 %v94
  %v472 = vunpack.c.l.b16 %v95
  %v473 = vunpack.c.h.b16 %v95
  %v474 = vunpack.c.l.b16 %v96
  %v475 = vunpack.c.h.b16 %v96
  %v476 = vunpack.c.l.b16 %v97
  %v477 = vunpack.c.h.b16 %v97
  %v478 = vunpack.c.l.b16 %v98
  %v479 = vunpack.c.h.b16 %v98
  %v480 = vunpack.c.l.b16 %v99
  %v481 = vunpack.c.h.b16 %v99
  %v482 = vunpack.c.l.b16 %v100
  %v483 = vunpack.c.h.b16 %v100
  %v484 = vunpack.c.l.b16 %v101
  %v485 = vunpack.c.h.b16 %v101
  %v486 = vunpack.c.l.b16 %v102
  %v487 = vunpack.c.h.b16 %v102
  %v488 = vunpack.c.l.b16 %v103
  %v489 = vunpack.c.h.b16 %v103
  %v490 = vunpack.c.l.b16 %v104
  %v491 = vunpack.c.h.b16 %v104
  %v492 = vunpack.c.l.b16 %v105
  %v493 = vunpack.c.h.b16 %v105
  %v494 = vunpack.c.l.b16 %v106
  %v495 = vunpack.c.h.b16 %v106
  %v496 = vunpack.c.l.b16 %v107
  %v497 = vunpack.c.h.b16 %v107
  %v498 = vunpack.c.l.b16 %v108
  %v499 = vunpack.c.h.b16 %v108
  %v500 = vunpack.c.l.b16 %v109
  %v501 = vunpack.c.h.b16 %v109
  %v502 = vunpack.c.l.b16 %v110
  %v503 = vunpack.c.h.b16 %v110
  %v504 = vunpack.c.l.b16 %v111
  %v505 = vunpack.c.h.b16 %v111
  %v506 = vunpack.c.l.b16 %v112
  %v507 = vunpack.c.h.b16 %v112
  %v508 = vunpack.c.l.b16 %v113
  %v509 = vunpack.c.h.b16 %v113
  %v510 = vunpack.c.l.b16 %v114
  %v511 = vunpack.c.h.b16 %v114
  %v512 = vunpack.c.l.b16 %v115
  %v513 = vunpack.c.h.b16 %v115
  %v514 = vunpack.c.l.b16 %v116
  %v515 = vunpack.c.h.b16 %v116
  %v516 = vunpack.c.l.b16 %v117
  %v517 = vunpack.c.h.b16 %v117
  %v518 = vunpack.c.l.b16 %v118
  %v519 = vunpack.c.h.b16 %v118
  %v520 = vunpack.c.l.b16 %v119
  %v521 = vunpack.c.h.b16 %v119
  %v522 = vunpack.c.l.b16 %v120
  %v523 = vunpack.c.h.b16 %v120
  %v524 = vunpack.c.l.b16 %v121
  %v525 = vunpack.c.h.b16 %v121
  %v526 = vunpack.c.l.b16 %v122
  %v527 = vunpack.c.h.b16 %v122
  %v528 = vunpack.c.l.b16 %v123
  %v529 = vunpack.c.h.b16 %v123
  %v530 = vunpack.c.l.b16 %v124
  %v531 = vunpack.c.h.b16 %v124
  %v532 = vunpack.c.l.b16 %v125
  %v533 = vunpack.c.h.b16 %v125
  %v534 = vunpack.c.l.b16 %v126
  %v535 = vunpack.c.h.b16 %v126
  %v536 = vunpack.c.l.b16 %v127
  %v537 = vunpack.c.h.b16 %v127
  %v538 = vunpack.c.l.b16 %v128
  %v539 = vunpack.c.h.b16 %v128
  %v540 = vunpack.c.l.b16 %v129
  %v541 = vunpack.c.h.b16 %v129
  %v542 = vunpack.c.l.b16 %v130
  %v543 = vunpack.c.h.b16 %v130
  %v544 = vunpack.c.l.b16 %v131
  %v545 = vunpack.c.h.b16 %v131
  %v546 = vunpack.c.l.b16 %v132
  %v547 = vunpack.c.h.b16 %v132
  %v548 = vunpack.c.l.b16 %v133
  %v549 = vunpack.c.h.b16 %v133
  %v550 = vunpack.c.l.b16 %v134
  %v551 = vunpack.c.h.b16 %v134
  %v552 = vunpack.c.l.b16 %v135
  %v553 = vunpack.c.h.b16 %v135
  %v554 = vunpack.c.l.b16 %v136
  %v555 = vunpack.c.h.b16 %v136
  %v556 = vunpack.c.l.b16 %v137
  %v557 = vunpack.c.h.b16 %v137
  %v558 = vunpack.c.l.b16 %v138
  %v559 = vunpack.c.h.b16 %v138
  %v560 = vunpack.c.l.b16 %v139
  %v561 = vunpack.c.h.b16 %v139
  %v562 = vunpack.c.l.b16 %v140
  %v563 = vunpack.c.h.b16 %v140
  %v564 = vunpack.c.l.b16 %v141
  %v565 = vunpack.c.h.b16 %v141
  %v566 = vunpack.c.l.b16 %v142
  %v567 = vunpack.c.h.b16 %v142
  %v568 = vunpack.c.l.b16 %v143
  %v569 = vunpack.c.h.b16 %v143
  %v570 = vunpack.c.l.b16 %v144
  %v571 = vunpack.c.h.b16 %v144
  %v572 = vunpack.c.l.b16 %v145
  %v573 = vunpack.c.h.b16 %v145
  %v574 = vunpack.c.l.b16 %v146
  %v575 = vunpack.c.h.b16 %v146
  %v576 = vunpack.c.l.b16 %v147
  %v577 = vunpack.c.h.b16 %v147
  %v578 = vunpack.c.l.b16 %v148
  %v579 = vunpack.c.h.b16 %v148
  %v580 = vunpack.c.l.b16 %v149
  %v581 = vunpack.c.h.b16 %v149
  %v582 = vunpack.c.l.b16 %v150
  %v583 = vunpack.c.h.b16 %v150
  %v584 = vunpack.c.l.b16 %v151
  %v585 = vunpack.c.h.b16 %v151
  %v586 = vunpack.c.l.b16 %v152
  %v587 = vunpack.c.h.b16 %v152
  %v588 = vunpack.c.l.b16 %v153
  %v589 = vunpack.c.h.b16 %v153
  %v590 = vunpack.c.l.b16 %v154
  %v591 = vunpack.c.h.b16 %v154
  %v592 = vunpack.c.l.b16 %v155
  %v593 = vunpack.c.h.b16 %v155
  %v594 = vunpack.c.l.b16 %v156
  %v595 = vunpack.c.h.b16 %v156
  %v596 = vunpack.c.l.b16 %v157
  %v597 = vunpack.c.h.b16 %v157
  %v598 = vunpack.c.l.b16 %v158
  %v599 = vunpack.c.h.b16 %v158
  %v600 = vunpack.c.l.b16 %v159
  %v601 = vunpack.c.h.b16 %v159
  %v602 = vunpack.c.l.b16 %v160
  %v603 = vunpack.c.h.b16 %v160
  %v604 = vunpack.c.l.b16 %v161
  %v605 = vunpack.c.h.b16 %v161
  %v606 = vunpack.c.l.b16 %v162
  %v607 = vunpack.c.h.b16 %v162
  %v608 = vunpack.c.l.b16 %v163
  %v609 = vunpack.c.h.b16 %v163
  %v610 = vunpack.c.l.b16 %v164
  %v611 = vunpack.c.h.b16 %v164
  %v612 = vunpack.c.l.b16 %v165
  %v613 = vunpack.c.h.b16 %v165
  %v614 = vunpack.c.l.b16 %v166
  %v615 = vunpack.c.h.b16 %v166
  %v616 = vunpack.c.l.b16 %v167
  %v617 = vunpack.c.h.b16 %v167
  %v618 = vunpack.c.l.b16 %v168
  %v619 = vunpack.c.h.b16 %v168
  %v620 = vunpack.c.l.b16 %v169
  %v621 = vunpack.c.h.b16 %v169
  %v622 = vunpack.c.l.b16 %v170
  %v623 = vunpack.c.h.b16 %v170
  %v624 = vunpack.c.l.b16 %v171
  %v625 = vunpack.c.h.b16 %v171
  %v626 = vunpack.c.l.b16 %v172
  %v627 = vunpack.c.h.b16 %v172
  %v628 = vunpack.c.l.b16 %v173
  %v629 = vunpack.c.h.b16 %v173
  %v630 = vunpack.c.l.b16 %v174
  %v631 = vunpack.c.h.b16 %v174
  %v632 = vunpack.c.l.b16 %v175
  %v633 = vunpack.c.h.b16 %v175
  %v634 = vunpack.c.l.b16 %v176
  %v635 = vunpack.c.h.b16 %v176
  %v636 = vunpack.c.l.b16 %v177
  %v637 = vunpack.c.h.b16 %v177
  %v638 = vunpack.c.l.b16 %v178
  %v639 = vunpack.c.h.b16 %v178
  %v640 = vunpack.c.l.b16 %v179
  %v641 = vunpack.c.h.b16 %v179
  %v642 = vunpack.c.l.b16 %v180
  %v643 = vunpack.c.h.b16 %v180
  %v644 = vunpack.c.l.b16 %v181
  %v645 = vunpack.c.h.b16 %v181
  %v646 = vpack.c.b16 %v360, %v358
  %v647 = vpack.c.b16 %v361, %v359
  %v648 = vpack.c.b16 %v364, %v362
  %v649 = vpack.c.b16 %v365, %v363
  %v650 = vpack.c.b16 %v368, %v366
  %v651 = vpack.c.b16 %v369, %v367
  %v652 = vpack.c.b16 %v372, %v370
  %v653 = vpack.c.b16 %v373, %v371
  %v654 = vpack.c.b16 %v376, %v374
  %v655 = vpack.c.b16 %v377, %v375
  %v656 = vpack.c.b16 %v380, %v378
  %v657 = vpack.c.b16 %v381, %v379
  %v658 = vpack.c.b16 %v384, %v382
  %v659 = vpack.c.b16 %v385, %v383
  %v660 = vpack.c.b16 %v388, %v386
  %v661 = vpack.c.b16 %v389, %v387
  %v662 = vpack.c.b16 %v392, %v390
  %v663 = vpack.c.b16 %v393, %v391
  %v664 = vpack.c.b16 %v396, %v394
  %v665 = vpack.c.b16 %v397, %v395
  %v666 = vpack.c.b16 %v400, %v398
  %v667 = vpack.c.b16 %v401, %v399
  %v668 = vpack.c.b16 %v404, %v402
  %v669 = vpack.c.b16 %v405, %v403
  %v670 = vpack.c.b16 %v408, %v406
  %v671 = vpack.c.b16 %v409, %v407
  %v672 = vpack.c.b16 %v412, %v410
  %v673 = vpack.c.b16 %v413, %v411
  %v674 = vpack.c.b16 %v416, %v414
  %v675 = vpack.c.b16 %v417, %v415
  %v676 = vpack.c.b16 %v420, %v418
  %v677 = vpack.c.b16 %v421, %v419
  %v678 = vpack.c.b16 %v424, %v422
  %v679 = vpack.c.b16 %v425, %v423
  %v680 = vpack.c.b16 %v428, %v426
  %v681 = vpack.c.b16 %v429, %v427
  %v682 = vpack.c.b16 %v432, %v430
  %v683 = vpack.c.b16 %v433, %v431
  %v684 = vpack.c.b16 %v436, %v434
  %v685 = vpack.c.b16 %v437, %v435
  %v686 = vpack.c.b16 %v440, %v438
  %v687 = vpack.c.b16 %v441, %v439
  %v688 = vpack.c.b16 %v444, %v442
  %v689 = vpack.c.b16 %v445, %v443
  %v690 = vpack.c.b16 %v448, %v446
  %v691 = vpack.c.b16 %v449, %v447
  %v692 = vpack.c.b16 %v452, %v450
  %v693 = vpack.c.b16 %v453, %v451
  %v694 = vpack.c.b16 %v456, %v454
  %v695 = vpack.c.b16 %v457, %v455
  %v696 = vpack.c.b16 %v460, %v458
  %v697 = vpack.c.b16 %v461, %v459
  %v698 = vpack.c.b16 %v464, %v462
  %v699 = vpack.c.b16 %v465, %v463
  %v700 = vpack.c.b16 %v468, %v466
  %v701 = vpack.c.b16 %v469, %v467
  %v702 = vpack.c.b16 %v472, %v470
  %v703 = vpack.c.b16 %v473, %v471
  %v704 = vpack.c.b16 %v476, %v474
  %v705 = vpack.c.b16 %v477, %v475
  %v706 = vpack.c.b16 %v480, %v478
  %v707 = vpack.c.b16 %v481, %v479
  %v708 = vpack.c.b16 %v484, %v482
  %v709 = vpack.c.b16 %v485, %v483
  %v710 = vpack.c.b16 %v488, %v486
  %v711 = vpack.c.b16 %v489, %v487
  %v712 = vpack.c.b16 %v492, %v490
  %v713 = vpack.c.b16 %v493, %v491
  %v714 = vpack.c.b16 %v496, %v494
  %v715 = vpack.c.b16 %v497, %v495
  %v716 = vpack.c.b16 %v500, %v498
  %v717 = vpack.c.b16 %v501, %v499
  %v718 = vpack.c.b16 %v504, %v502
  %v719 = vpack.c.b16 %v505, %v503
  %v720 = vpack.c.b16 %v508, %v506
  %v721 = vpack.c.b16 %v509, %v507
  %v722 = vpack.c.b16 %v512, %v510
  %v723 = vpack.c.b16 %v513, %v511
  %v724 = vpack.c.b16 %v516, %v514
  %v725 = vpack.c.b16 %v517, %v515
  %v726 = vpack.c.b16 %v520, %v518
  %v727 = vpack.c.b16 %v521, %v519
  %v728 = vpack.c.b16 %v524, %v522
  %v729 = vpack.c.b16 %v525, %v523
  %v730 = vpack.c.b16 %v528, %v526
  %v731 = vpack.c.b16 %v529, %v527
  %v732 = vpack.c.b16 %v532, %v530
  %v733 = vpack.c.b16 %v533, %v531
  %v734 = vpack.c.b16 %v536, %v534
  %v735 = vpack.c.b16 %v537, %v535
  %v736 = vpack.c.b16 %v540, %v538
  %v737 = vpack.c.b16 %v541, %v539
  %v738 = vpack.c.b16 %v544, %v542
  %v739 = vpack.c.b16 %v545, %v543
  %v740 = vpack.c.b16 %v548, %v546
  %v741 = vpack.c.b16 %v549, %v547
  %v742 = vpack.c.b16 %v552, %v550
  %v743 = vpack.c.b16 %v553, %v551
  %v744 = vpack.c.b16 %v556, %v554
  %v745 = vpack.c.b16 %v557, %v555
  %v746 = vpack.c.b16 %v560, %v558
  %v747 = vpack.c.b16 %v561, %v559
  %v748 = vpack.c.b16 %v564, %v562
  %v749 = vpack.c.b16 %v565, %v563
  %v750 = vpack.c.b16 %v568, %v566
  %v751 = vpack.c.b16 %v569, %v567
  %v752 = vpack.c.b16 %v572, %v570
  %v753 = vpack.c.b16 %v573, %v571
  %v754 = vpack.c.b16 %v576, %v574
  %v755 = vpack.c.b16 %v577, %v575
  %v756 = vpack.c.b16 %v580, %v578
  %v757 = vpack.c.b16 %v581, %v579
  %v758 = vpack.c.b16 %v584, %v582
  %v759 = vpack.c.b16 %v585, %v583
  %v760 = vpack.c.b16 %v588, %v586
  %v761 = vpack.c.b16 %v589, %v587
  %v762 = vpack.c.b16 %v592, %v590
  %v763 = vpack.c.b16 %v593, %v591
  %v764 = vpack.c.b16 %v596, %v594
  %v765 = vpack.c.b16 %v597, %v595
  %v766 = vpack.c.b16 %v600, %v598
  %v767 = vpack.c.b16 %v601, %v599
  %v768 = vpack.c.b16 %v604, %v602
  %v769 = vpack.c.b16 %v605, %v603
  %v770 = vpack.c.b16 %v608, %v606
  %v771 = vpack.c.b16 %v609, %v607
  %v772 = vpack.c.b16 %v612, %v610
  %v773 = vpack.c.b16 %v613, %v611
  %v774 = vpack.c.b16 %v616, %v614
  %v775 = vpack.c.b16 %v617, %v615
  %v776 = vpack.c.b16 %v620, %v618
  %v777 = vpack.c.b16 %v621, %v619
  %v778 = vpack.c.b16 %v624, %v622
  %v779 = vpack.c.b16 %v625, %v623
  %v780 = vpack.c.b16 %v628, %v626
  %v781 = vpack.c.b16 %v629, %v627
  %v782 = vpack.c.b16 %v632, %v630
  %v783 = vpack.c.b16 %v633, %v631
  %v784 = vpack.c.b16 %v636, %v634
  %v785 = vpack.c.b16 %v637, %v635
  %v786 = vpack.c.b16 %v640, %v638
  %v787 = vpack.c.b16 %v641, %v639
  %v788 = vpack.c.b16 %v644, %v642
  %v789 = vpack.c.b16 %v645, %v643
  %934 = vmatpush.bf16.msra.mxu0 %v660
  %935 = vmatpush.bf16.msra.mxu0 %v658
  %936 = vmatpush.bf16.msra.mxu0 %v656
  %937 = vmatpush.bf16.msra.mxu0 %v654
  %938 = vmatpush.bf16.msra.mxu0 %v652
  %939 = vmatpush.bf16.msra.mxu0 %v650
  %940 = vmatpush.bf16.msra.mxu0 %v648
  %941 = vmatpush.bf16.msra.mxu0 %v646
  %942 = vmatmul.bf16.gmra.mxu0 %v196
  %v943 = vpop.f32.mrf.mxu0
  %v944 = vadd.f32 0.0, %v943
  %v945 = vpop.f32.mrf.mxu0
  %946 = vdwg.mxu0
  %947 = vmatpush.bf16.msra.mxu0 %v676
  %948 = vmatpush.bf16.msra.mxu0 %v674
  %949 = vmatpush.bf16.msra.mxu0 %v672
  %950 = vmatpush.bf16.msra.mxu0 %v670
  %951 = vmatpush.bf16.msra.mxu0 %v668
  %952 = vmatpush.bf16.msra.mxu0 %v666
  %953 = vmatpush.bf16.msra.mxu0 %v664
  %954 = vmatpush.bf16.msra.mxu0 %v662
  %955 = vmatmul.bf16.gmra.mxu0 %v197
  %v956 = vpop.f32.mrf.mxu0
  %v957 = vadd.f32 %v944, %v956
  %v958 = vpop.f32.mrf.mxu0
  %959 = vdwg.mxu0
  %960 = vmatpush.bf16.msra.mxu0 %v692
  %961 = vmatpush.bf16.msra.mxu0 %v690
  %962 = vmatpush.bf16.msra.mxu0 %v688
  %963 = vmatpush.bf16.msra.mxu0 %v686
  %964 = vmatpush.bf16.msra.mxu0 %v684
  %965 = vmatpush.bf16.msra.mxu0 %v682
  %966 = vmatpush.bf16.msra.mxu0 %v680
  %967 = vmatpush.bf16.msra.mxu0 %v678
  %968 = vmatmul.bf16.gmra.mxu0 %v198
  %v969 = vpop.f32.mrf.mxu0
  %v970 = vadd.f32 %v957, %v969
  %v971 = vpop.f32.mrf.mxu0
  %972 = vdwg.mxu0
  %973 = vmatpush.bf16.msra.mxu0 %v708
  %974 = vmatpush.bf16.msra.mxu0 %v706
  %975 = vmatpush.bf16.msra.mxu0 %v704
  %976 = vmatpush.bf16.msra.mxu0 %v702
  %977 = vmatpush.bf16.msra.mxu0 %v700
  %978 = vmatpush.bf16.msra.mxu0 %v698
  %979 = vmatpush.bf16.msra.mxu0 %v696
  %980 = vmatpush.bf16.msra.mxu0 %v694
  %981 = vmatmul.bf16.gmra.mxu0 %v199
  %v982 = vpop.f32.mrf.mxu0
  %v983 = vadd.f32 %v970, %v982
  %v984 = vpop.f32.mrf.mxu0
  %985 = vdwg.mxu0
  %986 = vmatpush.bf16.msra.mxu0 %v724
  %987 = vmatpush.bf16.msra.mxu0 %v722
  %988 = vmatpush.bf16.msra.mxu0 %v720
  %989 = vmatpush.bf16.msra.mxu0 %v718
  %990 = vmatpush.bf16.msra.mxu0 %v716
  %991 = vmatpush.bf16.msra.mxu0 %v714
  %992 = vmatpush.bf16.msra.mxu0 %v712
  %993 = vmatpush.bf16.msra.mxu0 %v710
  %994 = vmatmul.bf16.gmra.mxu0 %v200
  %v995 = vpop.f32.mrf.mxu0
  %v996 = vadd.f32 %v983, %v995
  %v997 = vpop.f32.mrf.mxu0
  %998 = vdwg.mxu0
  %999 = vmatpush.bf16.msra.mxu0 %v740
  %1000 = vmatpush.bf16.msra.mxu0 %v738
  %1001 = vmatpush.bf16.msra.mxu0 %v736
  %1002 = vmatpush.bf16.msra.mxu0 %v734
  %1003 = vmatpush.bf16.msra.mxu0 %v732
  %1004 = vmatpush.bf16.msra.mxu0 %v730
  %1005 = vmatpush.bf16.msra.mxu0 %v728
  %1006 = vmatpush.bf16.msra.mxu0 %v726
  %1007 = vmatmul.bf16.gmra.mxu0 %v201
  %v1008 = vpop.f32.mrf.mxu0
  %v1009 = vadd.f32 %v996, %v1008
  %v1010 = vpop.f32.mrf.mxu0
  %1011 = vdwg.mxu0
  %1012 = vmatpush.bf16.msra.mxu0 %v756
  %1013 = vmatpush.bf16.msra.mxu0 %v754
  %1014 = vmatpush.bf16.msra.mxu0 %v752
  %1015 = vmatpush.bf16.msra.mxu0 %v750
  %1016 = vmatpush.bf16.msra.mxu0 %v748
  %1017 = vmatpush.bf16.msra.mxu0 %v746
  %1018 = vmatpush.bf16.msra.mxu0 %v744
  %1019 = vmatpush.bf16.msra.mxu0 %v742
  %1020 = vmatmul.bf16.gmra.mxu0 %v202
  %v1021 = vpop.f32.mrf.mxu0
  %v1022 = vadd.f32 %v1009, %v1021
  %v1023 = vpop.f32.mrf.mxu0
  %1024 = vdwg.mxu0
  %1025 = vmatpush.bf16.msra.mxu0 %v772
  %1026 = vmatpush.bf16.msra.mxu0 %v770
  %1027 = vmatpush.bf16.msra.mxu0 %v768
  %1028 = vmatpush.bf16.msra.mxu0 %v766
  %1029 = vmatpush.bf16.msra.mxu0 %v764
  %1030 = vmatpush.bf16.msra.mxu0 %v762
  %1031 = vmatpush.bf16.msra.mxu0 %v760
  %1032 = vmatpush.bf16.msra.mxu0 %v758
  %1033 = vmatmul.bf16.gmra.mxu0 %v203
  %v1034 = vpop.f32.mrf.mxu0
  %v1035 = vadd.f32 %v1022, %v1034
  %v1036 = vpop.f32.mrf.mxu0
  %1037 = vdwg.mxu0
  %1038 = vmatpush.bf16.msra.mxu0 %v788
  %1039 = vmatpush.bf16.msra.mxu0 %v786
  %1040 = vmatpush.bf16.msra.mxu0 %v784
  %1041 = vmatpush.bf16.msra.mxu0 %v782
  %1042 = vmatpush.bf16.msra.mxu0 %v780
  %1043 = vmatpush.bf16.msra.mxu0 %v778
  %1044 = vmatpush.bf16.msra.mxu0 %v776
  %1045 = vmatpush.bf16.msra.mxu0 %v774
  %1046 = vmatmul.bf16.gmra.mxu0 %v204
  %v1047 = vpop.f32.mrf.mxu0
  %v1048 = vadd.f32 %v1035, %v1047
  %v1049 = vpop.f32.mrf.mxu0
  %1050 = vdwg.mxu0
  %1051 = vmatpush.bf16.msra.mxu0 %v661
  %1052 = vmatpush.bf16.msra.mxu0 %v659
  %1053 = vmatpush.bf16.msra.mxu0 %v657
  %1054 = vmatpush.bf16.msra.mxu0 %v655
  %1055 = vmatpush.bf16.msra.mxu0 %v653
  %1056 = vmatpush.bf16.msra.mxu0 %v651
  %1057 = vmatpush.bf16.msra.mxu0 %v649
  %1058 = vmatpush.bf16.msra.mxu0 %v647
  %1059 = vmatmul.bf16.gmra.mxu0 %v196
  %v1060 = vpop.f32.mrf.mxu0
  %v1061 = vadd.f32 0.0, %v1060
  %v1062 = vpop.f32.mrf.mxu0
  %1063 = vdwg.mxu0
  %1064 = vmatpush.bf16.msra.mxu0 %v677
  %1065 = vmatpush.bf16.msra.mxu0 %v675
  %1066 = vmatpush.bf16.msra.mxu0 %v673
  %1067 = vmatpush.bf16.msra.mxu0 %v671
  %1068 = vmatpush.bf16.msra.mxu0 %v669
  %1069 = vmatpush.bf16.msra.mxu0 %v667
  %1070 = vmatpush.bf16.msra.mxu0 %v665
  %1071 = vmatpush.bf16.msra.mxu0 %v663
  %1072 = vmatmul.bf16.gmra.mxu0 %v197
  %v1073 = vpop.f32.mrf.mxu0
  %v1074 = vadd.f32 %v1061, %v1073
  %v1075 = vpop.f32.mrf.mxu0
  %1076 = vdwg.mxu0
  %1077 = vmatpush.bf16.msra.mxu0 %v693
  %1078 = vmatpush.bf16.msra.mxu0 %v691
  %1079 = vmatpush.bf16.msra.mxu0 %v689
  %1080 = vmatpush.bf16.msra.mxu0 %v687
  %1081 = vmatpush.bf16.msra.mxu0 %v685
  %1082 = vmatpush.bf16.msra.mxu0 %v683
  %1083 = vmatpush.bf16.msra.mxu0 %v681
  %1084 = vmatpush.bf16.msra.mxu0 %v679
  %1085 = vmatmul.bf16.gmra.mxu0 %v198
  %v1086 = vpop.f32.mrf.mxu0
  %v1087 = vadd.f32 %v1074, %v1086
  %v1088 = vpop.f32.mrf.mxu0
  %1089 = vdwg.mxu0
  %1090 = vmatpush.bf16.msra.mxu0 %v709
  %1091 = vmatpush.bf16.msra.mxu0 %v707
  %1092 = vmatpush.bf16.msra.mxu0 %v705
  %1093 = vmatpush.bf16.msra.mxu0 %v703
  %1094 = vmatpush.bf16.msra.mxu0 %v701
  %1095 = vmatpush.bf16.msra.mxu0 %v699
  %1096 = vmatpush.bf16.msra.mxu0 %v697
  %1097 = vmatpush.bf16.msra.mxu0 %v695
  %1098 = vmatmul.bf16.gmra.mxu0 %v199
  %v1099 = vpop.f32.mrf.mxu0
  %v1100 = vadd.f32 %v1087, %v1099
  %v1101 = vpop.f32.mrf.mxu0
  %1102 = vdwg.mxu0
  %1103 = vmatpush.bf16.msra.mxu0 %v725
  %1104 = vmatpush.bf16.msra.mxu0 %v723
  %1105 = vmatpush.bf16.msra.mxu0 %v721
  %1106 = vmatpush.bf16.msra.mxu0 %v719
  %1107 = vmatpush.bf16.msra.mxu0 %v717
  %1108 = vmatpush.bf16.msra.mxu0 %v715
  %1109 = vmatpush.bf16.msra.mxu0 %v713
  %1110 = vmatpush.bf16.msra.mxu0 %v711
  %1111 = vmatmul.bf16.gmra.mxu0 %v200
  %v1112 = vpop.f32.mrf.mxu0
  %v1113 = vadd.f32 %v1100, %v1112
  %v1114 = vpop.f32.mrf.mxu0
  %1115 = vdwg.mxu0
  %1116 = vmatpush.bf16.msra.mxu0 %v741
  %1117 = vmatpush.bf16.msra.mxu0 %v739
  %1118 = vmatpush.bf16.msra.mxu0 %v737
  %1119 = vmatpush.bf16.msra.mxu0 %v735
  %1120 = vmatpush.bf16.msra.mxu0 %v733
  %1121 = vmatpush.bf16.msra.mxu0 %v731
  %1122 = vmatpush.bf16.msra.mxu0 %v729
  %1123 = vmatpush.bf16.msra.mxu0 %v727
  %1124 = vmatmul.bf16.gmra.mxu0 %v201
  %v1125 = vpop.f32.mrf.mxu0
  %v1126 = vadd.f32 %v1113, %v1125
  %v1127 = vpop.f32.mrf.mxu0
  %1128 = vdwg.mxu0
  %1129 = vmatpush.bf16.msra.mxu0 %v757
  %1130 = vmatpush.bf16.msra.mxu0 %v755
  %1131 = vmatpush.bf16.msra.mxu0 %v753
  %1132 = vmatpush.bf16.msra.mxu0 %v751
  %1133 = vmatpush.bf16.msra.mxu0 %v749
  %1134 = vmatpush.bf16.msra.mxu0 %v747
  %1135 = vmatpush.bf16.msra.mxu0 %v745
  %1136 = vmatpush.bf16.msra.mxu0 %v743
  %1137 = vmatmul.bf16.gmra.mxu0 %v202
  %v1138 = vpop.f32.mrf.mxu0
  %v1139 = vadd.f32 %v1126, %v1138
  %v1140 = vpop.f32.mrf.mxu0
  %1141 = vdwg.mxu0
  %1142 = vmatpush.bf16.msra.mxu0 %v773
  %1143 = vmatpush.bf16.msra.mxu0 %v771
  %1144 = vmatpush.bf16.msra.mxu0 %v769
  %1145 = vmatpush.bf16.msra.mxu0 %v767
  %1146 = vmatpush.bf16.msra.mxu0 %v765
  %1147 = vmatpush.bf16.msra.mxu0 %v763
  %1148 = vmatpush.bf16.msra.mxu0 %v761
  %1149 = vmatpush.bf16.msra.mxu0 %v759
  %1150 = vmatmul.bf16.gmra.mxu0 %v203
  %v1151 = vpop.f32.mrf.mxu0
  %v1152 = vadd.f32 %v1139, %v1151
  %v1153 = vpop.f32.mrf.mxu0
  %1154 = vdwg.mxu0
  %1155 = vmatpush.bf16.msra.mxu0 %v789
  %1156 = vmatpush.bf16.msra.mxu0 %v787
  %1157 = vmatpush.bf16.msra.mxu0 %v785
  %1158 = vmatpush.bf16.msra.mxu0 %v783
  %1159 = vmatpush.bf16.msra.mxu0 %v781
  %1160 = vmatpush.bf16.msra.mxu0 %v779
  %1161 = vmatpush.bf16.msra.mxu0 %v777
  %1162 = vmatpush.bf16.msra.mxu0 %v775
  %1163 = vmatmul.bf16.gmra.mxu0 %v204
  %v1164 = vpop.f32.mrf.mxu0
  %v1165 = vadd.f32 %v1152, %v1164
  %v1166 = vpop.f32.mrf.mxu0
  %1167 = vdwg.mxu0
  %s1168 = scalar_lea.vmem %s0, 36
  %v1169 = vld [vmem:[%s1168] sm:$0xff]
  %v1170 = vld [vmem:[%s1168 + $0x8] sm:$0xff]
  %v1171 = vld [vmem:[%s1168 + $0x10] sm:$0xff]
  %v1172 = vld [vmem:[%s1168 + $0x18] sm:$0xff]
  %v1173 = vld [vmem:[%s1168 + $0x20] sm:$0xf]
  %v1179 = vunpack.c.l.b16 %v1169
  %v1180 = vunpack.c.h.b16 %v1169
  %v1181 = vunpack.c.l.b16 %v1170
  %v1182 = vunpack.c.h.b16 %v1170
  %v1183 = vunpack.c.l.b16 %v1171
  %v1184 = vunpack.c.h.b16 %v1171
  %v1185 = vunpack.c.l.b16 %v1172
  %v1186 = vunpack.c.h.b16 %v1172
  %v1187 = vunpack.c.l.b16 %v1173
  %v1188 = vpack.c.b16 %v1179, %v1179
  %v1189 = vpack.c.b16 %v1180, %v1180
  %v1190 = vpack.c.b16 %v1181, %v1181
  %v1191 = vpack.c.b16 %v1182, %v1182
  %v1192 = vpack.c.b16 %v1183, %v1183
  %v1193 = vpack.c.b16 %v1184, %v1184
  %v1194 = vpack.c.b16 %v1185, %v1185
  %v1195 = vpack.c.b16 %v1186, %v1186
  %v1196 = vpack.c.b16 %v1187, %v1187
  %1206 = vmatpush.bf16.msra.mxu0 %v660
  %1207 = vmatpush.bf16.msra.mxu0 %v658
  %1208 = vmatpush.bf16.msra.mxu0 %v656
  %1209 = vmatpush.bf16.msra.mxu0 %v654
  %1210 = vmatpush.bf16.msra.mxu0 %v652
  %1211 = vmatpush.bf16.msra.mxu0 %v650
  %1212 = vmatpush.bf16.msra.mxu0 %v648
  %1213 = vmatpush.bf16.msra.mxu0 %v646
  %1214 = vmatmul.bf16.gmra.mxu0 %v1188
  %v1215 = vpop.f32.mrf.mxu0
  %v1216 = vadd.f32 0.0, %v1215
  %v1217 = vpop.f32.mrf.mxu0
  %1218 = vdwg.mxu0
  %1219 = vmatpush.bf16.msra.mxu0 %v676
  %1220 = vmatpush.bf16.msra.mxu0 %v674
  %1221 = vmatpush.bf16.msra.mxu0 %v672
  %1222 = vmatpush.bf16.msra.mxu0 %v670
  %1223 = vmatpush.bf16.msra.mxu0 %v668
  %1224 = vmatpush.bf16.msra.mxu0 %v666
  %1225 = vmatpush.bf16.msra.mxu0 %v664
  %1226 = vmatpush.bf16.msra.mxu0 %v662
  %1227 = vmatmul.bf16.gmra.mxu0 %v1189
  %v1228 = vpop.f32.mrf.mxu0
  %v1229 = vadd.f32 %v1216, %v1228
  %v1230 = vpop.f32.mrf.mxu0
  %1231 = vdwg.mxu0
  %1232 = vmatpush.bf16.msra.mxu0 %v692
  %1233 = vmatpush.bf16.msra.mxu0 %v690
  %1234 = vmatpush.bf16.msra.mxu0 %v688
  %1235 = vmatpush.bf16.msra.mxu0 %v686
  %1236 = vmatpush.bf16.msra.mxu0 %v684
  %1237 = vmatpush.bf16.msra.mxu0 %v682
  %1238 = vmatpush.bf16.msra.mxu0 %v680
  %1239 = vmatpush.bf16.msra.mxu0 %v678
  %1240 = vmatmul.bf16.gmra.mxu0 %v1190
  %v1241 = vpop.f32.mrf.mxu0
  %v1242 = vadd.f32 %v1229, %v1241
  %v1243 = vpop.f32.mrf.mxu0
  %1244 = vdwg.mxu0
  %1245 = vmatpush.bf16.msra.mxu0 %v708
  %1246 = vmatpush.bf16.msra.mxu0 %v706
  %1247 = vmatpush.bf16.msra.mxu0 %v704
  %1248 = vmatpush.bf16.msra.mxu0 %v702
  %1249 = vmatpush.bf16.msra.mxu0 %v700
  %1250 = vmatpush.bf16.msra.mxu0 %v698
  %1251 = vmatpush.bf16.msra.mxu0 %v696
  %1252 = vmatpush.bf16.msra.mxu0 %v694
  %1253 = vmatmul.bf16.gmra.mxu0 %v1191
  %v1254 = vpop.f32.mrf.mxu0
  %v1255 = vadd.f32 %v1242, %v1254
  %v1256 = vpop.f32.mrf.mxu0
  %1257 = vdwg.mxu0
  %1258 = vmatpush.bf16.msra.mxu0 %v724
  %1259 = vmatpush.bf16.msra.mxu0 %v722
  %1260 = vmatpush.bf16.msra.mxu0 %v720
  %1261 = vmatpush.bf16.msra.mxu0 %v718
  %1262 = vmatpush.bf16.msra.mxu0 %v716
  %1263 = vmatpush.bf16.msra.mxu0 %v714
  %1264 = vmatpush.bf16.msra.mxu0 %v712
  %1265 = vmatpush.bf16.msra.mxu0 %v710
  %1266 = vmatmul.bf16.gmra.mxu0 %v1192
  %v1267 = vpop.f32.mrf.mxu0
  %v1268 = vadd.f32 %v1255, %v1267
  %v1269 = vpop.f32.mrf.mxu0
  %1270 = vdwg.mxu0
  %1271 = vmatpush.bf16.msra.mxu0 %v740
  %1272 = vmatpush.bf16.msra.mxu0 %v738
  %1273 = vmatpush.bf16.msra.mxu0 %v736
  %1274 = vmatpush.bf16.msra.mxu0 %v734
  %1275 = vmatpush.bf16.msra.mxu0 %v732
  %1276 = vmatpush.bf16.msra.mxu0 %v730
  %1277 = vmatpush.bf16.msra.mxu0 %v728
  %1278 = vmatpush.bf16.msra.mxu0 %v726
  %1279 = vmatmul.bf16.gmra.mxu0 %v1193
  %v1280 = vpop.f32.mrf.mxu0
  %v1281 = vadd.f32 %v1268, %v1280
  %v1282 = vpop.f32.mrf.mxu0
  %1283 = vdwg.mxu0
  %1284 = vmatpush.bf16.msra.mxu0 %v756
  %1285 = vmatpush.bf16.msra.mxu0 %v754
  %1286 = vmatpush.bf16.msra.mxu0 %v752
  %1287 = vmatpush.bf16.msra.mxu0 %v750
  %1288 = vmatpush.bf16.msra.mxu0 %v748
  %1289 = vmatpush.bf16.msra.mxu0 %v746
  %1290 = vmatpush.bf16.msra.mxu0 %v744
  %1291 = vmatpush.bf16.msra.mxu0 %v742
  %1292 = vmatmul.bf16.gmra.mxu0 %v1194
  %v1293 = vpop.f32.mrf.mxu0
  %v1294 = vadd.f32 %v1281, %v1293
  %v1295 = vpop.f32.mrf.mxu0
  %1296 = vdwg.mxu0
  %1297 = vmatpush.bf16.msra.mxu0 %v772
  %1298 = vmatpush.bf16.msra.mxu0 %v770
  %1299 = vmatpush.bf16.msra.mxu0 %v768
  %1300 = vmatpush.bf16.msra.mxu0 %v766
  %1301 = vmatpush.bf16.msra.mxu0 %v764
  %1302 = vmatpush.bf16.msra.mxu0 %v762
  %1303 = vmatpush.bf16.msra.mxu0 %v760
  %1304 = vmatpush.bf16.msra.mxu0 %v758
  %1305 = vmatmul.bf16.gmra.mxu0 %v1195
  %v1306 = vpop.f32.mrf.mxu0
  %v1307 = vadd.f32 %v1294, %v1306
  %v1308 = vpop.f32.mrf.mxu0
  %1309 = vdwg.mxu0
  %1310 = vmatpush.bf16.msra.mxu0 %v788
  %1311 = vmatpush.bf16.msra.mxu0 %v786
  %1312 = vmatpush.bf16.msra.mxu0 %v784
  %1313 = vmatpush.bf16.msra.mxu0 %v782
  %1314 = vmatpush.bf16.msra.mxu0 %v780
  %1315 = vmatpush.bf16.msra.mxu0 %v778
  %1316 = vmatpush.bf16.msra.mxu0 %v776
  %1317 = vmatpush.bf16.msra.mxu0 %v774
  %1318 = vmatmul.bf16.gmra.mxu0 %v1196
  %v1319 = vpop.f32.mrf.mxu0
  %v1320 = vadd.f32 %v1307, %v1319
  %v1321 = vpop.f32.mrf.mxu0
  %1322 = vdwg.mxu0
  %1323 = vmatpush.bf16.msra.mxu0 %v661
  %1324 = vmatpush.bf16.msra.mxu0 %v659
  %1325 = vmatpush.bf16.msra.mxu0 %v657
  %1326 = vmatpush.bf16.msra.mxu0 %v655
  %1327 = vmatpush.bf16.msra.mxu0 %v653
  %1328 = vmatpush.bf16.msra.mxu0 %v651
  %1329 = vmatpush.bf16.msra.mxu0 %v649
  %1330 = vmatpush.bf16.msra.mxu0 %v647
  %1331 = vmatmul.bf16.gmra.mxu0 %v1188
  %v1332 = vpop.f32.mrf.mxu0
  %v1333 = vadd.f32 0.0, %v1332
  %v1334 = vpop.f32.mrf.mxu0
  %1335 = vdwg.mxu0
  %1336 = vmatpush.bf16.msra.mxu0 %v677
  %1337 = vmatpush.bf16.msra.mxu0 %v675
  %1338 = vmatpush.bf16.msra.mxu0 %v673
  %1339 = vmatpush.bf16.msra.mxu0 %v671
  %1340 = vmatpush.bf16.msra.mxu0 %v669
  %1341 = vmatpush.bf16.msra.mxu0 %v667
  %1342 = vmatpush.bf16.msra.mxu0 %v665
  %1343 = vmatpush.bf16.msra.mxu0 %v663
  %1344 = vmatmul.bf16.gmra.mxu0 %v1189
  %v1345 = vpop.f32.mrf.mxu0
  %v1346 = vadd.f32 %v1333, %v1345
  %v1347 = vpop.f32.mrf.mxu0
  %1348 = vdwg.mxu0
  %1349 = vmatpush.bf16.msra.mxu0 %v693
  %1350 = vmatpush.bf16.msra.mxu0 %v691
  %1351 = vmatpush.bf16.msra.mxu0 %v689
  %1352 = vmatpush.bf16.msra.mxu0 %v687
  %1353 = vmatpush.bf16.msra.mxu0 %v685
  %1354 = vmatpush.bf16.msra.mxu0 %v683
  %1355 = vmatpush.bf16.msra.mxu0 %v681
  %1356 = vmatpush.bf16.msra.mxu0 %v679
  %1357 = vmatmul.bf16.gmra.mxu0 %v1190
  %v1358 = vpop.f32.mrf.mxu0
  %v1359 = vadd.f32 %v1346, %v1358
  %v1360 = vpop.f32.mrf.mxu0
  %1361 = vdwg.mxu0
  %1362 = vmatpush.bf16.msra.mxu0 %v709
  %1363 = vmatpush.bf16.msra.mxu0 %v707
  %1364 = vmatpush.bf16.msra.mxu0 %v705
  %1365 = vmatpush.bf16.msra.mxu0 %v703
  %1366 = vmatpush.bf16.msra.mxu0 %v701
  %1367 = vmatpush.bf16.msra.mxu0 %v699
  %1368 = vmatpush.bf16.msra.mxu0 %v697
  %1369 = vmatpush.bf16.msra.mxu0 %v695
  %1370 = vmatmul.bf16.gmra.mxu0 %v1191
  %v1371 = vpop.f32.mrf.mxu0
  %v1372 = vadd.f32 %v1359, %v1371
  %v1373 = vpop.f32.mrf.mxu0
  %1374 = vdwg.mxu0
  %1375 = vmatpush.bf16.msra.mxu0 %v725
  %1376 = vmatpush.bf16.msra.mxu0 %v723
  %1377 = vmatpush.bf16.msra.mxu0 %v721
  %1378 = vmatpush.bf16.msra.mxu0 %v719
  %1379 = vmatpush.bf16.msra.mxu0 %v717
  %1380 = vmatpush.bf16.msra.mxu0 %v715
  %1381 = vmatpush.bf16.msra.mxu0 %v713
  %1382 = vmatpush.bf16.msra.mxu0 %v711
  %1383 = vmatmul.bf16.gmra.mxu0 %v1192
  %v1384 = vpop.f32.mrf.mxu0
  %v1385 = vadd.f32 %v1372, %v1384
  %v1386 = vpop.f32.mrf.mxu0
  %1387 = vdwg.mxu0
  %1388 = vmatpush.bf16.msra.mxu0 %v741
  %1389 = vmatpush.bf16.msra.mxu0 %v739
  %1390 = vmatpush.bf16.msra.mxu0 %v737
  %1391 = vmatpush.bf16.msra.mxu0 %v735
  %1392 = vmatpush.bf16.msra.mxu0 %v733
  %1393 = vmatpush.bf16.msra.mxu0 %v731
  %1394 = vmatpush.bf16.msra.mxu0 %v729
  %1395 = vmatpush.bf16.msra.mxu0 %v727
  %1396 = vmatmul.bf16.gmra.mxu0 %v1193
  %v1397 = vpop.f32.mrf.mxu0
  %v1398 = vadd.f32 %v1385, %v1397
  %v1399 = vpop.f32.mrf.mxu0
  %1400 = vdwg.mxu0
  %1401 = vmatpush.bf16.msra.mxu0 %v757
  %1402 = vmatpush.bf16.msra.mxu0 %v755
  %1403 = vmatpush.bf16.msra.mxu0 %v753
  %1404 = vmatpush.bf16.msra.mxu0 %v751
  %1405 = vmatpush.bf16.msra.mxu0 %v749
  %1406 = vmatpush.bf16.msra.mxu0 %v747
  %1407 = vmatpush.bf16.msra.mxu0 %v745
  %1408 = vmatpush.bf16.msra.mxu0 %v743
  %1409 = vmatmul.bf16.gmra.mxu0 %v1194
  %v1410 = vpop.f32.mrf.mxu0
  %v1411 = vadd.f32 %v1398, %v1410
  %v1412 = vpop.f32.mrf.mxu0
  %1413 = vdwg.mxu0
  %1414 = vmatpush.bf16.msra.mxu0 %v773
  %1415 = vmatpush.bf16.msra.mxu0 %v771
  %1416 = vmatpush.bf16.msra.mxu0 %v769
  %1417 = vmatpush.bf16.msra.mxu0 %v767
  %1418 = vmatpush.bf16.msra.mxu0 %v765
  %1419 = vmatpush.bf16.msra.mxu0 %v763
  %1420 = vmatpush.bf16.msra.mxu0 %v761
  %1421 = vmatpush.bf16.msra.mxu0 %v759
  %1422 = vmatmul.bf16.gmra.mxu0 %v1195
  %v1423 = vpop.f32.mrf.mxu0
  %v1424 = vadd.f32 %v1411, %v1423
  %v1425 = vpop.f32.mrf.mxu0
  %1426 = vdwg.mxu0
  %1427 = vmatpush.bf16.msra.mxu0 %v789
  %1428 = vmatpush.bf16.msra.mxu0 %v787
  %1429 = vmatpush.bf16.msra.mxu0 %v785
  %1430 = vmatpush.bf16.msra.mxu0 %v783
  %1431 = vmatpush.bf16.msra.mxu0 %v781
  %1432 = vmatpush.bf16.msra.mxu0 %v779
  %1433 = vmatpush.bf16.msra.mxu0 %v777
  %1434 = vmatpush.bf16.msra.mxu0 %v775
  %1435 = vmatmul.bf16.gmra.mxu0 %v1196
  %v1436 = vpop.f32.mrf.mxu0
  %v1437 = vadd.f32 %v1424, %v1436
  %v1438 = vpop.f32.mrf.mxu0
  %1439 = vdwg.mxu0
  %s1440 = scalar_lea.vmem %s0, 72
  %v1441 = vld [vmem:[%s1440] sm:$0xff]
  %v1442 = vld [vmem:[%s1440 + $0x8] sm:$0xff]
  %v1443 = vld [vmem:[%s1440 + $0x10] sm:$0xff]
  %v1444 = vld [vmem:[%s1440 + $0x18] sm:$0xff]
  %v1445 = vld [vmem:[%s1440 + $0x20] sm:$0xf]
  %v1451 = vunpack.c.l.b16 %v1441
  %v1452 = vunpack.c.h.b16 %v1441
  %v1453 = vunpack.c.l.b16 %v1442
  %v1454 = vunpack.c.h.b16 %v1442
  %v1455 = vunpack.c.l.b16 %v1443
  %v1456 = vunpack.c.h.b16 %v1443
  %v1457 = vunpack.c.l.b16 %v1444
  %v1458 = vunpack.c.h.b16 %v1444
  %v1459 = vunpack.c.l.b16 %v1445
  %v1460 = vpack.c.b16 %v1451, %v1451
  %v1461 = vpack.c.b16 %v1452, %v1452
  %v1462 = vpack.c.b16 %v1453, %v1453
  %v1463 = vpack.c.b16 %v1454, %v1454
  %v1464 = vpack.c.b16 %v1455, %v1455
  %v1465 = vpack.c.b16 %v1456, %v1456
  %v1466 = vpack.c.b16 %v1457, %v1457
  %v1467 = vpack.c.b16 %v1458, %v1458
  %v1468 = vpack.c.b16 %v1459, %v1459
  %1478 = vmatpush.bf16.msra.mxu0 %v660
  %1479 = vmatpush.bf16.msra.mxu0 %v658
  %1480 = vmatpush.bf16.msra.mxu0 %v656
  %1481 = vmatpush.bf16.msra.mxu0 %v654
  %1482 = vmatpush.bf16.msra.mxu0 %v652
  %1483 = vmatpush.bf16.msra.mxu0 %v650
  %1484 = vmatpush.bf16.msra.mxu0 %v648
  %1485 = vmatpush.bf16.msra.mxu0 %v646
  %1486 = vmatmul.bf16.gmra.mxu0 %v1460
  %v1487 = vpop.f32.mrf.mxu0
  %v1488 = vadd.f32 0.0, %v1487
  %v1489 = vpop.f32.mrf.mxu0
  %1490 = vdwg.mxu0
  %1491 = vmatpush.bf16.msra.mxu0 %v676
  %1492 = vmatpush.bf16.msra.mxu0 %v674
  %1493 = vmatpush.bf16.msra.mxu0 %v672
  %1494 = vmatpush.bf16.msra.mxu0 %v670
  %1495 = vmatpush.bf16.msra.mxu0 %v668
  %1496 = vmatpush.bf16.msra.mxu0 %v666
  %1497 = vmatpush.bf16.msra.mxu0 %v664
  %1498 = vmatpush.bf16.msra.mxu0 %v662
  %1499 = vmatmul.bf16.gmra.mxu0 %v1461
  %v1500 = vpop.f32.mrf.mxu0
  %v1501 = vadd.f32 %v1488, %v1500
  %v1502 = vpop.f32.mrf.mxu0
  %1503 = vdwg.mxu0
  %1504 = vmatpush.bf16.msra.mxu0 %v692
  %1505 = vmatpush.bf16.msra.mxu0 %v690
  %1506 = vmatpush.bf16.msra.mxu0 %v688
  %1507 = vmatpush.bf16.msra.mxu0 %v686
  %1508 = vmatpush.bf16.msra.mxu0 %v684
  %1509 = vmatpush.bf16.msra.mxu0 %v682
  %1510 = vmatpush.bf16.msra.mxu0 %v680
  %1511 = vmatpush.bf16.msra.mxu0 %v678
  %1512 = vmatmul.bf16.gmra.mxu0 %v1462
  %v1513 = vpop.f32.mrf.mxu0
  %v1514 = vadd.f32 %v1501, %v1513
  %v1515 = vpop.f32.mrf.mxu0
  %1516 = vdwg.mxu0
  %1517 = vmatpush.bf16.msra.mxu0 %v708
  %1518 = vmatpush.bf16.msra.mxu0 %v706
  %1519 = vmatpush.bf16.msra.mxu0 %v704
  %1520 = vmatpush.bf16.msra.mxu0 %v702
  %1521 = vmatpush.bf16.msra.mxu0 %v700
  %1522 = vmatpush.bf16.msra.mxu0 %v698
  %1523 = vmatpush.bf16.msra.mxu0 %v696
  %1524 = vmatpush.bf16.msra.mxu0 %v694
  %1525 = vmatmul.bf16.gmra.mxu0 %v1463
  %v1526 = vpop.f32.mrf.mxu0
  %v1527 = vadd.f32 %v1514, %v1526
  %v1528 = vpop.f32.mrf.mxu0
  %1529 = vdwg.mxu0
  %1530 = vmatpush.bf16.msra.mxu0 %v724
  %1531 = vmatpush.bf16.msra.mxu0 %v722
  %1532 = vmatpush.bf16.msra.mxu0 %v720
  %1533 = vmatpush.bf16.msra.mxu0 %v718
  %1534 = vmatpush.bf16.msra.mxu0 %v716
  %1535 = vmatpush.bf16.msra.mxu0 %v714
  %1536 = vmatpush.bf16.msra.mxu0 %v712
  %1537 = vmatpush.bf16.msra.mxu0 %v710
  %1538 = vmatmul.bf16.gmra.mxu0 %v1464
  %v1539 = vpop.f32.mrf.mxu0
  %v1540 = vadd.f32 %v1527, %v1539
  %v1541 = vpop.f32.mrf.mxu0
  %1542 = vdwg.mxu0
  %1543 = vmatpush.bf16.msra.mxu0 %v740
  %1544 = vmatpush.bf16.msra.mxu0 %v738
  %1545 = vmatpush.bf16.msra.mxu0 %v736
  %1546 = vmatpush.bf16.msra.mxu0 %v734
  %1547 = vmatpush.bf16.msra.mxu0 %v732
  %1548 = vmatpush.bf16.msra.mxu0 %v730
  %1549 = vmatpush.bf16.msra.mxu0 %v728
  %1550 = vmatpush.bf16.msra.mxu0 %v726
  %1551 = vmatmul.bf16.gmra.mxu0 %v1465
  %v1552 = vpop.f32.mrf.mxu0
  %v1553 = vadd.f32 %v1540, %v1552
  %v1554 = vpop.f32.mrf.mxu0
  %1555 = vdwg.mxu0
  %1556 = vmatpush.bf16.msra.mxu0 %v756
  %1557 = vmatpush.bf16.msra.mxu0 %v754
  %1558 = vmatpush.bf16.msra.mxu0 %v752
  %1559 = vmatpush.bf16.msra.mxu0 %v750
  %1560 = vmatpush.bf16.msra.mxu0 %v748
  %1561 = vmatpush.bf16.msra.mxu0 %v746
  %1562 = vmatpush.bf16.msra.mxu0 %v744
  %1563 = vmatpush.bf16.msra.mxu0 %v742
  %1564 = vmatmul.bf16.gmra.mxu0 %v1466
  %v1565 = vpop.f32.mrf.mxu0
  %v1566 = vadd.f32 %v1553, %v1565
  %v1567 = vpop.f32.mrf.mxu0
  %1568 = vdwg.mxu0
  %1569 = vmatpush.bf16.msra.mxu0 %v772
  %1570 = vmatpush.bf16.msra.mxu0 %v770
  %1571 = vmatpush.bf16.msra.mxu0 %v768
  %1572 = vmatpush.bf16.msra.mxu0 %v766
  %1573 = vmatpush.bf16.msra.mxu0 %v764
  %1574 = vmatpush.bf16.msra.mxu0 %v762
  %1575 = vmatpush.bf16.msra.mxu0 %v760
  %1576 = vmatpush.bf16.msra.mxu0 %v758
  %1577 = vmatmul.bf16.gmra.mxu0 %v1467
  %v1578 = vpop.f32.mrf.mxu0
  %v1579 = vadd.f32 %v1566, %v1578
  %v1580 = vpop.f32.mrf.mxu0
  %1581 = vdwg.mxu0
  %1582 = vmatpush.bf16.msra.mxu0 %v788
  %1583 = vmatpush.bf16.msra.mxu0 %v786
  %1584 = vmatpush.bf16.msra.mxu0 %v784
  %1585 = vmatpush.bf16.msra.mxu0 %v782
  %1586 = vmatpush.bf16.msra.mxu0 %v780
  %1587 = vmatpush.bf16.msra.mxu0 %v778
  %1588 = vmatpush.bf16.msra.mxu0 %v776
  %1589 = vmatpush.bf16.msra.mxu0 %v774
  %1590 = vmatmul.bf16.gmra.mxu0 %v1468
  %v1591 = vpop.f32.mrf.mxu0
  %v1592 = vadd.f32 %v1579, %v1591
  %v1593 = vpop.f32.mrf.mxu0
  %1594 = vdwg.mxu0
  %1595 = vmatpush.bf16.msra.mxu0 %v661
  %1596 = vmatpush.bf16.msra.mxu0 %v659
  %1597 = vmatpush.bf16.msra.mxu0 %v657
  %1598 = vmatpush.bf16.msra.mxu0 %v655
  %1599 = vmatpush.bf16.msra.mxu0 %v653
  %1600 = vmatpush.bf16.msra.mxu0 %v651
  %1601 = vmatpush.bf16.msra.mxu0 %v649
  %1602 = vmatpush.bf16.msra.mxu0 %v647
  %1603 = vmatmul.bf16.gmra.mxu0 %v1460
  %v1604 = vpop.f32.mrf.mxu0
  %v1605 = vadd.f32 0.0, %v1604
  %v1606 = vpop.f32.mrf.mxu0
  %1607 = vdwg.mxu0
  %1608 = vmatpush.bf16.msra.mxu0 %v677
  %1609 = vmatpush.bf16.msra.mxu0 %v675
  %1610 = vmatpush.bf16.msra.mxu0 %v673
  %1611 = vmatpush.bf16.msra.mxu0 %v671
  %1612 = vmatpush.bf16.msra.mxu0 %v669
  %1613 = vmatpush.bf16.msra.mxu0 %v667
  %1614 = vmatpush.bf16.msra.mxu0 %v665
  %1615 = vmatpush.bf16.msra.mxu0 %v663
  %1616 = vmatmul.bf16.gmra.mxu0 %v1461
  %v1617 = vpop.f32.mrf.mxu0
  %v1618 = vadd.f32 %v1605, %v1617
  %v1619 = vpop.f32.mrf.mxu0
  %1620 = vdwg.mxu0
  %1621 = vmatpush.bf16.msra.mxu0 %v693
  %1622 = vmatpush.bf16.msra.mxu0 %v691
  %1623 = vmatpush.bf16.msra.mxu0 %v689
  %1624 = vmatpush.bf16.msra.mxu0 %v687
  %1625 = vmatpush.bf16.msra.mxu0 %v685
  %1626 = vmatpush.bf16.msra.mxu0 %v683
  %1627 = vmatpush.bf16.msra.mxu0 %v681
  %1628 = vmatpush.bf16.msra.mxu0 %v679
  %1629 = vmatmul.bf16.gmra.mxu0 %v1462
  %v1630 = vpop.f32.mrf.mxu0
  %v1631 = vadd.f32 %v1618, %v1630
  %v1632 = vpop.f32.mrf.mxu0
  %1633 = vdwg.mxu0
  %1634 = vmatpush.bf16.msra.mxu0 %v709
  %1635 = vmatpush.bf16.msra.mxu0 %v707
  %1636 = vmatpush.bf16.msra.mxu0 %v705
  %1637 = vmatpush.bf16.msra.mxu0 %v703
  %1638 = vmatpush.bf16.msra.mxu0 %v701
  %1639 = vmatpush.bf16.msra.mxu0 %v699
  %1640 = vmatpush.bf16.msra.mxu0 %v697
  %1641 = vmatpush.bf16.msra.mxu0 %v695
  %1642 = vmatmul.bf16.gmra.mxu0 %v1463
  %v1643 = vpop.f32.mrf.mxu0
  %v1644 = vadd.f32 %v1631, %v1643
  %v1645 = vpop.f32.mrf.mxu0
  %1646 = vdwg.mxu0
  %1647 = vmatpush.bf16.msra.mxu0 %v725
  %1648 = vmatpush.bf16.msra.mxu0 %v723
  %1649 = vmatpush.bf16.msra.mxu0 %v721
  %1650 = vmatpush.bf16.msra.mxu0 %v719
  %1651 = vmatpush.bf16.msra.mxu0 %v717
  %1652 = vmatpush.bf16.msra.mxu0 %v715
  %1653 = vmatpush.bf16.msra.mxu0 %v713
  %1654 = vmatpush.bf16.msra.mxu0 %v711
  %1655 = vmatmul.bf16.gmra.mxu0 %v1464
  %v1656 = vpop.f32.mrf.mxu0
  %v1657 = vadd.f32 %v1644, %v1656
  %v1658 = vpop.f32.mrf.mxu0
  %1659 = vdwg.mxu0
  %1660 = vmatpush.bf16.msra.mxu0 %v741
  %1661 = vmatpush.bf16.msra.mxu0 %v739
  %1662 = vmatpush.bf16.msra.mxu0 %v737
  %1663 = vmatpush.bf16.msra.mxu0 %v735
  %1664 = vmatpush.bf16.msra.mxu0 %v733
  %1665 = vmatpush.bf16.msra.mxu0 %v731
  %1666 = vmatpush.bf16.msra.mxu0 %v729
  %1667 = vmatpush.bf16.msra.mxu0 %v727
  %1668 = vmatmul.bf16.gmra.mxu0 %v1465
  %v1669 = vpop.f32.mrf.mxu0
  %v1670 = vadd.f32 %v1657, %v1669
  %v1671 = vpop.f32.mrf.mxu0
  %1672 = vdwg.mxu0
  %1673 = vmatpush.bf16.msra.mxu0 %v757
  %1674 = vmatpush.bf16.msra.mxu0 %v755
  %1675 = vmatpush.bf16.msra.mxu0 %v753
  %1676 = vmatpush.bf16.msra.mxu0 %v751
  %1677 = vmatpush.bf16.msra.mxu0 %v749
  %1678 = vmatpush.bf16.msra.mxu0 %v747
  %1679 = vmatpush.bf16.msra.mxu0 %v745
  %1680 = vmatpush.bf16.msra.mxu0 %v743
  %1681 = vmatmul.bf16.gmra.mxu0 %v1466
  %v1682 = vpop.f32.mrf.mxu0
  %v1683 = vadd.f32 %v1670, %v1682
  %v1684 = vpop.f32.mrf.mxu0
  %1685 = vdwg.mxu0
  %1686 = vmatpush.bf16.msra.mxu0 %v773
  %1687 = vmatpush.bf16.msra.mxu0 %v771
  %1688 = vmatpush.bf16.msra.mxu0 %v769
  %1689 = vmatpush.bf16.msra.mxu0 %v767
  %1690 = vmatpush.bf16.msra.mxu0 %v765
  %1691 = vmatpush.bf16.msra.mxu0 %v763
  %1692 = vmatpush.bf16.msra.mxu0 %v761
  %1693 = vmatpush.bf16.msra.mxu0 %v759
  %1694 = vmatmul.bf16.gmra.mxu0 %v1467
  %v1695 = vpop.f32.mrf.mxu0
  %v1696 = vadd.f32 %v1683, %v1695
  %v1697 = vpop.f32.mrf.mxu0
  %1698 = vdwg.mxu0
  %1699 = vmatpush.bf16.msra.mxu0 %v789
  %1700 = vmatpush.bf16.msra.mxu0 %v787
  %1701 = vmatpush.bf16.msra.mxu0 %v785
  %1702 = vmatpush.bf16.msra.mxu0 %v783
  %1703 = vmatpush.bf16.msra.mxu0 %v781
  %1704 = vmatpush.bf16.msra.mxu0 %v779
  %1705 = vmatpush.bf16.msra.mxu0 %v777
  %1706 = vmatpush.bf16.msra.mxu0 %v775
  %1707 = vmatmul.bf16.gmra.mxu0 %v1468
  %v1708 = vpop.f32.mrf.mxu0
  %v1709 = vadd.f32 %v1696, %v1708
  %v1710 = vpop.f32.mrf.mxu0
  %1711 = vdwg.mxu0
  %s1712 = scalar_lea.vmem %s0, 108
  %v1713 = vld [vmem:[%s1712] sm:$0xff]
  %v1714 = vld [vmem:[%s1712 + $0x8] sm:$0xff]
  %v1715 = vld [vmem:[%s1712 + $0x10] sm:$0xff]
  %v1716 = vld [vmem:[%s1712 + $0x18] sm:$0xff]
  %v1717 = vld [vmem:[%s1712 + $0x20] sm:$0xf]
  %v1723 = vunpack.c.l.b16 %v1713
  %v1724 = vunpack.c.h.b16 %v1713
  %v1725 = vunpack.c.l.b16 %v1714
  %v1726 = vunpack.c.h.b16 %v1714
  %v1727 = vunpack.c.l.b16 %v1715
  %v1728 = vunpack.c.h.b16 %v1715
  %v1729 = vunpack.c.l.b16 %v1716
  %v1730 = vunpack.c.h.b16 %v1716
  %v1731 = vunpack.c.l.b16 %v1717
  %v1732 = vpack.c.b16 %v1723, %v1723
  %v1733 = vpack.c.b16 %v1724, %v1724
  %v1734 = vpack.c.b16 %v1725, %v1725
  %v1735 = vpack.c.b16 %v1726, %v1726
  %v1736 = vpack.c.b16 %v1727, %v1727
  %v1737 = vpack.c.b16 %v1728, %v1728
  %v1738 = vpack.c.b16 %v1729, %v1729
  %v1739 = vpack.c.b16 %v1730, %v1730
  %v1740 = vpack.c.b16 %v1731, %v1731
  %1750 = vmatpush.bf16.msra.mxu0 %v660
  %1751 = vmatpush.bf16.msra.mxu0 %v658
  %1752 = vmatpush.bf16.msra.mxu0 %v656
  %1753 = vmatpush.bf16.msra.mxu0 %v654
  %1754 = vmatpush.bf16.msra.mxu0 %v652
  %1755 = vmatpush.bf16.msra.mxu0 %v650
  %1756 = vmatpush.bf16.msra.mxu0 %v648
  %1757 = vmatpush.bf16.msra.mxu0 %v646
  %1758 = vmatmul.bf16.gmra.mxu0 %v1732
  %v1759 = vpop.f32.mrf.mxu0
  %v1760 = vadd.f32 0.0, %v1759
  %v1761 = vpop.f32.mrf.mxu0
  %1762 = vdwg.mxu0
  %1763 = vmatpush.bf16.msra.mxu0 %v676
  %1764 = vmatpush.bf16.msra.mxu0 %v674
  %1765 = vmatpush.bf16.msra.mxu0 %v672
  %1766 = vmatpush.bf16.msra.mxu0 %v670
  %1767 = vmatpush.bf16.msra.mxu0 %v668
  %1768 = vmatpush.bf16.msra.mxu0 %v666
  %1769 = vmatpush.bf16.msra.mxu0 %v664
  %1770 = vmatpush.bf16.msra.mxu0 %v662
  %1771 = vmatmul.bf16.gmra.mxu0 %v1733
  %v1772 = vpop.f32.mrf.mxu0
  %v1773 = vadd.f32 %v1760, %v1772
  %v1774 = vpop.f32.mrf.mxu0
  %1775 = vdwg.mxu0
  %1776 = vmatpush.bf16.msra.mxu0 %v692
  %1777 = vmatpush.bf16.msra.mxu0 %v690
  %1778 = vmatpush.bf16.msra.mxu0 %v688
  %1779 = vmatpush.bf16.msra.mxu0 %v686
  %1780 = vmatpush.bf16.msra.mxu0 %v684
  %1781 = vmatpush.bf16.msra.mxu0 %v682
  %1782 = vmatpush.bf16.msra.mxu0 %v680
  %1783 = vmatpush.bf16.msra.mxu0 %v678
  %1784 = vmatmul.bf16.gmra.mxu0 %v1734
  %v1785 = vpop.f32.mrf.mxu0
  %v1786 = vadd.f32 %v1773, %v1785
  %v1787 = vpop.f32.mrf.mxu0
  %1788 = vdwg.mxu0
  %1789 = vmatpush.bf16.msra.mxu0 %v708
  %1790 = vmatpush.bf16.msra.mxu0 %v706
  %1791 = vmatpush.bf16.msra.mxu0 %v704
  %1792 = vmatpush.bf16.msra.mxu0 %v702
  %1793 = vmatpush.bf16.msra.mxu0 %v700
  %1794 = vmatpush.bf16.msra.mxu0 %v698
  %1795 = vmatpush.bf16.msra.mxu0 %v696
  %1796 = vmatpush.bf16.msra.mxu0 %v694
  %1797 = vmatmul.bf16.gmra.mxu0 %v1735
  %v1798 = vpop.f32.mrf.mxu0
  %v1799 = vadd.f32 %v1786, %v1798
  %v1800 = vpop.f32.mrf.mxu0
  %1801 = vdwg.mxu0
  %1802 = vmatpush.bf16.msra.mxu0 %v724
  %1803 = vmatpush.bf16.msra.mxu0 %v722
  %1804 = vmatpush.bf16.msra.mxu0 %v720
  %1805 = vmatpush.bf16.msra.mxu0 %v718
  %1806 = vmatpush.bf16.msra.mxu0 %v716
  %1807 = vmatpush.bf16.msra.mxu0 %v714
  %1808 = vmatpush.bf16.msra.mxu0 %v712
  %1809 = vmatpush.bf16.msra.mxu0 %v710
  %1810 = vmatmul.bf16.gmra.mxu0 %v1736
  %v1811 = vpop.f32.mrf.mxu0
  %v1812 = vadd.f32 %v1799, %v1811
  %v1813 = vpop.f32.mrf.mxu0
  %1814 = vdwg.mxu0
  %1815 = vmatpush.bf16.msra.mxu0 %v740
  %1816 = vmatpush.bf16.msra.mxu0 %v738
  %1817 = vmatpush.bf16.msra.mxu0 %v736
  %1818 = vmatpush.bf16.msra.mxu0 %v734
  %1819 = vmatpush.bf16.msra.mxu0 %v732
  %1820 = vmatpush.bf16.msra.mxu0 %v730
  %1821 = vmatpush.bf16.msra.mxu0 %v728
  %1822 = vmatpush.bf16.msra.mxu0 %v726
  %1823 = vmatmul.bf16.gmra.mxu0 %v1737
  %v1824 = vpop.f32.mrf.mxu0
  %v1825 = vadd.f32 %v1812, %v1824
  %v1826 = vpop.f32.mrf.mxu0
  %1827 = vdwg.mxu0
  %1828 = vmatpush.bf16.msra.mxu0 %v756
  %1829 = vmatpush.bf16.msra.mxu0 %v754
  %1830 = vmatpush.bf16.msra.mxu0 %v752
  %1831 = vmatpush.bf16.msra.mxu0 %v750
  %1832 = vmatpush.bf16.msra.mxu0 %v748
  %1833 = vmatpush.bf16.msra.mxu0 %v746
  %1834 = vmatpush.bf16.msra.mxu0 %v744
  %1835 = vmatpush.bf16.msra.mxu0 %v742
  %1836 = vmatmul.bf16.gmra.mxu0 %v1738
  %v1837 = vpop.f32.mrf.mxu0
  %v1838 = vadd.f32 %v1825, %v1837
  %v1839 = vpop.f32.mrf.mxu0
  %1840 = vdwg.mxu0
  %1841 = vmatpush.bf16.msra.mxu0 %v772
  %1842 = vmatpush.bf16.msra.mxu0 %v770
  %1843 = vmatpush.bf16.msra.mxu0 %v768
  %1844 = vmatpush.bf16.msra.mxu0 %v766
  %1845 = vmatpush.bf16.msra.mxu0 %v764
  %1846 = vmatpush.bf16.msra.mxu0 %v762
  %1847 = vmatpush.bf16.msra.mxu0 %v760
  %1848 = vmatpush.bf16.msra.mxu0 %v758
  %1849 = vmatmul.bf16.gmra.mxu0 %v1739
  %v1850 = vpop.f32.mrf.mxu0
  %v1851 = vadd.f32 %v1838, %v1850
  %v1852 = vpop.f32.mrf.mxu0
  %1853 = vdwg.mxu0
  %1854 = vmatpush.bf16.msra.mxu0 %v788
  %1855 = vmatpush.bf16.msra.mxu0 %v786
  %1856 = vmatpush.bf16.msra.mxu0 %v784
  %1857 = vmatpush.bf16.msra.mxu0 %v782
  %1858 = vmatpush.bf16.msra.mxu0 %v780
  %1859 = vmatpush.bf16.msra.mxu0 %v778
  %1860 = vmatpush.bf16.msra.mxu0 %v776
  %1861 = vmatpush.bf16.msra.mxu0 %v774
  %1862 = vmatmul.bf16.gmra.mxu0 %v1740
  %v1863 = vpop.f32.mrf.mxu0
  %v1864 = vadd.f32 %v1851, %v1863
  %v1865 = vpop.f32.mrf.mxu0
  %1866 = vdwg.mxu0
  %1867 = vmatpush.bf16.msra.mxu0 %v661
  %1868 = vmatpush.bf16.msra.mxu0 %v659
  %1869 = vmatpush.bf16.msra.mxu0 %v657
  %1870 = vmatpush.bf16.msra.mxu0 %v655
  %1871 = vmatpush.bf16.msra.mxu0 %v653
  %1872 = vmatpush.bf16.msra.mxu0 %v651
  %1873 = vmatpush.bf16.msra.mxu0 %v649
  %1874 = vmatpush.bf16.msra.mxu0 %v647
  %1875 = vmatmul.bf16.gmra.mxu0 %v1732
  %v1876 = vpop.f32.mrf.mxu0
  %v1877 = vadd.f32 0.0, %v1876
  %v1878 = vpop.f32.mrf.mxu0
  %1879 = vdwg.mxu0
  %1880 = vmatpush.bf16.msra.mxu0 %v677
  %1881 = vmatpush.bf16.msra.mxu0 %v675
  %1882 = vmatpush.bf16.msra.mxu0 %v673
  %1883 = vmatpush.bf16.msra.mxu0 %v671
  %1884 = vmatpush.bf16.msra.mxu0 %v669
  %1885 = vmatpush.bf16.msra.mxu0 %v667
  %1886 = vmatpush.bf16.msra.mxu0 %v665
  %1887 = vmatpush.bf16.msra.mxu0 %v663
  %1888 = vmatmul.bf16.gmra.mxu0 %v1733
  %v1889 = vpop.f32.mrf.mxu0
  %v1890 = vadd.f32 %v1877, %v1889
  %v1891 = vpop.f32.mrf.mxu0
  %1892 = vdwg.mxu0
  %1893 = vmatpush.bf16.msra.mxu0 %v693
  %1894 = vmatpush.bf16.msra.mxu0 %v691
  %1895 = vmatpush.bf16.msra.mxu0 %v689
  %1896 = vmatpush.bf16.msra.mxu0 %v687
  %1897 = vmatpush.bf16.msra.mxu0 %v685
  %1898 = vmatpush.bf16.msra.mxu0 %v683
  %1899 = vmatpush.bf16.msra.mxu0 %v681
  %1900 = vmatpush.bf16.msra.mxu0 %v679
  %1901 = vmatmul.bf16.gmra.mxu0 %v1734
  %v1902 = vpop.f32.mrf.mxu0
  %v1903 = vadd.f32 %v1890, %v1902
  %v1904 = vpop.f32.mrf.mxu0
  %1905 = vdwg.mxu0
  %1906 = vmatpush.bf16.msra.mxu0 %v709
  %1907 = vmatpush.bf16.msra.mxu0 %v707
  %1908 = vmatpush.bf16.msra.mxu0 %v705
  %1909 = vmatpush.bf16.msra.mxu0 %v703
  %1910 = vmatpush.bf16.msra.mxu0 %v701
  %1911 = vmatpush.bf16.msra.mxu0 %v699
  %1912 = vmatpush.bf16.msra.mxu0 %v697
  %1913 = vmatpush.bf16.msra.mxu0 %v695
  %1914 = vmatmul.bf16.gmra.mxu0 %v1735
  %v1915 = vpop.f32.mrf.mxu0
  %v1916 = vadd.f32 %v1903, %v1915
  %v1917 = vpop.f32.mrf.mxu0
  %1918 = vdwg.mxu0
  %1919 = vmatpush.bf16.msra.mxu0 %v725
  %1920 = vmatpush.bf16.msra.mxu0 %v723
  %1921 = vmatpush.bf16.msra.mxu0 %v721
  %1922 = vmatpush.bf16.msra.mxu0 %v719
  %1923 = vmatpush.bf16.msra.mxu0 %v717
  %1924 = vmatpush.bf16.msra.mxu0 %v715
  %1925 = vmatpush.bf16.msra.mxu0 %v713
  %1926 = vmatpush.bf16.msra.mxu0 %v711
  %1927 = vmatmul.bf16.gmra.mxu0 %v1736
  %v1928 = vpop.f32.mrf.mxu0
  %v1929 = vadd.f32 %v1916, %v1928
  %v1930 = vpop.f32.mrf.mxu0
  %1931 = vdwg.mxu0
  %1932 = vmatpush.bf16.msra.mxu0 %v741
  %1933 = vmatpush.bf16.msra.mxu0 %v739
  %1934 = vmatpush.bf16.msra.mxu0 %v737
  %1935 = vmatpush.bf16.msra.mxu0 %v735
  %1936 = vmatpush.bf16.msra.mxu0 %v733
  %1937 = vmatpush.bf16.msra.mxu0 %v731
  %1938 = vmatpush.bf16.msra.mxu0 %v729
  %1939 = vmatpush.bf16.msra.mxu0 %v727
  %1940 = vmatmul.bf16.gmra.mxu0 %v1737
  %v1941 = vpop.f32.mrf.mxu0
  %v1942 = vadd.f32 %v1929, %v1941
  %v1943 = vpop.f32.mrf.mxu0
  %1944 = vdwg.mxu0
  %1945 = vmatpush.bf16.msra.mxu0 %v757
  %1946 = vmatpush.bf16.msra.mxu0 %v755
  %1947 = vmatpush.bf16.msra.mxu0 %v753
  %1948 = vmatpush.bf16.msra.mxu0 %v751
  %1949 = vmatpush.bf16.msra.mxu0 %v749
  %1950 = vmatpush.bf16.msra.mxu0 %v747
  %1951 = vmatpush.bf16.msra.mxu0 %v745
  %1952 = vmatpush.bf16.msra.mxu0 %v743
  %1953 = vmatmul.bf16.gmra.mxu0 %v1738
  %v1954 = vpop.f32.mrf.mxu0
  %v1955 = vadd.f32 %v1942, %v1954
  %v1956 = vpop.f32.mrf.mxu0
  %1957 = vdwg.mxu0
  %1958 = vmatpush.bf16.msra.mxu0 %v773
  %1959 = vmatpush.bf16.msra.mxu0 %v771
  %1960 = vmatpush.bf16.msra.mxu0 %v769
  %1961 = vmatpush.bf16.msra.mxu0 %v767
  %1962 = vmatpush.bf16.msra.mxu0 %v765
  %1963 = vmatpush.bf16.msra.mxu0 %v763
  %1964 = vmatpush.bf16.msra.mxu0 %v761
  %1965 = vmatpush.bf16.msra.mxu0 %v759
  %1966 = vmatmul.bf16.gmra.mxu0 %v1739
  %v1967 = vpop.f32.mrf.mxu0
  %v1968 = vadd.f32 %v1955, %v1967
  %v1969 = vpop.f32.mrf.mxu0
  %1970 = vdwg.mxu0
  %1971 = vmatpush.bf16.msra.mxu0 %v789
  %1972 = vmatpush.bf16.msra.mxu0 %v787
  %1973 = vmatpush.bf16.msra.mxu0 %v785
  %1974 = vmatpush.bf16.msra.mxu0 %v783
  %1975 = vmatpush.bf16.msra.mxu0 %v781
  %1976 = vmatpush.bf16.msra.mxu0 %v779
  %1977 = vmatpush.bf16.msra.mxu0 %v777
  %1978 = vmatpush.bf16.msra.mxu0 %v775
  %1979 = vmatmul.bf16.gmra.mxu0 %v1740
  %v1980 = vpop.f32.mrf.mxu0
  %v1981 = vadd.f32 %v1968, %v1980
  %v1982 = vpop.f32.mrf.mxu0
  %1983 = vdwg.mxu0
  %s1984 = scalar_lea.vmem %s0, 144
  %v1985 = vld [vmem:[%s1984] sm:$0xff]
  %v1986 = vld [vmem:[%s1984 + $0x8] sm:$0xff]
  %v1987 = vld [vmem:[%s1984 + $0x10] sm:$0xff]
  %v1988 = vld [vmem:[%s1984 + $0x18] sm:$0xff]
  %v1989 = vld [vmem:[%s1984 + $0x20] sm:$0xf]
  %v1995 = vunpack.c.l.b16 %v1985
  %v1996 = vunpack.c.h.b16 %v1985
  %v1997 = vunpack.c.l.b16 %v1986
  %v1998 = vunpack.c.h.b16 %v1986
  %v1999 = vunpack.c.l.b16 %v1987
  %v2000 = vunpack.c.h.b16 %v1987
  %v2001 = vunpack.c.l.b16 %v1988
  %v2002 = vunpack.c.h.b16 %v1988
  %v2003 = vunpack.c.l.b16 %v1989
  %v2004 = vpack.c.b16 %v1995, %v1995
  %v2005 = vpack.c.b16 %v1996, %v1996
  %v2006 = vpack.c.b16 %v1997, %v1997
  %v2007 = vpack.c.b16 %v1998, %v1998
  %v2008 = vpack.c.b16 %v1999, %v1999
  %v2009 = vpack.c.b16 %v2000, %v2000
  %v2010 = vpack.c.b16 %v2001, %v2001
  %v2011 = vpack.c.b16 %v2002, %v2002
  %v2012 = vpack.c.b16 %v2003, %v2003
  %2022 = vmatpush.bf16.msra.mxu0 %v660
  %2023 = vmatpush.bf16.msra.mxu0 %v658
  %2024 = vmatpush.bf16.msra.mxu0 %v656
  %2025 = vmatpush.bf16.msra.mxu0 %v654
  %2026 = vmatpush.bf16.msra.mxu0 %v652
  %2027 = vmatpush.bf16.msra.mxu0 %v650
  %2028 = vmatpush.bf16.msra.mxu0 %v648
  %2029 = vmatpush.bf16.msra.mxu0 %v646
  %2030 = vmatmul.bf16.gmra.mxu0 %v2004
  %v2031 = vpop.f32.mrf.mxu0
  %v2032 = vadd.f32 0.0, %v2031
  %v2033 = vpop.f32.mrf.mxu0
  %2034 = vdwg.mxu0
  %2035 = vmatpush.bf16.msra.mxu0 %v676
  %2036 = vmatpush.bf16.msra.mxu0 %v674
  %2037 = vmatpush.bf16.msra.mxu0 %v672
  %2038 = vmatpush.bf16.msra.mxu0 %v670
  %2039 = vmatpush.bf16.msra.mxu0 %v668
  %2040 = vmatpush.bf16.msra.mxu0 %v666
  %2041 = vmatpush.bf16.msra.mxu0 %v664
  %2042 = vmatpush.bf16.msra.mxu0 %v662
  %2043 = vmatmul.bf16.gmra.mxu0 %v2005
  %v2044 = vpop.f32.mrf.mxu0
  %v2045 = vadd.f32 %v2032, %v2044
  %v2046 = vpop.f32.mrf.mxu0
  %2047 = vdwg.mxu0
  %2048 = vmatpush.bf16.msra.mxu0 %v692
  %2049 = vmatpush.bf16.msra.mxu0 %v690
  %2050 = vmatpush.bf16.msra.mxu0 %v688
  %2051 = vmatpush.bf16.msra.mxu0 %v686
  %2052 = vmatpush.bf16.msra.mxu0 %v684
  %2053 = vmatpush.bf16.msra.mxu0 %v682
  %2054 = vmatpush.bf16.msra.mxu0 %v680
  %2055 = vmatpush.bf16.msra.mxu0 %v678
  %2056 = vmatmul.bf16.gmra.mxu0 %v2006
  %v2057 = vpop.f32.mrf.mxu0
  %v2058 = vadd.f32 %v2045, %v2057
  %v2059 = vpop.f32.mrf.mxu0
  %2060 = vdwg.mxu0
  %2061 = vmatpush.bf16.msra.mxu0 %v708
  %2062 = vmatpush.bf16.msra.mxu0 %v706
  %2063 = vmatpush.bf16.msra.mxu0 %v704
  %2064 = vmatpush.bf16.msra.mxu0 %v702
  %2065 = vmatpush.bf16.msra.mxu0 %v700
  %2066 = vmatpush.bf16.msra.mxu0 %v698
  %2067 = vmatpush.bf16.msra.mxu0 %v696
  %2068 = vmatpush.bf16.msra.mxu0 %v694
  %2069 = vmatmul.bf16.gmra.mxu0 %v2007
  %v2070 = vpop.f32.mrf.mxu0
  %v2071 = vadd.f32 %v2058, %v2070
  %v2072 = vpop.f32.mrf.mxu0
  %2073 = vdwg.mxu0
  %2074 = vmatpush.bf16.msra.mxu0 %v724
  %2075 = vmatpush.bf16.msra.mxu0 %v722
  %2076 = vmatpush.bf16.msra.mxu0 %v720
  %2077 = vmatpush.bf16.msra.mxu0 %v718
  %2078 = vmatpush.bf16.msra.mxu0 %v716
  %2079 = vmatpush.bf16.msra.mxu0 %v714
  %2080 = vmatpush.bf16.msra.mxu0 %v712
  %2081 = vmatpush.bf16.msra.mxu0 %v710
  %2082 = vmatmul.bf16.gmra.mxu0 %v2008
  %v2083 = vpop.f32.mrf.mxu0
  %v2084 = vadd.f32 %v2071, %v2083
  %v2085 = vpop.f32.mrf.mxu0
  %2086 = vdwg.mxu0
  %2087 = vmatpush.bf16.msra.mxu0 %v740
  %2088 = vmatpush.bf16.msra.mxu0 %v738
  %2089 = vmatpush.bf16.msra.mxu0 %v736
  %2090 = vmatpush.bf16.msra.mxu0 %v734
  %2091 = vmatpush.bf16.msra.mxu0 %v732
  %2092 = vmatpush.bf16.msra.mxu0 %v730
  %2093 = vmatpush.bf16.msra.mxu0 %v728
  %2094 = vmatpush.bf16.msra.mxu0 %v726
  %2095 = vmatmul.bf16.gmra.mxu0 %v2009
  %v2096 = vpop.f32.mrf.mxu0
  %v2097 = vadd.f32 %v2084, %v2096
  %v2098 = vpop.f32.mrf.mxu0
  %2099 = vdwg.mxu0
  %2100 = vmatpush.bf16.msra.mxu0 %v756
  %2101 = vmatpush.bf16.msra.mxu0 %v754
  %2102 = vmatpush.bf16.msra.mxu0 %v752
  %2103 = vmatpush.bf16.msra.mxu0 %v750
  %2104 = vmatpush.bf16.msra.mxu0 %v748
  %2105 = vmatpush.bf16.msra.mxu0 %v746
  %2106 = vmatpush.bf16.msra.mxu0 %v744
  %2107 = vmatpush.bf16.msra.mxu0 %v742
  %2108 = vmatmul.bf16.gmra.mxu0 %v2010
  %v2109 = vpop.f32.mrf.mxu0
  %v2110 = vadd.f32 %v2097, %v2109
  %v2111 = vpop.f32.mrf.mxu0
  %2112 = vdwg.mxu0
  %2113 = vmatpush.bf16.msra.mxu0 %v772
  %2114 = vmatpush.bf16.msra.mxu0 %v770
  %2115 = vmatpush.bf16.msra.mxu0 %v768
  %2116 = vmatpush.bf16.msra.mxu0 %v766
  %2117 = vmatpush.bf16.msra.mxu0 %v764
  %2118 = vmatpush.bf16.msra.mxu0 %v762
  %2119 = vmatpush.bf16.msra.mxu0 %v760
  %2120 = vmatpush.bf16.msra.mxu0 %v758
  %2121 = vmatmul.bf16.gmra.mxu0 %v2011
  %v2122 = vpop.f32.mrf.mxu0
  %v2123 = vadd.f32 %v2110, %v2122
  %v2124 = vpop.f32.mrf.mxu0
  %2125 = vdwg.mxu0
  %2126 = vmatpush.bf16.msra.mxu0 %v788
  %2127 = vmatpush.bf16.msra.mxu0 %v786
  %2128 = vmatpush.bf16.msra.mxu0 %v784
  %2129 = vmatpush.bf16.msra.mxu0 %v782
  %2130 = vmatpush.bf16.msra.mxu0 %v780
  %2131 = vmatpush.bf16.msra.mxu0 %v778
  %2132 = vmatpush.bf16.msra.mxu0 %v776
  %2133 = vmatpush.bf16.msra.mxu0 %v774
  %2134 = vmatmul.bf16.gmra.mxu0 %v2012
  %v2135 = vpop.f32.mrf.mxu0
  %v2136 = vadd.f32 %v2123, %v2135
  %v2137 = vpop.f32.mrf.mxu0
  %2138 = vdwg.mxu0
  %2139 = vmatpush.bf16.msra.mxu0 %v661
  %2140 = vmatpush.bf16.msra.mxu0 %v659
  %2141 = vmatpush.bf16.msra.mxu0 %v657
  %2142 = vmatpush.bf16.msra.mxu0 %v655
  %2143 = vmatpush.bf16.msra.mxu0 %v653
  %2144 = vmatpush.bf16.msra.mxu0 %v651
  %2145 = vmatpush.bf16.msra.mxu0 %v649
  %2146 = vmatpush.bf16.msra.mxu0 %v647
  %2147 = vmatmul.bf16.gmra.mxu0 %v2004
  %v2148 = vpop.f32.mrf.mxu0
  %v2149 = vadd.f32 0.0, %v2148
  %v2150 = vpop.f32.mrf.mxu0
  %2151 = vdwg.mxu0
  %2152 = vmatpush.bf16.msra.mxu0 %v677
  %2153 = vmatpush.bf16.msra.mxu0 %v675
  %2154 = vmatpush.bf16.msra.mxu0 %v673
  %2155 = vmatpush.bf16.msra.mxu0 %v671
  %2156 = vmatpush.bf16.msra.mxu0 %v669
  %2157 = vmatpush.bf16.msra.mxu0 %v667
  %2158 = vmatpush.bf16.msra.mxu0 %v665
  %2159 = vmatpush.bf16.msra.mxu0 %v663
  %2160 = vmatmul.bf16.gmra.mxu0 %v2005
  %v2161 = vpop.f32.mrf.mxu0
  %v2162 = vadd.f32 %v2149, %v2161
  %v2163 = vpop.f32.mrf.mxu0
  %2164 = vdwg.mxu0
  %2165 = vmatpush.bf16.msra.mxu0 %v693
  %2166 = vmatpush.bf16.msra.mxu0 %v691
  %2167 = vmatpush.bf16.msra.mxu0 %v689
  %2168 = vmatpush.bf16.msra.mxu0 %v687
  %2169 = vmatpush.bf16.msra.mxu0 %v685
  %2170 = vmatpush.bf16.msra.mxu0 %v683
  %2171 = vmatpush.bf16.msra.mxu0 %v681
  %2172 = vmatpush.bf16.msra.mxu0 %v679
  %2173 = vmatmul.bf16.gmra.mxu0 %v2006
  %v2174 = vpop.f32.mrf.mxu0
  %v2175 = vadd.f32 %v2162, %v2174
  %v2176 = vpop.f32.mrf.mxu0
  %2177 = vdwg.mxu0
  %2178 = vmatpush.bf16.msra.mxu0 %v709
  %2179 = vmatpush.bf16.msra.mxu0 %v707
  %2180 = vmatpush.bf16.msra.mxu0 %v705
  %2181 = vmatpush.bf16.msra.mxu0 %v703
  %2182 = vmatpush.bf16.msra.mxu0 %v701
  %2183 = vmatpush.bf16.msra.mxu0 %v699
  %2184 = vmatpush.bf16.msra.mxu0 %v697
  %2185 = vmatpush.bf16.msra.mxu0 %v695
  %2186 = vmatmul.bf16.gmra.mxu0 %v2007
  %v2187 = vpop.f32.mrf.mxu0
  %v2188 = vadd.f32 %v2175, %v2187
  %v2189 = vpop.f32.mrf.mxu0
  %2190 = vdwg.mxu0
  %2191 = vmatpush.bf16.msra.mxu0 %v725
  %2192 = vmatpush.bf16.msra.mxu0 %v723
  %2193 = vmatpush.bf16.msra.mxu0 %v721
  %2194 = vmatpush.bf16.msra.mxu0 %v719
  %2195 = vmatpush.bf16.msra.mxu0 %v717
  %2196 = vmatpush.bf16.msra.mxu0 %v715
  %2197 = vmatpush.bf16.msra.mxu0 %v713
  %2198 = vmatpush.bf16.msra.mxu0 %v711
  %2199 = vmatmul.bf16.gmra.mxu0 %v2008
  %v2200 = vpop.f32.mrf.mxu0
  %v2201 = vadd.f32 %v2188, %v2200
  %v2202 = vpop.f32.mrf.mxu0
  %2203 = vdwg.mxu0
  %2204 = vmatpush.bf16.msra.mxu0 %v741
  %2205 = vmatpush.bf16.msra.mxu0 %v739
  %2206 = vmatpush.bf16.msra.mxu0 %v737
  %2207 = vmatpush.bf16.msra.mxu0 %v735
  %2208 = vmatpush.bf16.msra.mxu0 %v733
  %2209 = vmatpush.bf16.msra.mxu0 %v731
  %2210 = vmatpush.bf16.msra.mxu0 %v729
  %2211 = vmatpush.bf16.msra.mxu0 %v727
  %2212 = vmatmul.bf16.gmra.mxu0 %v2009
  %v2213 = vpop.f32.mrf.mxu0
  %v2214 = vadd.f32 %v2201, %v2213
  %v2215 = vpop.f32.mrf.mxu0
  %2216 = vdwg.mxu0
  %2217 = vmatpush.bf16.msra.mxu0 %v757
  %2218 = vmatpush.bf16.msra.mxu0 %v755
  %2219 = vmatpush.bf16.msra.mxu0 %v753
  %2220 = vmatpush.bf16.msra.mxu0 %v751
  %2221 = vmatpush.bf16.msra.mxu0 %v749
  %2222 = vmatpush.bf16.msra.mxu0 %v747
  %2223 = vmatpush.bf16.msra.mxu0 %v745
  %2224 = vmatpush.bf16.msra.mxu0 %v743
  %2225 = vmatmul.bf16.gmra.mxu0 %v2010
  %v2226 = vpop.f32.mrf.mxu0
  %v2227 = vadd.f32 %v2214, %v2226
  %v2228 = vpop.f32.mrf.mxu0
  %2229 = vdwg.mxu0
  %2230 = vmatpush.bf16.msra.mxu0 %v773
  %2231 = vmatpush.bf16.msra.mxu0 %v771
  %2232 = vmatpush.bf16.msra.mxu0 %v769
  %2233 = vmatpush.bf16.msra.mxu0 %v767
  %2234 = vmatpush.bf16.msra.mxu0 %v765
  %2235 = vmatpush.bf16.msra.mxu0 %v763
  %2236 = vmatpush.bf16.msra.mxu0 %v761
  %2237 = vmatpush.bf16.msra.mxu0 %v759
  %2238 = vmatmul.bf16.gmra.mxu0 %v2011
  %v2239 = vpop.f32.mrf.mxu0
  %v2240 = vadd.f32 %v2227, %v2239
  %v2241 = vpop.f32.mrf.mxu0
  %2242 = vdwg.mxu0
  %2243 = vmatpush.bf16.msra.mxu0 %v789
  %2244 = vmatpush.bf16.msra.mxu0 %v787
  %2245 = vmatpush.bf16.msra.mxu0 %v785
  %2246 = vmatpush.bf16.msra.mxu0 %v783
  %2247 = vmatpush.bf16.msra.mxu0 %v781
  %2248 = vmatpush.bf16.msra.mxu0 %v779
  %2249 = vmatpush.bf16.msra.mxu0 %v777
  %2250 = vmatpush.bf16.msra.mxu0 %v775
  %2251 = vmatmul.bf16.gmra.mxu0 %v2012
  %v2252 = vpop.f32.mrf.mxu0
  %v2253 = vadd.f32 %v2240, %v2252
  %v2254 = vpop.f32.mrf.mxu0
  %2255 = vdwg.mxu0
  %s2256 = scalar_lea.vmem %s0, 180
  %v2257 = vld [vmem:[%s2256] sm:$0xff]
  %v2258 = vld [vmem:[%s2256 + $0x8] sm:$0xff]
  %v2259 = vld [vmem:[%s2256 + $0x10] sm:$0xff]
  %v2260 = vld [vmem:[%s2256 + $0x18] sm:$0xff]
  %v2261 = vld [vmem:[%s2256 + $0x20] sm:$0xf]
  %v2267 = vunpack.c.l.b16 %v2257
  %v2268 = vunpack.c.h.b16 %v2257
  %v2269 = vunpack.c.l.b16 %v2258
  %v2270 = vunpack.c.h.b16 %v2258
  %v2271 = vunpack.c.l.b16 %v2259
  %v2272 = vunpack.c.h.b16 %v2259
  %v2273 = vunpack.c.l.b16 %v2260
  %v2274 = vunpack.c.h.b16 %v2260
  %v2275 = vunpack.c.l.b16 %v2261
  %v2276 = vpack.c.b16 %v2267, %v2267
  %v2277 = vpack.c.b16 %v2268, %v2268
  %v2278 = vpack.c.b16 %v2269, %v2269
  %v2279 = vpack.c.b16 %v2270, %v2270
  %v2280 = vpack.c.b16 %v2271, %v2271
  %v2281 = vpack.c.b16 %v2272, %v2272
  %v2282 = vpack.c.b16 %v2273, %v2273
  %v2283 = vpack.c.b16 %v2274, %v2274
  %v2284 = vpack.c.b16 %v2275, %v2275
  %2294 = vmatpush.bf16.msra.mxu0 %v660
  %2295 = vmatpush.bf16.msra.mxu0 %v658
  %2296 = vmatpush.bf16.msra.mxu0 %v656
  %2297 = vmatpush.bf16.msra.mxu0 %v654
  %2298 = vmatpush.bf16.msra.mxu0 %v652
  %2299 = vmatpush.bf16.msra.mxu0 %v650
  %2300 = vmatpush.bf16.msra.mxu0 %v648
  %2301 = vmatpush.bf16.msra.mxu0 %v646
  %2302 = vmatmul.bf16.gmra.mxu0 %v2276
  %v2303 = vpop.f32.mrf.mxu0
  %v2304 = vadd.f32 0.0, %v2303
  %v2305 = vpop.f32.mrf.mxu0
  %2306 = vdwg.mxu0
  %2307 = vmatpush.bf16.msra.mxu0 %v676
  %2308 = vmatpush.bf16.msra.mxu0 %v674
  %2309 = vmatpush.bf16.msra.mxu0 %v672
  %2310 = vmatpush.bf16.msra.mxu0 %v670
  %2311 = vmatpush.bf16.msra.mxu0 %v668
  %2312 = vmatpush.bf16.msra.mxu0 %v666
  %2313 = vmatpush.bf16.msra.mxu0 %v664
  %2314 = vmatpush.bf16.msra.mxu0 %v662
  %2315 = vmatmul.bf16.gmra.mxu0 %v2277
  %v2316 = vpop.f32.mrf.mxu0
  %v2317 = vadd.f32 %v2304, %v2316
  %v2318 = vpop.f32.mrf.mxu0
  %2319 = vdwg.mxu0
  %2320 = vmatpush.bf16.msra.mxu0 %v692
  %2321 = vmatpush.bf16.msra.mxu0 %v690
  %2322 = vmatpush.bf16.msra.mxu0 %v688
  %2323 = vmatpush.bf16.msra.mxu0 %v686
  %2324 = vmatpush.bf16.msra.mxu0 %v684
  %2325 = vmatpush.bf16.msra.mxu0 %v682
  %2326 = vmatpush.bf16.msra.mxu0 %v680
  %2327 = vmatpush.bf16.msra.mxu0 %v678
  %2328 = vmatmul.bf16.gmra.mxu0 %v2278
  %v2329 = vpop.f32.mrf.mxu0
  %v2330 = vadd.f32 %v2317, %v2329
  %v2331 = vpop.f32.mrf.mxu0
  %2332 = vdwg.mxu0
  %2333 = vmatpush.bf16.msra.mxu0 %v708
  %2334 = vmatpush.bf16.msra.mxu0 %v706
  %2335 = vmatpush.bf16.msra.mxu0 %v704
  %2336 = vmatpush.bf16.msra.mxu0 %v702
  %2337 = vmatpush.bf16.msra.mxu0 %v700
  %2338 = vmatpush.bf16.msra.mxu0 %v698
  %2339 = vmatpush.bf16.msra.mxu0 %v696
  %2340 = vmatpush.bf16.msra.mxu0 %v694
  %2341 = vmatmul.bf16.gmra.mxu0 %v2279
  %v2342 = vpop.f32.mrf.mxu0
  %v2343 = vadd.f32 %v2330, %v2342
  %v2344 = vpop.f32.mrf.mxu0
  %2345 = vdwg.mxu0
  %2346 = vmatpush.bf16.msra.mxu0 %v724
  %2347 = vmatpush.bf16.msra.mxu0 %v722
  %2348 = vmatpush.bf16.msra.mxu0 %v720
  %2349 = vmatpush.bf16.msra.mxu0 %v718
  %2350 = vmatpush.bf16.msra.mxu0 %v716
  %2351 = vmatpush.bf16.msra.mxu0 %v714
  %2352 = vmatpush.bf16.msra.mxu0 %v712
  %2353 = vmatpush.bf16.msra.mxu0 %v710
  %2354 = vmatmul.bf16.gmra.mxu0 %v2280
  %v2355 = vpop.f32.mrf.mxu0
  %v2356 = vadd.f32 %v2343, %v2355
  %v2357 = vpop.f32.mrf.mxu0
  %2358 = vdwg.mxu0
  %2359 = vmatpush.bf16.msra.mxu0 %v740
  %2360 = vmatpush.bf16.msra.mxu0 %v738
  %2361 = vmatpush.bf16.msra.mxu0 %v736
  %2362 = vmatpush.bf16.msra.mxu0 %v734
  %2363 = vmatpush.bf16.msra.mxu0 %v732
  %2364 = vmatpush.bf16.msra.mxu0 %v730
  %2365 = vmatpush.bf16.msra.mxu0 %v728
  %2366 = vmatpush.bf16.msra.mxu0 %v726
  %2367 = vmatmul.bf16.gmra.mxu0 %v2281
  %v2368 = vpop.f32.mrf.mxu0
  %v2369 = vadd.f32 %v2356, %v2368
  %v2370 = vpop.f32.mrf.mxu0
  %2371 = vdwg.mxu0
  %2372 = vmatpush.bf16.msra.mxu0 %v756
  %2373 = vmatpush.bf16.msra.mxu0 %v754
  %2374 = vmatpush.bf16.msra.mxu0 %v752
  %2375 = vmatpush.bf16.msra.mxu0 %v750
  %2376 = vmatpush.bf16.msra.mxu0 %v748
  %2377 = vmatpush.bf16.msra.mxu0 %v746
  %2378 = vmatpush.bf16.msra.mxu0 %v744
  %2379 = vmatpush.bf16.msra.mxu0 %v742
  %2380 = vmatmul.bf16.gmra.mxu0 %v2282
  %v2381 = vpop.f32.mrf.mxu0
  %v2382 = vadd.f32 %v2369, %v2381
  %v2383 = vpop.f32.mrf.mxu0
  %2384 = vdwg.mxu0
  %2385 = vmatpush.bf16.msra.mxu0 %v772
  %2386 = vmatpush.bf16.msra.mxu0 %v770
  %2387 = vmatpush.bf16.msra.mxu0 %v768
  %2388 = vmatpush.bf16.msra.mxu0 %v766
  %2389 = vmatpush.bf16.msra.mxu0 %v764
  %2390 = vmatpush.bf16.msra.mxu0 %v762
  %2391 = vmatpush.bf16.msra.mxu0 %v760
  %2392 = vmatpush.bf16.msra.mxu0 %v758
  %2393 = vmatmul.bf16.gmra.mxu0 %v2283
  %v2394 = vpop.f32.mrf.mxu0
  %v2395 = vadd.f32 %v2382, %v2394
  %v2396 = vpop.f32.mrf.mxu0
  %2397 = vdwg.mxu0
  %2398 = vmatpush.bf16.msra.mxu0 %v788
  %2399 = vmatpush.bf16.msra.mxu0 %v786
  %2400 = vmatpush.bf16.msra.mxu0 %v784
  %2401 = vmatpush.bf16.msra.mxu0 %v782
  %2402 = vmatpush.bf16.msra.mxu0 %v780
  %2403 = vmatpush.bf16.msra.mxu0 %v778
  %2404 = vmatpush.bf16.msra.mxu0 %v776
  %2405 = vmatpush.bf16.msra.mxu0 %v774
  %2406 = vmatmul.bf16.gmra.mxu0 %v2284
  %v2407 = vpop.f32.mrf.mxu0
  %v2408 = vadd.f32 %v2395, %v2407
  %v2409 = vpop.f32.mrf.mxu0
  %2410 = vdwg.mxu0
  %2411 = vmatpush.bf16.msra.mxu0 %v661
  %2412 = vmatpush.bf16.msra.mxu0 %v659
  %2413 = vmatpush.bf16.msra.mxu0 %v657
  %2414 = vmatpush.bf16.msra.mxu0 %v655
  %2415 = vmatpush.bf16.msra.mxu0 %v653
  %2416 = vmatpush.bf16.msra.mxu0 %v651
  %2417 = vmatpush.bf16.msra.mxu0 %v649
  %2418 = vmatpush.bf16.msra.mxu0 %v647
  %2419 = vmatmul.bf16.gmra.mxu0 %v2276
  %v2420 = vpop.f32.mrf.mxu0
  %v2421 = vadd.f32 0.0, %v2420
  %v2422 = vpop.f32.mrf.mxu0
  %2423 = vdwg.mxu0
  %2424 = vmatpush.bf16.msra.mxu0 %v677
  %2425 = vmatpush.bf16.msra.mxu0 %v675
  %2426 = vmatpush.bf16.msra.mxu0 %v673
  %2427 = vmatpush.bf16.msra.mxu0 %v671
  %2428 = vmatpush.bf16.msra.mxu0 %v669
  %2429 = vmatpush.bf16.msra.mxu0 %v667
  %2430 = vmatpush.bf16.msra.mxu0 %v665
  %2431 = vmatpush.bf16.msra.mxu0 %v663
  %2432 = vmatmul.bf16.gmra.mxu0 %v2277
  %v2433 = vpop.f32.mrf.mxu0
  %v2434 = vadd.f32 %v2421, %v2433
  %v2435 = vpop.f32.mrf.mxu0
  %2436 = vdwg.mxu0
  %2437 = vmatpush.bf16.msra.mxu0 %v693
  %2438 = vmatpush.bf16.msra.mxu0 %v691
  %2439 = vmatpush.bf16.msra.mxu0 %v689
  %2440 = vmatpush.bf16.msra.mxu0 %v687
  %2441 = vmatpush.bf16.msra.mxu0 %v685
  %2442 = vmatpush.bf16.msra.mxu0 %v683
  %2443 = vmatpush.bf16.msra.mxu0 %v681
  %2444 = vmatpush.bf16.msra.mxu0 %v679
  %2445 = vmatmul.bf16.gmra.mxu0 %v2278
  %v2446 = vpop.f32.mrf.mxu0
  %v2447 = vadd.f32 %v2434, %v2446
  %v2448 = vpop.f32.mrf.mxu0
  %2449 = vdwg.mxu0
  %2450 = vmatpush.bf16.msra.mxu0 %v709
  %2451 = vmatpush.bf16.msra.mxu0 %v707
  %2452 = vmatpush.bf16.msra.mxu0 %v705
  %2453 = vmatpush.bf16.msra.mxu0 %v703
  %2454 = vmatpush.bf16.msra.mxu0 %v701
  %2455 = vmatpush.bf16.msra.mxu0 %v699
  %2456 = vmatpush.bf16.msra.mxu0 %v697
  %2457 = vmatpush.bf16.msra.mxu0 %v695
  %2458 = vmatmul.bf16.gmra.mxu0 %v2279
  %v2459 = vpop.f32.mrf.mxu0
  %v2460 = vadd.f32 %v2447, %v2459
  %v2461 = vpop.f32.mrf.mxu0
  %2462 = vdwg.mxu0
  %2463 = vmatpush.bf16.msra.mxu0 %v725
  %2464 = vmatpush.bf16.msra.mxu0 %v723
  %2465 = vmatpush.bf16.msra.mxu0 %v721
  %2466 = vmatpush.bf16.msra.mxu0 %v719
  %2467 = vmatpush.bf16.msra.mxu0 %v717
  %2468 = vmatpush.bf16.msra.mxu0 %v715
  %2469 = vmatpush.bf16.msra.mxu0 %v713
  %2470 = vmatpush.bf16.msra.mxu0 %v711
  %2471 = vmatmul.bf16.gmra.mxu0 %v2280
  %v2472 = vpop.f32.mrf.mxu0
  %v2473 = vadd.f32 %v2460, %v2472
  %v2474 = vpop.f32.mrf.mxu0
  %2475 = vdwg.mxu0
  %2476 = vmatpush.bf16.msra.mxu0 %v741
  %2477 = vmatpush.bf16.msra.mxu0 %v739
  %2478 = vmatpush.bf16.msra.mxu0 %v737
  %2479 = vmatpush.bf16.msra.mxu0 %v735
  %2480 = vmatpush.bf16.msra.mxu0 %v733
  %2481 = vmatpush.bf16.msra.mxu0 %v731
  %2482 = vmatpush.bf16.msra.mxu0 %v729
  %2483 = vmatpush.bf16.msra.mxu0 %v727
  %2484 = vmatmul.bf16.gmra.mxu0 %v2281
  %v2485 = vpop.f32.mrf.mxu0
  %v2486 = vadd.f32 %v2473, %v2485
  %v2487 = vpop.f32.mrf.mxu0
  %2488 = vdwg.mxu0
  %2489 = vmatpush.bf16.msra.mxu0 %v757
  %2490 = vmatpush.bf16.msra.mxu0 %v755
  %2491 = vmatpush.bf16.msra.mxu0 %v753
  %2492 = vmatpush.bf16.msra.mxu0 %v751
  %2493 = vmatpush.bf16.msra.mxu0 %v749
  %2494 = vmatpush.bf16.msra.mxu0 %v747
  %2495 = vmatpush.bf16.msra.mxu0 %v745
  %2496 = vmatpush.bf16.msra.mxu0 %v743
  %2497 = vmatmul.bf16.gmra.mxu0 %v2282
  %v2498 = vpop.f32.mrf.mxu0
  %v2499 = vadd.f32 %v2486, %v2498
  %v2500 = vpop.f32.mrf.mxu0
  %2501 = vdwg.mxu0
  %2502 = vmatpush.bf16.msra.mxu0 %v773
  %2503 = vmatpush.bf16.msra.mxu0 %v771
  %2504 = vmatpush.bf16.msra.mxu0 %v769
  %2505 = vmatpush.bf16.msra.mxu0 %v767
  %2506 = vmatpush.bf16.msra.mxu0 %v765
  %2507 = vmatpush.bf16.msra.mxu0 %v763
  %2508 = vmatpush.bf16.msra.mxu0 %v761
  %2509 = vmatpush.bf16.msra.mxu0 %v759
  %2510 = vmatmul.bf16.gmra.mxu0 %v2283
  %v2511 = vpop.f32.mrf.mxu0
  %v2512 = vadd.f32 %v2499, %v2511
  %v2513 = vpop.f32.mrf.mxu0
  %2514 = vdwg.mxu0
  %2515 = vmatpush.bf16.msra.mxu0 %v789
  %2516 = vmatpush.bf16.msra.mxu0 %v787
  %2517 = vmatpush.bf16.msra.mxu0 %v785
  %2518 = vmatpush.bf16.msra.mxu0 %v783
  %2519 = vmatpush.bf16.msra.mxu0 %v781
  %2520 = vmatpush.bf16.msra.mxu0 %v779
  %2521 = vmatpush.bf16.msra.mxu0 %v777
  %2522 = vmatpush.bf16.msra.mxu0 %v775
  %2523 = vmatmul.bf16.gmra.mxu0 %v2284
  %v2524 = vpop.f32.mrf.mxu0
  %v2525 = vadd.f32 %v2512, %v2524
  %v2526 = vpop.f32.mrf.mxu0
  %2527 = vdwg.mxu0
  %s2528 = scalar_lea.vmem %s0, 216
  %v2529 = vld [vmem:[%s2528] sm:$0xff]
  %v2530 = vld [vmem:[%s2528 + $0x8] sm:$0xff]
  %v2531 = vld [vmem:[%s2528 + $0x10] sm:$0xff]
  %v2532 = vld [vmem:[%s2528 + $0x18] sm:$0xff]
  %v2533 = vld [vmem:[%s2528 + $0x20] sm:$0xf]
  %v2539 = vunpack.c.l.b16 %v2529
  %v2540 = vunpack.c.h.b16 %v2529
  %v2541 = vunpack.c.l.b16 %v2530
  %v2542 = vunpack.c.h.b16 %v2530
  %v2543 = vunpack.c.l.b16 %v2531
  %v2544 = vunpack.c.h.b16 %v2531
  %v2545 = vunpack.c.l.b16 %v2532
  %v2546 = vunpack.c.h.b16 %v2532
  %v2547 = vunpack.c.l.b16 %v2533
  %v2548 = vpack.c.b16 %v2539, %v2539
  %v2549 = vpack.c.b16 %v2540, %v2540
  %v2550 = vpack.c.b16 %v2541, %v2541
  %v2551 = vpack.c.b16 %v2542, %v2542
  %v2552 = vpack.c.b16 %v2543, %v2543
  %v2553 = vpack.c.b16 %v2544, %v2544
  %v2554 = vpack.c.b16 %v2545, %v2545
  %v2555 = vpack.c.b16 %v2546, %v2546
  %v2556 = vpack.c.b16 %v2547, %v2547
  %2566 = vmatpush.bf16.msra.mxu0 %v660
  %2567 = vmatpush.bf16.msra.mxu0 %v658
  %2568 = vmatpush.bf16.msra.mxu0 %v656
  %2569 = vmatpush.bf16.msra.mxu0 %v654
  %2570 = vmatpush.bf16.msra.mxu0 %v652
  %2571 = vmatpush.bf16.msra.mxu0 %v650
  %2572 = vmatpush.bf16.msra.mxu0 %v648
  %2573 = vmatpush.bf16.msra.mxu0 %v646
  %2574 = vmatmul.bf16.gmra.mxu0 %v2548
  %v2575 = vpop.f32.mrf.mxu0
  %v2576 = vadd.f32 0.0, %v2575
  %v2577 = vpop.f32.mrf.mxu0
  %2578 = vdwg.mxu0
  %2579 = vmatpush.bf16.msra.mxu0 %v676
  %2580 = vmatpush.bf16.msra.mxu0 %v674
  %2581 = vmatpush.bf16.msra.mxu0 %v672
  %2582 = vmatpush.bf16.msra.mxu0 %v670
  %2583 = vmatpush.bf16.msra.mxu0 %v668
  %2584 = vmatpush.bf16.msra.mxu0 %v666
  %2585 = vmatpush.bf16.msra.mxu0 %v664
  %2586 = vmatpush.bf16.msra.mxu0 %v662
  %2587 = vmatmul.bf16.gmra.mxu0 %v2549
  %v2588 = vpop.f32.mrf.mxu0
  %v2589 = vadd.f32 %v2576, %v2588
  %v2590 = vpop.f32.mrf.mxu0
  %2591 = vdwg.mxu0
  %2592 = vmatpush.bf16.msra.mxu0 %v692
  %2593 = vmatpush.bf16.msra.mxu0 %v690
  %2594 = vmatpush.bf16.msra.mxu0 %v688
  %2595 = vmatpush.bf16.msra.mxu0 %v686
  %2596 = vmatpush.bf16.msra.mxu0 %v684
  %2597 = vmatpush.bf16.msra.mxu0 %v682
  %2598 = vmatpush.bf16.msra.mxu0 %v680
  %2599 = vmatpush.bf16.msra.mxu0 %v678
  %2600 = vmatmul.bf16.gmra.mxu0 %v2550
  %v2601 = vpop.f32.mrf.mxu0
  %v2602 = vadd.f32 %v2589, %v2601
  %v2603 = vpop.f32.mrf.mxu0
  %2604 = vdwg.mxu0
  %2605 = vmatpush.bf16.msra.mxu0 %v708
  %2606 = vmatpush.bf16.msra.mxu0 %v706
  %2607 = vmatpush.bf16.msra.mxu0 %v704
  %2608 = vmatpush.bf16.msra.mxu0 %v702
  %2609 = vmatpush.bf16.msra.mxu0 %v700
  %2610 = vmatpush.bf16.msra.mxu0 %v698
  %2611 = vmatpush.bf16.msra.mxu0 %v696
  %2612 = vmatpush.bf16.msra.mxu0 %v694
  %2613 = vmatmul.bf16.gmra.mxu0 %v2551
  %v2614 = vpop.f32.mrf.mxu0
  %v2615 = vadd.f32 %v2602, %v2614
  %v2616 = vpop.f32.mrf.mxu0
  %2617 = vdwg.mxu0
  %2618 = vmatpush.bf16.msra.mxu0 %v724
  %2619 = vmatpush.bf16.msra.mxu0 %v722
  %2620 = vmatpush.bf16.msra.mxu0 %v720
  %2621 = vmatpush.bf16.msra.mxu0 %v718
  %2622 = vmatpush.bf16.msra.mxu0 %v716
  %2623 = vmatpush.bf16.msra.mxu0 %v714
  %2624 = vmatpush.bf16.msra.mxu0 %v712
  %2625 = vmatpush.bf16.msra.mxu0 %v710
  %2626 = vmatmul.bf16.gmra.mxu0 %v2552
  %v2627 = vpop.f32.mrf.mxu0
  %v2628 = vadd.f32 %v2615, %v2627
  %v2629 = vpop.f32.mrf.mxu0
  %2630 = vdwg.mxu0
  %2631 = vmatpush.bf16.msra.mxu0 %v740
  %2632 = vmatpush.bf16.msra.mxu0 %v738
  %2633 = vmatpush.bf16.msra.mxu0 %v736
  %2634 = vmatpush.bf16.msra.mxu0 %v734
  %2635 = vmatpush.bf16.msra.mxu0 %v732
  %2636 = vmatpush.bf16.msra.mxu0 %v730
  %2637 = vmatpush.bf16.msra.mxu0 %v728
  %2638 = vmatpush.bf16.msra.mxu0 %v726
  %2639 = vmatmul.bf16.gmra.mxu0 %v2553
  %v2640 = vpop.f32.mrf.mxu0
  %v2641 = vadd.f32 %v2628, %v2640
  %v2642 = vpop.f32.mrf.mxu0
  %2643 = vdwg.mxu0
  %2644 = vmatpush.bf16.msra.mxu0 %v756
  %2645 = vmatpush.bf16.msra.mxu0 %v754
  %2646 = vmatpush.bf16.msra.mxu0 %v752
  %2647 = vmatpush.bf16.msra.mxu0 %v750
  %2648 = vmatpush.bf16.msra.mxu0 %v748
  %2649 = vmatpush.bf16.msra.mxu0 %v746
  %2650 = vmatpush.bf16.msra.mxu0 %v744
  %2651 = vmatpush.bf16.msra.mxu0 %v742
  %2652 = vmatmul.bf16.gmra.mxu0 %v2554
  %v2653 = vpop.f32.mrf.mxu0
  %v2654 = vadd.f32 %v2641, %v2653
  %v2655 = vpop.f32.mrf.mxu0
  %2656 = vdwg.mxu0
  %2657 = vmatpush.bf16.msra.mxu0 %v772
  %2658 = vmatpush.bf16.msra.mxu0 %v770
  %2659 = vmatpush.bf16.msra.mxu0 %v768
  %2660 = vmatpush.bf16.msra.mxu0 %v766
  %2661 = vmatpush.bf16.msra.mxu0 %v764
  %2662 = vmatpush.bf16.msra.mxu0 %v762
  %2663 = vmatpush.bf16.msra.mxu0 %v760
  %2664 = vmatpush.bf16.msra.mxu0 %v758
  %2665 = vmatmul.bf16.gmra.mxu0 %v2555
  %v2666 = vpop.f32.mrf.mxu0
  %v2667 = vadd.f32 %v2654, %v2666
  %v2668 = vpop.f32.mrf.mxu0
  %2669 = vdwg.mxu0
  %2670 = vmatpush.bf16.msra.mxu0 %v788
  %2671 = vmatpush.bf16.msra.mxu0 %v786
  %2672 = vmatpush.bf16.msra.mxu0 %v784
  %2673 = vmatpush.bf16.msra.mxu0 %v782
  %2674 = vmatpush.bf16.msra.mxu0 %v780
  %2675 = vmatpush.bf16.msra.mxu0 %v778
  %2676 = vmatpush.bf16.msra.mxu0 %v776
  %2677 = vmatpush.bf16.msra.mxu0 %v774
  %2678 = vmatmul.bf16.gmra.mxu0 %v2556
  %v2679 = vpop.f32.mrf.mxu0
  %v2680 = vadd.f32 %v2667, %v2679
  %v2681 = vpop.f32.mrf.mxu0
  %2682 = vdwg.mxu0
  %2683 = vmatpush.bf16.msra.mxu0 %v661
  %2684 = vmatpush.bf16.msra.mxu0 %v659
  %2685 = vmatpush.bf16.msra.mxu0 %v657
  %2686 = vmatpush.bf16.msra.mxu0 %v655
  %2687 = vmatpush.bf16.msra.mxu0 %v653
  %2688 = vmatpush.bf16.msra.mxu0 %v651
  %2689 = vmatpush.bf16.msra.mxu0 %v649
  %2690 = vmatpush.bf16.msra.mxu0 %v647
  %2691 = vmatmul.bf16.gmra.mxu0 %v2548
  %v2692 = vpop.f32.mrf.mxu0
  %v2693 = vadd.f32 0.0, %v2692
  %v2694 = vpop.f32.mrf.mxu0
  %2695 = vdwg.mxu0
  %2696 = vmatpush.bf16.msra.mxu0 %v677
  %2697 = vmatpush.bf16.msra.mxu0 %v675
  %2698 = vmatpush.bf16.msra.mxu0 %v673
  %2699 = vmatpush.bf16.msra.mxu0 %v671
  %2700 = vmatpush.bf16.msra.mxu0 %v669
  %2701 = vmatpush.bf16.msra.mxu0 %v667
  %2702 = vmatpush.bf16.msra.mxu0 %v665
  %2703 = vmatpush.bf16.msra.mxu0 %v663
  %2704 = vmatmul.bf16.gmra.mxu0 %v2549
  %v2705 = vpop.f32.mrf.mxu0
  %v2706 = vadd.f32 %v2693, %v2705
  %v2707 = vpop.f32.mrf.mxu0
  %2708 = vdwg.mxu0
  %2709 = vmatpush.bf16.msra.mxu0 %v693
  %2710 = vmatpush.bf16.msra.mxu0 %v691
  %2711 = vmatpush.bf16.msra.mxu0 %v689
  %2712 = vmatpush.bf16.msra.mxu0 %v687
  %2713 = vmatpush.bf16.msra.mxu0 %v685
  %2714 = vmatpush.bf16.msra.mxu0 %v683
  %2715 = vmatpush.bf16.msra.mxu0 %v681
  %2716 = vmatpush.bf16.msra.mxu0 %v679
  %2717 = vmatmul.bf16.gmra.mxu0 %v2550
  %v2718 = vpop.f32.mrf.mxu0
  %v2719 = vadd.f32 %v2706, %v2718
  %v2720 = vpop.f32.mrf.mxu0
  %2721 = vdwg.mxu0
  %2722 = vmatpush.bf16.msra.mxu0 %v709
  %2723 = vmatpush.bf16.msra.mxu0 %v707
  %2724 = vmatpush.bf16.msra.mxu0 %v705
  %2725 = vmatpush.bf16.msra.mxu0 %v703
  %2726 = vmatpush.bf16.msra.mxu0 %v701
  %2727 = vmatpush.bf16.msra.mxu0 %v699
  %2728 = vmatpush.bf16.msra.mxu0 %v697
  %2729 = vmatpush.bf16.msra.mxu0 %v695
  %2730 = vmatmul.bf16.gmra.mxu0 %v2551
  %v2731 = vpop.f32.mrf.mxu0
  %v2732 = vadd.f32 %v2719, %v2731
  %v2733 = vpop.f32.mrf.mxu0
  %2734 = vdwg.mxu0
  %2735 = vmatpush.bf16.msra.mxu0 %v725
  %2736 = vmatpush.bf16.msra.mxu0 %v723
  %2737 = vmatpush.bf16.msra.mxu0 %v721
  %2738 = vmatpush.bf16.msra.mxu0 %v719
  %2739 = vmatpush.bf16.msra.mxu0 %v717
  %2740 = vmatpush.bf16.msra.mxu0 %v715
  %2741 = vmatpush.bf16.msra.mxu0 %v713
  %2742 = vmatpush.bf16.msra.mxu0 %v711
  %2743 = vmatmul.bf16.gmra.mxu0 %v2552
  %v2744 = vpop.f32.mrf.mxu0
  %v2745 = vadd.f32 %v2732, %v2744
  %v2746 = vpop.f32.mrf.mxu0
  %2747 = vdwg.mxu0
  %2748 = vmatpush.bf16.msra.mxu0 %v741
  %2749 = vmatpush.bf16.msra.mxu0 %v739
  %2750 = vmatpush.bf16.msra.mxu0 %v737
  %2751 = vmatpush.bf16.msra.mxu0 %v735
  %2752 = vmatpush.bf16.msra.mxu0 %v733
  %2753 = vmatpush.bf16.msra.mxu0 %v731
  %2754 = vmatpush.bf16.msra.mxu0 %v729
  %2755 = vmatpush.bf16.msra.mxu0 %v727
  %2756 = vmatmul.bf16.gmra.mxu0 %v2553
  %v2757 = vpop.f32.mrf.mxu0
  %v2758 = vadd.f32 %v2745, %v2757
  %v2759 = vpop.f32.mrf.mxu0
  %2760 = vdwg.mxu0
  %2761 = vmatpush.bf16.msra.mxu0 %v757
  %2762 = vmatpush.bf16.msra.mxu0 %v755
  %2763 = vmatpush.bf16.msra.mxu0 %v753
  %2764 = vmatpush.bf16.msra.mxu0 %v751
  %2765 = vmatpush.bf16.msra.mxu0 %v749
  %2766 = vmatpush.bf16.msra.mxu0 %v747
  %2767 = vmatpush.bf16.msra.mxu0 %v745
  %2768 = vmatpush.bf16.msra.mxu0 %v743
  %2769 = vmatmul.bf16.gmra.mxu0 %v2554
  %v2770 = vpop.f32.mrf.mxu0
  %v2771 = vadd.f32 %v2758, %v2770
  %v2772 = vpop.f32.mrf.mxu0
  %2773 = vdwg.mxu0
  %2774 = vmatpush.bf16.msra.mxu0 %v773
  %2775 = vmatpush.bf16.msra.mxu0 %v771
  %2776 = vmatpush.bf16.msra.mxu0 %v769
  %2777 = vmatpush.bf16.msra.mxu0 %v767
  %2778 = vmatpush.bf16.msra.mxu0 %v765
  %2779 = vmatpush.bf16.msra.mxu0 %v763
  %2780 = vmatpush.bf16.msra.mxu0 %v761
  %2781 = vmatpush.bf16.msra.mxu0 %v759
  %2782 = vmatmul.bf16.gmra.mxu0 %v2555
  %v2783 = vpop.f32.mrf.mxu0
  %v2784 = vadd.f32 %v2771, %v2783
  %v2785 = vpop.f32.mrf.mxu0
  %2786 = vdwg.mxu0
  %2787 = vmatpush.bf16.msra.mxu0 %v789
  %2788 = vmatpush.bf16.msra.mxu0 %v787
  %2789 = vmatpush.bf16.msra.mxu0 %v785
  %2790 = vmatpush.bf16.msra.mxu0 %v783
  %2791 = vmatpush.bf16.msra.mxu0 %v781
  %2792 = vmatpush.bf16.msra.mxu0 %v779
  %2793 = vmatpush.bf16.msra.mxu0 %v777
  %2794 = vmatpush.bf16.msra.mxu0 %v775
  %2795 = vmatmul.bf16.gmra.mxu0 %v2556
  %v2796 = vpop.f32.mrf.mxu0
  %v2797 = vadd.f32 %v2784, %v2796
  %v2798 = vpop.f32.mrf.mxu0
  %2799 = vdwg.mxu0
  %s2800 = scalar_lea.vmem %s0, 252
  %v2801 = vld [vmem:[%s2800] sm:$0xff]
  %v2802 = vld [vmem:[%s2800 + $0x8] sm:$0xff]
  %v2803 = vld [vmem:[%s2800 + $0x10] sm:$0xff]
  %v2804 = vld [vmem:[%s2800 + $0x18] sm:$0xff]
  %v2805 = vld [vmem:[%s2800 + $0x20] sm:$0xf]
  %v2811 = vunpack.c.l.b16 %v2801
  %v2812 = vunpack.c.h.b16 %v2801
  %v2813 = vunpack.c.l.b16 %v2802
  %v2814 = vunpack.c.h.b16 %v2802
  %v2815 = vunpack.c.l.b16 %v2803
  %v2816 = vunpack.c.h.b16 %v2803
  %v2817 = vunpack.c.l.b16 %v2804
  %v2818 = vunpack.c.h.b16 %v2804
  %v2819 = vunpack.c.l.b16 %v2805
  %v2820 = vpack.c.b16 %v2811, %v2811
  %v2821 = vpack.c.b16 %v2812, %v2812
  %v2822 = vpack.c.b16 %v2813, %v2813
  %v2823 = vpack.c.b16 %v2814, %v2814
  %v2824 = vpack.c.b16 %v2815, %v2815
  %v2825 = vpack.c.b16 %v2816, %v2816
  %v2826 = vpack.c.b16 %v2817, %v2817
  %v2827 = vpack.c.b16 %v2818, %v2818
  %v2828 = vpack.c.b16 %v2819, %v2819
  %2838 = vmatpush.bf16.msra.mxu0 %v660
  %2839 = vmatpush.bf16.msra.mxu0 %v658
  %2840 = vmatpush.bf16.msra.mxu0 %v656
  %2841 = vmatpush.bf16.msra.mxu0 %v654
  %2842 = vmatpush.bf16.msra.mxu0 %v652
  %2843 = vmatpush.bf16.msra.mxu0 %v650
  %2844 = vmatpush.bf16.msra.mxu0 %v648
  %2845 = vmatpush.bf16.msra.mxu0 %v646
  %2846 = vmatmul.bf16.gmra.mxu0 %v2820
  %v2847 = vpop.f32.mrf.mxu0
  %v2848 = vadd.f32 0.0, %v2847
  %v2849 = vpop.f32.mrf.mxu0
  %2850 = vdwg.mxu0
  %2851 = vmatpush.bf16.msra.mxu0 %v676
  %2852 = vmatpush.bf16.msra.mxu0 %v674
  %2853 = vmatpush.bf16.msra.mxu0 %v672
  %2854 = vmatpush.bf16.msra.mxu0 %v670
  %2855 = vmatpush.bf16.msra.mxu0 %v668
  %2856 = vmatpush.bf16.msra.mxu0 %v666
  %2857 = vmatpush.bf16.msra.mxu0 %v664
  %2858 = vmatpush.bf16.msra.mxu0 %v662
  %2859 = vmatmul.bf16.gmra.mxu0 %v2821
  %v2860 = vpop.f32.mrf.mxu0
  %v2861 = vadd.f32 %v2848, %v2860
  %v2862 = vpop.f32.mrf.mxu0
  %2863 = vdwg.mxu0
  %2864 = vmatpush.bf16.msra.mxu0 %v692
  %2865 = vmatpush.bf16.msra.mxu0 %v690
  %2866 = vmatpush.bf16.msra.mxu0 %v688
  %2867 = vmatpush.bf16.msra.mxu0 %v686
  %2868 = vmatpush.bf16.msra.mxu0 %v684
  %2869 = vmatpush.bf16.msra.mxu0 %v682
  %2870 = vmatpush.bf16.msra.mxu0 %v680
  %2871 = vmatpush.bf16.msra.mxu0 %v678
  %2872 = vmatmul.bf16.gmra.mxu0 %v2822
  %v2873 = vpop.f32.mrf.mxu0
  %v2874 = vadd.f32 %v2861, %v2873
  %v2875 = vpop.f32.mrf.mxu0
  %2876 = vdwg.mxu0
  %2877 = vmatpush.bf16.msra.mxu0 %v708
  %2878 = vmatpush.bf16.msra.mxu0 %v706
  %2879 = vmatpush.bf16.msra.mxu0 %v704
  %2880 = vmatpush.bf16.msra.mxu0 %v702
  %2881 = vmatpush.bf16.msra.mxu0 %v700
  %2882 = vmatpush.bf16.msra.mxu0 %v698
  %2883 = vmatpush.bf16.msra.mxu0 %v696
  %2884 = vmatpush.bf16.msra.mxu0 %v694
  %2885 = vmatmul.bf16.gmra.mxu0 %v2823
  %v2886 = vpop.f32.mrf.mxu0
  %v2887 = vadd.f32 %v2874, %v2886
  %v2888 = vpop.f32.mrf.mxu0
  %2889 = vdwg.mxu0
  %2890 = vmatpush.bf16.msra.mxu0 %v724
  %2891 = vmatpush.bf16.msra.mxu0 %v722
  %2892 = vmatpush.bf16.msra.mxu0 %v720
  %2893 = vmatpush.bf16.msra.mxu0 %v718
  %2894 = vmatpush.bf16.msra.mxu0 %v716
  %2895 = vmatpush.bf16.msra.mxu0 %v714
  %2896 = vmatpush.bf16.msra.mxu0 %v712
  %2897 = vmatpush.bf16.msra.mxu0 %v710
  %2898 = vmatmul.bf16.gmra.mxu0 %v2824
  %v2899 = vpop.f32.mrf.mxu0
  %v2900 = vadd.f32 %v2887, %v2899
  %v2901 = vpop.f32.mrf.mxu0
  %2902 = vdwg.mxu0
  %2903 = vmatpush.bf16.msra.mxu0 %v740
  %2904 = vmatpush.bf16.msra.mxu0 %v738
  %2905 = vmatpush.bf16.msra.mxu0 %v736
  %2906 = vmatpush.bf16.msra.mxu0 %v734
  %2907 = vmatpush.bf16.msra.mxu0 %v732
  %2908 = vmatpush.bf16.msra.mxu0 %v730
  %2909 = vmatpush.bf16.msra.mxu0 %v728
  %2910 = vmatpush.bf16.msra.mxu0 %v726
  %2911 = vmatmul.bf16.gmra.mxu0 %v2825
  %v2912 = vpop.f32.mrf.mxu0
  %v2913 = vadd.f32 %v2900, %v2912
  %v2914 = vpop.f32.mrf.mxu0
  %2915 = vdwg.mxu0
  %2916 = vmatpush.bf16.msra.mxu0 %v756
  %2917 = vmatpush.bf16.msra.mxu0 %v754
  %2918 = vmatpush.bf16.msra.mxu0 %v752
  %2919 = vmatpush.bf16.msra.mxu0 %v750
  %2920 = vmatpush.bf16.msra.mxu0 %v748
  %2921 = vmatpush.bf16.msra.mxu0 %v746
  %2922 = vmatpush.bf16.msra.mxu0 %v744
  %2923 = vmatpush.bf16.msra.mxu0 %v742
  %2924 = vmatmul.bf16.gmra.mxu0 %v2826
  %v2925 = vpop.f32.mrf.mxu0
  %v2926 = vadd.f32 %v2913, %v2925
  %v2927 = vpop.f32.mrf.mxu0
  %2928 = vdwg.mxu0
  %2929 = vmatpush.bf16.msra.mxu0 %v772
  %2930 = vmatpush.bf16.msra.mxu0 %v770
  %2931 = vmatpush.bf16.msra.mxu0 %v768
  %2932 = vmatpush.bf16.msra.mxu0 %v766
  %2933 = vmatpush.bf16.msra.mxu0 %v764
  %2934 = vmatpush.bf16.msra.mxu0 %v762
  %2935 = vmatpush.bf16.msra.mxu0 %v760
  %2936 = vmatpush.bf16.msra.mxu0 %v758
  %2937 = vmatmul.bf16.gmra.mxu0 %v2827
  %v2938 = vpop.f32.mrf.mxu0
  %v2939 = vadd.f32 %v2926, %v2938
  %v2940 = vpop.f32.mrf.mxu0
  %2941 = vdwg.mxu0
  %2942 = vmatpush.bf16.msra.mxu0 %v788
  %2943 = vmatpush.bf16.msra.mxu0 %v786
  %2944 = vmatpush.bf16.msra.mxu0 %v784
  %2945 = vmatpush.bf16.msra.mxu0 %v782
  %2946 = vmatpush.bf16.msra.mxu0 %v780
  %2947 = vmatpush.bf16.msra.mxu0 %v778
  %2948 = vmatpush.bf16.msra.mxu0 %v776
  %2949 = vmatpush.bf16.msra.mxu0 %v774
  %2950 = vmatmul.bf16.gmra.mxu0 %v2828
  %v2951 = vpop.f32.mrf.mxu0
  %v2952 = vadd.f32 %v2939, %v2951
  %v2953 = vpop.f32.mrf.mxu0
  %2954 = vdwg.mxu0
  %2955 = vmatpush.bf16.msra.mxu0 %v661
  %2956 = vmatpush.bf16.msra.mxu0 %v659
  %2957 = vmatpush.bf16.msra.mxu0 %v657
  %2958 = vmatpush.bf16.msra.mxu0 %v655
  %2959 = vmatpush.bf16.msra.mxu0 %v653
  %2960 = vmatpush.bf16.msra.mxu0 %v651
  %2961 = vmatpush.bf16.msra.mxu0 %v649
  %2962 = vmatpush.bf16.msra.mxu0 %v647
  %2963 = vmatmul.bf16.gmra.mxu0 %v2820
  %v2964 = vpop.f32.mrf.mxu0
  %v2965 = vadd.f32 0.0, %v2964
  %v2966 = vpop.f32.mrf.mxu0
  %2967 = vdwg.mxu0
  %2968 = vmatpush.bf16.msra.mxu0 %v677
  %2969 = vmatpush.bf16.msra.mxu0 %v675
  %2970 = vmatpush.bf16.msra.mxu0 %v673
  %2971 = vmatpush.bf16.msra.mxu0 %v671
  %2972 = vmatpush.bf16.msra.mxu0 %v669
  %2973 = vmatpush.bf16.msra.mxu0 %v667
  %2974 = vmatpush.bf16.msra.mxu0 %v665
  %2975 = vmatpush.bf16.msra.mxu0 %v663
  %2976 = vmatmul.bf16.gmra.mxu0 %v2821
  %v2977 = vpop.f32.mrf.mxu0
  %v2978 = vadd.f32 %v2965, %v2977
  %v2979 = vpop.f32.mrf.mxu0
  %2980 = vdwg.mxu0
  %2981 = vmatpush.bf16.msra.mxu0 %v693
  %2982 = vmatpush.bf16.msra.mxu0 %v691
  %2983 = vmatpush.bf16.msra.mxu0 %v689
  %2984 = vmatpush.bf16.msra.mxu0 %v687
  %2985 = vmatpush.bf16.msra.mxu0 %v685
  %2986 = vmatpush.bf16.msra.mxu0 %v683
  %2987 = vmatpush.bf16.msra.mxu0 %v681
  %2988 = vmatpush.bf16.msra.mxu0 %v679
  %2989 = vmatmul.bf16.gmra.mxu0 %v2822
  %v2990 = vpop.f32.mrf.mxu0
  %v2991 = vadd.f32 %v2978, %v2990
  %v2992 = vpop.f32.mrf.mxu0
  %2993 = vdwg.mxu0
  %2994 = vmatpush.bf16.msra.mxu0 %v709
  %2995 = vmatpush.bf16.msra.mxu0 %v707
  %2996 = vmatpush.bf16.msra.mxu0 %v705
  %2997 = vmatpush.bf16.msra.mxu0 %v703
  %2998 = vmatpush.bf16.msra.mxu0 %v701
  %2999 = vmatpush.bf16.msra.mxu0 %v699
  %3000 = vmatpush.bf16.msra.mxu0 %v697
  %3001 = vmatpush.bf16.msra.mxu0 %v695
  %3002 = vmatmul.bf16.gmra.mxu0 %v2823
  %v3003 = vpop.f32.mrf.mxu0
  %v3004 = vadd.f32 %v2991, %v3003
  %v3005 = vpop.f32.mrf.mxu0
  %3006 = vdwg.mxu0
  %3007 = vmatpush.bf16.msra.mxu0 %v725
  %3008 = vmatpush.bf16.msra.mxu0 %v723
  %3009 = vmatpush.bf16.msra.mxu0 %v721
  %3010 = vmatpush.bf16.msra.mxu0 %v719
  %3011 = vmatpush.bf16.msra.mxu0 %v717
  %3012 = vmatpush.bf16.msra.mxu0 %v715
  %3013 = vmatpush.bf16.msra.mxu0 %v713
  %3014 = vmatpush.bf16.msra.mxu0 %v711
  %3015 = vmatmul.bf16.gmra.mxu0 %v2824
  %v3016 = vpop.f32.mrf.mxu0
  %v3017 = vadd.f32 %v3004, %v3016
  %v3018 = vpop.f32.mrf.mxu0
  %3019 = vdwg.mxu0
  %3020 = vmatpush.bf16.msra.mxu0 %v741
  %3021 = vmatpush.bf16.msra.mxu0 %v739
  %3022 = vmatpush.bf16.msra.mxu0 %v737
  %3023 = vmatpush.bf16.msra.mxu0 %v735
  %3024 = vmatpush.bf16.msra.mxu0 %v733
  %3025 = vmatpush.bf16.msra.mxu0 %v731
  %3026 = vmatpush.bf16.msra.mxu0 %v729
  %3027 = vmatpush.bf16.msra.mxu0 %v727
  %3028 = vmatmul.bf16.gmra.mxu0 %v2825
  %v3029 = vpop.f32.mrf.mxu0
  %v3030 = vadd.f32 %v3017, %v3029
  %v3031 = vpop.f32.mrf.mxu0
  %3032 = vdwg.mxu0
  %3033 = vmatpush.bf16.msra.mxu0 %v757
  %3034 = vmatpush.bf16.msra.mxu0 %v755
  %3035 = vmatpush.bf16.msra.mxu0 %v753
  %3036 = vmatpush.bf16.msra.mxu0 %v751
  %3037 = vmatpush.bf16.msra.mxu0 %v749
  %3038 = vmatpush.bf16.msra.mxu0 %v747
  %3039 = vmatpush.bf16.msra.mxu0 %v745
  %3040 = vmatpush.bf16.msra.mxu0 %v743
  %3041 = vmatmul.bf16.gmra.mxu0 %v2826
  %v3042 = vpop.f32.mrf.mxu0
  %v3043 = vadd.f32 %v3030, %v3042
  %v3044 = vpop.f32.mrf.mxu0
  %3045 = vdwg.mxu0
  %3046 = vmatpush.bf16.msra.mxu0 %v773
  %3047 = vmatpush.bf16.msra.mxu0 %v771
  %3048 = vmatpush.bf16.msra.mxu0 %v769
  %3049 = vmatpush.bf16.msra.mxu0 %v767
  %3050 = vmatpush.bf16.msra.mxu0 %v765
  %3051 = vmatpush.bf16.msra.mxu0 %v763
  %3052 = vmatpush.bf16.msra.mxu0 %v761
  %3053 = vmatpush.bf16.msra.mxu0 %v759
  %3054 = vmatmul.bf16.gmra.mxu0 %v2827
  %v3055 = vpop.f32.mrf.mxu0
  %v3056 = vadd.f32 %v3043, %v3055
  %v3057 = vpop.f32.mrf.mxu0
  %3058 = vdwg.mxu0
  %3059 = vmatpush.bf16.msra.mxu0 %v789
  %3060 = vmatpush.bf16.msra.mxu0 %v787
  %3061 = vmatpush.bf16.msra.mxu0 %v785
  %3062 = vmatpush.bf16.msra.mxu0 %v783
  %3063 = vmatpush.bf16.msra.mxu0 %v781
  %3064 = vmatpush.bf16.msra.mxu0 %v779
  %3065 = vmatpush.bf16.msra.mxu0 %v777
  %3066 = vmatpush.bf16.msra.mxu0 %v775
  %3067 = vmatmul.bf16.gmra.mxu0 %v2828
  %v3068 = vpop.f32.mrf.mxu0
  %v3069 = vadd.f32 %v3056, %v3068
  %v3070 = vpop.f32.mrf.mxu0
  %3071 = vdwg.mxu0
  %v3072 = vld [vmem:[%s5] sm:$0xff]
  %v3073 = vld [vmem:[%s5 + $0x8] sm:$0xff]
  %v3076 = vperm.slane %v3072, 0
  %v3077 = vperm.slane %v3072, 1
  %v3078 = vperm.slane %v3072, 2
  %v3079 = vperm.slane %v3072, 3
  %v3080 = vperm.slane %v3072, 4
  %v3081 = vperm.slane %v3072, 5
  %v3082 = vperm.slane %v3072, 6
  %v3083 = vperm.slane %v3072, 7
  %v3084 = vperm.slane %v3073, 0
  %v3085 = vperm.slane %v3073, 1
  %v3086 = vperm.slane %v3073, 2
  %v3087 = vperm.slane %v3073, 3
  %v3088 = vperm.slane %v3073, 4
  %v3089 = vperm.slane %v3073, 5
  %v3090 = vperm.slane %v3073, 6
  %v3091 = vperm.slane %v3073, 7
  %v3108 = vadd.f32 %v1048, %v3076
  %v3109 = vadd.f32 %v1165, %v3077
  %v3110 = vadd.f32 %v1320, %v3078
  %v3111 = vadd.f32 %v1437, %v3079
  %v3112 = vadd.f32 %v1592, %v3080
  %v3113 = vadd.f32 %v1709, %v3081
  %v3114 = vadd.f32 %v1864, %v3082
  %v3115 = vadd.f32 %v1981, %v3083
  %v3116 = vadd.f32 %v2136, %v3084
  %v3117 = vadd.f32 %v2253, %v3085
  %v3118 = vadd.f32 %v2408, %v3086
  %v3119 = vadd.f32 %v2525, %v3087
  %v3120 = vadd.f32 %v2680, %v3088
  %v3121 = vadd.f32 %v2797, %v3089
  %v3122 = vadd.f32 %v2952, %v3090
  %v3123 = vadd.f32 %v3069, %v3091
  %v3124 = vmax.f32 %v3108, 0.0
  %v3125 = vmax.f32 %v3109, 0.0
  %v3126 = vmax.f32 %v3110, 0.0
  %v3127 = vmax.f32 %v3111, 0.0
  %v3128 = vmax.f32 %v3112, 0.0
  %v3129 = vmax.f32 %v3113, 0.0
  %v3130 = vmax.f32 %v3114, 0.0
  %v3131 = vmax.f32 %v3115, 0.0
  %v3132 = vmax.f32 %v3116, 0.0
  %v3133 = vmax.f32 %v3117, 0.0
  %v3134 = vmax.f32 %v3118, 0.0
  %v3135 = vmax.f32 %v3119, 0.0
  %v3136 = vmax.f32 %v3120, 0.0
  %v3137 = vmax.f32 %v3121, 0.0
  %v3138 = vmax.f32 %v3122, 0.0
  %v3139 = vmax.f32 %v3123, 0.0
  %v3140 = vpack.c.bf16 %v3125, %v3124
  %v3141 = vpack.c.bf16 %v3127, %v3126
  %v3142 = vpack.c.bf16 %v3129, %v3128
  %v3143 = vpack.c.bf16 %v3131, %v3130
  %v3144 = vpack.c.bf16 %v3133, %v3132
  %v3145 = vpack.c.bf16 %v3135, %v3134
  %v3146 = vpack.c.bf16 %v3137, %v3136
  %v3147 = vpack.c.bf16 %v3139, %v3138
  %v3148 = vld [vmem:[%s2] sm:$0xff]
  %v3149 = vld [vmem:[%s2 + $0x8] sm:$0xff]
  %v3150 = vld [vmem:[%s2 + $0x10] sm:$0xff]
  %v3151 = vld [vmem:[%s2 + $0x18] sm:$0xff]
  %v3152 = vld [vmem:[%s2 + $0x20] sm:$0xff]
  %v3153 = vld [vmem:[%s2 + $0x28] sm:$0xff]
  %v3154 = vld [vmem:[%s2 + $0x30] sm:$0xff]
  %v3155 = vld [vmem:[%s2 + $0x38] sm:$0xff]
  %v3156 = vld [vmem:[%s2 + $0x40] sm:$0xff]
  %v3157 = vld [vmem:[%s2 + $0x48] sm:$0xff]
  %v3158 = vld [vmem:[%s2 + $0x50] sm:$0xff]
  %v3159 = vld [vmem:[%s2 + $0x58] sm:$0xff]
  %v3160 = vld [vmem:[%s2 + $0x60] sm:$0xff]
  %v3161 = vld [vmem:[%s2 + $0x68] sm:$0xff]
  %v3162 = vld [vmem:[%s2 + $0x70] sm:$0xff]
  %v3163 = vld [vmem:[%s2 + $0x78] sm:$0xff]
  %v3164 = vld [vmem:[%s2 + $0x80] sm:$0xff]
  %v3165 = vld [vmem:[%s2 + $0x88] sm:$0xff]
  %v3166 = vld [vmem:[%s2 + $0x90] sm:$0xff]
  %v3167 = vld [vmem:[%s2 + $0x98] sm:$0xff]
  %v3168 = vld [vmem:[%s2 + $0xa0] sm:$0xff]
  %v3169 = vld [vmem:[%s2 + $0xa8] sm:$0xff]
  %v3170 = vld [vmem:[%s2 + $0xb0] sm:$0xff]
  %v3171 = vld [vmem:[%s2 + $0xb8] sm:$0xff]
  %v3172 = vld [vmem:[%s2 + $0xc0] sm:$0xff]
  %v3173 = vld [vmem:[%s2 + $0xc8] sm:$0xff]
  %v3174 = vld [vmem:[%s2 + $0xd0] sm:$0xff]
  %v3175 = vld [vmem:[%s2 + $0xd8] sm:$0xff]
  %v3176 = vld [vmem:[%s2 + $0xe0] sm:$0xff]
  %v3177 = vld [vmem:[%s2 + $0xe8] sm:$0xff]
  %v3178 = vld [vmem:[%s2 + $0xf0] sm:$0xff]
  %v3179 = vld [vmem:[%s2 + $0xf8] sm:$0xff]
  %v3180 = vld [vmem:[%s2 + $0x100] sm:$0xff]
  %v3181 = vld [vmem:[%s2 + $0x108] sm:$0xff]
  %v3182 = vld [vmem:[%s2 + $0x110] sm:$0xff]
  %v3183 = vld [vmem:[%s2 + $0x118] sm:$0xff]
  %v3184 = vld [vmem:[%s2 + $0x120] sm:$0xff]
  %v3185 = vld [vmem:[%s2 + $0x128] sm:$0xff]
  %v3186 = vld [vmem:[%s2 + $0x130] sm:$0xff]
  %v3187 = vld [vmem:[%s2 + $0x138] sm:$0xff]
  %v3188 = vld [vmem:[%s2 + $0x140] sm:$0xff]
  %v3189 = vld [vmem:[%s2 + $0x148] sm:$0xff]
  %v3190 = vld [vmem:[%s2 + $0x150] sm:$0xff]
  %v3191 = vld [vmem:[%s2 + $0x158] sm:$0xff]
  %v3192 = vld [vmem:[%s2 + $0x160] sm:$0xff]
  %v3193 = vld [vmem:[%s2 + $0x168] sm:$0xff]
  %v3194 = vld [vmem:[%s2 + $0x170] sm:$0xff]
  %v3195 = vld [vmem:[%s2 + $0x178] sm:$0xff]
  %v3196 = vld [vmem:[%s2 + $0x180] sm:$0xff]
  %v3197 = vld [vmem:[%s2 + $0x188] sm:$0xff]
  %v3198 = vld [vmem:[%s2 + $0x190] sm:$0xff]
  %v3199 = vld [vmem:[%s2 + $0x198] sm:$0xff]
  %v3200 = vld [vmem:[%s2 + $0x1a0] sm:$0xff]
  %v3201 = vld [vmem:[%s2 + $0x1a8] sm:$0xff]
  %v3202 = vld [vmem:[%s2 + $0x1b0] sm:$0xff]
  %v3203 = vld [vmem:[%s2 + $0x1b8] sm:$0xff]
  %v3204 = vld [vmem:[%s2 + $0x1c0] sm:$0xff]
  %v3205 = vld [vmem:[%s2 + $0x1c8] sm:$0xff]
  %v3206 = vld [vmem:[%s2 + $0x1d0] sm:$0xff]
  %v3207 = vld [vmem:[%s2 + $0x1d8] sm:$0xff]
  %v3208 = vld [vmem:[%s2 + $0x1e0] sm:$0xff]
  %v3209 = vld [vmem:[%s2 + $0x1e8] sm:$0xff]
  %v3210 = vld [vmem:[%s2 + $0x1f0] sm:$0xff]
  %v3211 = vld [vmem:[%s2 + $0x1f8] sm:$0xff]
  %v3212 = vld [vmem:[%s2 + $0x200] sm:$0xff]
  %v3213 = vld [vmem:[%s2 + $0x208] sm:$0xff]
  %v3214 = vld [vmem:[%s2 + $0x210] sm:$0xff]
  %v3215 = vld [vmem:[%s2 + $0x218] sm:$0xff]
  %v3216 = vld [vmem:[%s2 + $0x220] sm:$0xff]
  %v3217 = vld [vmem:[%s2 + $0x228] sm:$0xff]
  %v3218 = vld [vmem:[%s2 + $0x230] sm:$0xff]
  %v3219 = vld [vmem:[%s2 + $0x238] sm:$0xff]
  %v3220 = vld [vmem:[%s2 + $0x240] sm:$0xff]
  %v3221 = vld [vmem:[%s2 + $0x248] sm:$0xff]
  %v3222 = vld [vmem:[%s2 + $0x250] sm:$0xff]
  %v3223 = vld [vmem:[%s2 + $0x258] sm:$0xff]
  %v3224 = vld [vmem:[%s2 + $0x260] sm:$0xff]
  %v3225 = vld [vmem:[%s2 + $0x268] sm:$0xff]
  %v3226 = vld [vmem:[%s2 + $0x270] sm:$0xff]
  %v3227 = vld [vmem:[%s2 + $0x278] sm:$0xff]
  %v3228 = vld [vmem:[%s2 + $0x280] sm:$0xff]
  %v3229 = vld [vmem:[%s2 + $0x288] sm:$0xff]
  %v3230 = vld [vmem:[%s2 + $0x290] sm:$0xff]
  %v3231 = vld [vmem:[%s2 + $0x298] sm:$0xff]
  %v3232 = vld [vmem:[%s2 + $0x2a0] sm:$0xff]
  %v3233 = vld [vmem:[%s2 + $0x2a8] sm:$0xff]
  %v3234 = vld [vmem:[%s2 + $0x2b0] sm:$0xff]
  %v3235 = vld [vmem:[%s2 + $0x2b8] sm:$0xff]
  %v3236 = vld [vmem:[%s2 + $0x2c0] sm:$0xff]
  %v3237 = vld [vmem:[%s2 + $0x2c8] sm:$0xff]
  %v3238 = vld [vmem:[%s2 + $0x2d0] sm:$0xff]
  %v3239 = vld [vmem:[%s2 + $0x2d8] sm:$0xff]
  %v3240 = vld [vmem:[%s2 + $0x2e0] sm:$0xff]
  %v3241 = vld [vmem:[%s2 + $0x2e8] sm:$0xff]
  %v3242 = vld [vmem:[%s2 + $0x2f0] sm:$0xff]
  %v3243 = vld [vmem:[%s2 + $0x2f8] sm:$0xff]
  %v3244 = vld [vmem:[%s2 + $0x300] sm:$0xff]
  %v3245 = vld [vmem:[%s2 + $0x308] sm:$0xff]
  %v3246 = vld [vmem:[%s2 + $0x310] sm:$0xff]
  %v3247 = vld [vmem:[%s2 + $0x318] sm:$0xff]
  %v3248 = vld [vmem:[%s2 + $0x320] sm:$0xff]
  %v3249 = vld [vmem:[%s2 + $0x328] sm:$0xff]
  %v3250 = vld [vmem:[%s2 + $0x330] sm:$0xff]
  %v3251 = vld [vmem:[%s2 + $0x338] sm:$0xff]
  %v3252 = vld [vmem:[%s2 + $0x340] sm:$0xff]
  %v3253 = vld [vmem:[%s2 + $0x348] sm:$0xff]
  %v3254 = vld [vmem:[%s2 + $0x350] sm:$0xff]
  %v3255 = vld [vmem:[%s2 + $0x358] sm:$0xff]
  %v3256 = vld [vmem:[%s2 + $0x360] sm:$0xff]
  %v3257 = vld [vmem:[%s2 + $0x368] sm:$0xff]
  %v3258 = vld [vmem:[%s2 + $0x370] sm:$0xff]
  %v3259 = vld [vmem:[%s2 + $0x378] sm:$0xff]
  %v3260 = vld [vmem:[%s2 + $0x380] sm:$0xff]
  %v3261 = vld [vmem:[%s2 + $0x388] sm:$0xff]
  %v3262 = vld [vmem:[%s2 + $0x390] sm:$0xff]
  %v3263 = vld [vmem:[%s2 + $0x398] sm:$0xff]
  %v3264 = vld [vmem:[%s2 + $0x3a0] sm:$0xff]
  %v3265 = vld [vmem:[%s2 + $0x3a8] sm:$0xff]
  %v3266 = vld [vmem:[%s2 + $0x3b0] sm:$0xff]
  %v3267 = vld [vmem:[%s2 + $0x3b8] sm:$0xff]
  %v3268 = vld [vmem:[%s2 + $0x3c0] sm:$0xff]
  %v3269 = vld [vmem:[%s2 + $0x3c8] sm:$0xff]
  %v3270 = vld [vmem:[%s2 + $0x3d0] sm:$0xff]
  %v3271 = vld [vmem:[%s2 + $0x3d8] sm:$0xff]
  %v3272 = vld [vmem:[%s2 + $0x3e0] sm:$0xff]
  %v3273 = vld [vmem:[%s2 + $0x3e8] sm:$0xff]
  %v3274 = vld [vmem:[%s2 + $0x3f0] sm:$0xff]
  %v3275 = vld [vmem:[%s2 + $0x3f8] sm:$0xff]
  %v3280 = vunpack.c.l.b16 %v3140
  %v3281 = vunpack.c.h.b16 %v3140
  %v3282 = vunpack.c.l.b16 %v3141
  %v3283 = vunpack.c.h.b16 %v3141
  %v3284 = vunpack.c.l.b16 %v3142
  %v3285 = vunpack.c.h.b16 %v3142
  %v3286 = vunpack.c.l.b16 %v3143
  %v3287 = vunpack.c.h.b16 %v3143
  %v3288 = vpack.c.b16 %v3280, %v3280
  %v3289 = vpack.c.b16 %v3281, %v3281
  %v3290 = vpack.c.b16 %v3282, %v3282
  %v3291 = vpack.c.b16 %v3283, %v3283
  %v3292 = vpack.c.b16 %v3284, %v3284
  %v3293 = vpack.c.b16 %v3285, %v3285
  %v3294 = vpack.c.b16 %v3286, %v3286
  %v3295 = vpack.c.b16 %v3287, %v3287
  %v3432 = vunpack.c.l.b16 %v3148
  %v3433 = vunpack.c.h.b16 %v3148
  %v3434 = vunpack.c.l.b16 %v3149
  %v3435 = vunpack.c.h.b16 %v3149
  %v3436 = vunpack.c.l.b16 %v3150
  %v3437 = vunpack.c.h.b16 %v3150
  %v3438 = vunpack.c.l.b16 %v3151
  %v3439 = vunpack.c.h.b16 %v3151
  %v3440 = vunpack.c.l.b16 %v3152
  %v3441 = vunpack.c.h.b16 %v3152
  %v3442 = vunpack.c.l.b16 %v3153
  %v3443 = vunpack.c.h.b16 %v3153
  %v3444 = vunpack.c.l.b16 %v3154
  %v3445 = vunpack.c.h.b16 %v3154
  %v3446 = vunpack.c.l.b16 %v3155
  %v3447 = vunpack.c.h.b16 %v3155
  %v3448 = vunpack.c.l.b16 %v3156
  %v3449 = vunpack.c.h.b16 %v3156
  %v3450 = vunpack.c.l.b16 %v3157
  %v3451 = vunpack.c.h.b16 %v3157
  %v3452 = vunpack.c.l.b16 %v3158
  %v3453 = vunpack.c.h.b16 %v3158
  %v3454 = vunpack.c.l.b16 %v3159
  %v3455 = vunpack.c.h.b16 %v3159
  %v3456 = vunpack.c.l.b16 %v3160
  %v3457 = vunpack.c.h.b16 %v3160
  %v3458 = vunpack.c.l.b16 %v3161
  %v3459 = vunpack.c.h.b16 %v3161
  %v3460 = vunpack.c.l.b16 %v3162
  %v3461 = vunpack.c.h.b16 %v3162
  %v3462 = vunpack.c.l.b16 %v3163
  %v3463 = vunpack.c.h.b16 %v3163
  %v3464 = vunpack.c.l.b16 %v3164
  %v3465 = vunpack.c.h.b16 %v3164
  %v3466 = vunpack.c.l.b16 %v3165
  %v3467 = vunpack.c.h.b16 %v3165
  %v3468 = vunpack.c.l.b16 %v3166
  %v3469 = vunpack.c.h.b16 %v3166
  %v3470 = vunpack.c.l.b16 %v3167
  %v3471 = vunpack.c.h.b16 %v3167
  %v3472 = vunpack.c.l.b16 %v3168
  %v3473 = vunpack.c.h.b16 %v3168
  %v3474 = vunpack.c.l.b16 %v3169
  %v3475 = vunpack.c.h.b16 %v3169
  %v3476 = vunpack.c.l.b16 %v3170
  %v3477 = vunpack.c.h.b16 %v3170
  %v3478 = vunpack.c.l.b16 %v3171
  %v3479 = vunpack.c.h.b16 %v3171
  %v3480 = vunpack.c.l.b16 %v3172
  %v3481 = vunpack.c.h.b16 %v3172
  %v3482 = vunpack.c.l.b16 %v3173
  %v3483 = vunpack.c.h.b16 %v3173
  %v3484 = vunpack.c.l.b16 %v3174
  %v3485 = vunpack.c.h.b16 %v3174
  %v3486 = vunpack.c.l.b16 %v3175
  %v3487 = vunpack.c.h.b16 %v3175
  %v3488 = vunpack.c.l.b16 %v3176
  %v3489 = vunpack.c.h.b16 %v3176
  %v3490 = vunpack.c.l.b16 %v3177
  %v3491 = vunpack.c.h.b16 %v3177
  %v3492 = vunpack.c.l.b16 %v3178
  %v3493 = vunpack.c.h.b16 %v3178
  %v3494 = vunpack.c.l.b16 %v3179
  %v3495 = vunpack.c.h.b16 %v3179
  %v3496 = vunpack.c.l.b16 %v3180
  %v3497 = vunpack.c.h.b16 %v3180
  %v3498 = vunpack.c.l.b16 %v3181
  %v3499 = vunpack.c.h.b16 %v3181
  %v3500 = vunpack.c.l.b16 %v3182
  %v3501 = vunpack.c.h.b16 %v3182
  %v3502 = vunpack.c.l.b16 %v3183
  %v3503 = vunpack.c.h.b16 %v3183
  %v3504 = vunpack.c.l.b16 %v3184
  %v3505 = vunpack.c.h.b16 %v3184
  %v3506 = vunpack.c.l.b16 %v3185
  %v3507 = vunpack.c.h.b16 %v3185
  %v3508 = vunpack.c.l.b16 %v3186
  %v3509 = vunpack.c.h.b16 %v3186
  %v3510 = vunpack.c.l.b16 %v3187
  %v3511 = vunpack.c.h.b16 %v3187
  %v3512 = vunpack.c.l.b16 %v3188
  %v3513 = vunpack.c.h.b16 %v3188
  %v3514 = vunpack.c.l.b16 %v3189
  %v3515 = vunpack.c.h.b16 %v3189
  %v3516 = vunpack.c.l.b16 %v3190
  %v3517 = vunpack.c.h.b16 %v3190
  %v3518 = vunpack.c.l.b16 %v3191
  %v3519 = vunpack.c.h.b16 %v3191
  %v3520 = vunpack.c.l.b16 %v3192
  %v3521 = vunpack.c.h.b16 %v3192
  %v3522 = vunpack.c.l.b16 %v3193
  %v3523 = vunpack.c.h.b16 %v3193
  %v3524 = vunpack.c.l.b16 %v3194
  %v3525 = vunpack.c.h.b16 %v3194
  %v3526 = vunpack.c.l.b16 %v3195
  %v3527 = vunpack.c.h.b16 %v3195
  %v3528 = vunpack.c.l.b16 %v3196
  %v3529 = vunpack.c.h.b16 %v3196
  %v3530 = vunpack.c.l.b16 %v3197
  %v3531 = vunpack.c.h.b16 %v3197
  %v3532 = vunpack.c.l.b16 %v3198
  %v3533 = vunpack.c.h.b16 %v3198
  %v3534 = vunpack.c.l.b16 %v3199
  %v3535 = vunpack.c.h.b16 %v3199
  %v3536 = vunpack.c.l.b16 %v3200
  %v3537 = vunpack.c.h.b16 %v3200
  %v3538 = vunpack.c.l.b16 %v3201
  %v3539 = vunpack.c.h.b16 %v3201
  %v3540 = vunpack.c.l.b16 %v3202
  %v3541 = vunpack.c.h.b16 %v3202
  %v3542 = vunpack.c.l.b16 %v3203
  %v3543 = vunpack.c.h.b16 %v3203
  %v3544 = vunpack.c.l.b16 %v3204
  %v3545 = vunpack.c.h.b16 %v3204
  %v3546 = vunpack.c.l.b16 %v3205
  %v3547 = vunpack.c.h.b16 %v3205
  %v3548 = vunpack.c.l.b16 %v3206
  %v3549 = vunpack.c.h.b16 %v3206
  %v3550 = vunpack.c.l.b16 %v3207
  %v3551 = vunpack.c.h.b16 %v3207
  %v3552 = vunpack.c.l.b16 %v3208
  %v3553 = vunpack.c.h.b16 %v3208
  %v3554 = vunpack.c.l.b16 %v3209
  %v3555 = vunpack.c.h.b16 %v3209
  %v3556 = vunpack.c.l.b16 %v3210
  %v3557 = vunpack.c.h.b16 %v3210
  %v3558 = vunpack.c.l.b16 %v3211
  %v3559 = vunpack.c.h.b16 %v3211
  %v3560 = vunpack.c.l.b16 %v3212
  %v3561 = vunpack.c.h.b16 %v3212
  %v3562 = vunpack.c.l.b16 %v3213
  %v3563 = vunpack.c.h.b16 %v3213
  %v3564 = vunpack.c.l.b16 %v3214
  %v3565 = vunpack.c.h.b16 %v3214
  %v3566 = vunpack.c.l.b16 %v3215
  %v3567 = vunpack.c.h.b16 %v3215
  %v3568 = vunpack.c.l.b16 %v3216
  %v3569 = vunpack.c.h.b16 %v3216
  %v3570 = vunpack.c.l.b16 %v3217
  %v3571 = vunpack.c.h.b16 %v3217
  %v3572 = vunpack.c.l.b16 %v3218
  %v3573 = vunpack.c.h.b16 %v3218
  %v3574 = vunpack.c.l.b16 %v3219
  %v3575 = vunpack.c.h.b16 %v3219
  %v3576 = vunpack.c.l.b16 %v3220
  %v3577 = vunpack.c.h.b16 %v3220
  %v3578 = vunpack.c.l.b16 %v3221
  %v3579 = vunpack.c.h.b16 %v3221
  %v3580 = vunpack.c.l.b16 %v3222
  %v3581 = vunpack.c.h.b16 %v3222
  %v3582 = vunpack.c.l.b16 %v3223
  %v3583 = vunpack.c.h.b16 %v3223
  %v3584 = vunpack.c.l.b16 %v3224
  %v3585 = vunpack.c.h.b16 %v3224
  %v3586 = vunpack.c.l.b16 %v3225
  %v3587 = vunpack.c.h.b16 %v3225
  %v3588 = vunpack.c.l.b16 %v3226
  %v3589 = vunpack.c.h.b16 %v3226
  %v3590 = vunpack.c.l.b16 %v3227
  %v3591 = vunpack.c.h.b16 %v3227
  %v3592 = vunpack.c.l.b16 %v3228
  %v3593 = vunpack.c.h.b16 %v3228
  %v3594 = vunpack.c.l.b16 %v3229
  %v3595 = vunpack.c.h.b16 %v3229
  %v3596 = vunpack.c.l.b16 %v3230
  %v3597 = vunpack.c.h.b16 %v3230
  %v3598 = vunpack.c.l.b16 %v3231
  %v3599 = vunpack.c.h.b16 %v3231
  %v3600 = vunpack.c.l.b16 %v3232
  %v3601 = vunpack.c.h.b16 %v3232
  %v3602 = vunpack.c.l.b16 %v3233
  %v3603 = vunpack.c.h.b16 %v3233
  %v3604 = vunpack.c.l.b16 %v3234
  %v3605 = vunpack.c.h.b16 %v3234
  %v3606 = vunpack.c.l.b16 %v3235
  %v3607 = vunpack.c.h.b16 %v3235
  %v3608 = vunpack.c.l.b16 %v3236
  %v3609 = vunpack.c.h.b16 %v3236
  %v3610 = vunpack.c.l.b16 %v3237
  %v3611 = vunpack.c.h.b16 %v3237
  %v3612 = vunpack.c.l.b16 %v3238
  %v3613 = vunpack.c.h.b16 %v3238
  %v3614 = vunpack.c.l.b16 %v3239
  %v3615 = vunpack.c.h.b16 %v3239
  %v3616 = vunpack.c.l.b16 %v3240
  %v3617 = vunpack.c.h.b16 %v3240
  %v3618 = vunpack.c.l.b16 %v3241
  %v3619 = vunpack.c.h.b16 %v3241
  %v3620 = vunpack.c.l.b16 %v3242
  %v3621 = vunpack.c.h.b16 %v3242
  %v3622 = vunpack.c.l.b16 %v3243
  %v3623 = vunpack.c.h.b16 %v3243
  %v3624 = vunpack.c.l.b16 %v3244
  %v3625 = vunpack.c.h.b16 %v3244
  %v3626 = vunpack.c.l.b16 %v3245
  %v3627 = vunpack.c.h.b16 %v3245
  %v3628 = vunpack.c.l.b16 %v3246
  %v3629 = vunpack.c.h.b16 %v3246
  %v3630 = vunpack.c.l.b16 %v3247
  %v3631 = vunpack.c.h.b16 %v3247
  %v3632 = vunpack.c.l.b16 %v3248
  %v3633 = vunpack.c.h.b16 %v3248
  %v3634 = vunpack.c.l.b16 %v3249
  %v3635 = vunpack.c.h.b16 %v3249
  %v3636 = vunpack.c.l.b16 %v3250
  %v3637 = vunpack.c.h.b16 %v3250
  %v3638 = vunpack.c.l.b16 %v3251
  %v3639 = vunpack.c.h.b16 %v3251
  %v3640 = vunpack.c.l.b16 %v3252
  %v3641 = vunpack.c.h.b16 %v3252
  %v3642 = vunpack.c.l.b16 %v3253
  %v3643 = vunpack.c.h.b16 %v3253
  %v3644 = vunpack.c.l.b16 %v3254
  %v3645 = vunpack.c.h.b16 %v3254
  %v3646 = vunpack.c.l.b16 %v3255
  %v3647 = vunpack.c.h.b16 %v3255
  %v3648 = vunpack.c.l.b16 %v3256
  %v3649 = vunpack.c.h.b16 %v3256
  %v3650 = vunpack.c.l.b16 %v3257
  %v3651 = vunpack.c.h.b16 %v3257
  %v3652 = vunpack.c.l.b16 %v3258
  %v3653 = vunpack.c.h.b16 %v3258
  %v3654 = vunpack.c.l.b16 %v3259
  %v3655 = vunpack.c.h.b16 %v3259
  %v3656 = vunpack.c.l.b16 %v3260
  %v3657 = vunpack.c.h.b16 %v3260
  %v3658 = vunpack.c.l.b16 %v3261
  %v3659 = vunpack.c.h.b16 %v3261
  %v3660 = vunpack.c.l.b16 %v3262
  %v3661 = vunpack.c.h.b16 %v3262
  %v3662 = vunpack.c.l.b16 %v3263
  %v3663 = vunpack.c.h.b16 %v3263
  %v3664 = vunpack.c.l.b16 %v3264
  %v3665 = vunpack.c.h.b16 %v3264
  %v3666 = vunpack.c.l.b16 %v3265
  %v3667 = vunpack.c.h.b16 %v3265
  %v3668 = vunpack.c.l.b16 %v3266
  %v3669 = vunpack.c.h.b16 %v3266
  %v3670 = vunpack.c.l.b16 %v3267
  %v3671 = vunpack.c.h.b16 %v3267
  %v3672 = vunpack.c.l.b16 %v3268
  %v3673 = vunpack.c.h.b16 %v3268
  %v3674 = vunpack.c.l.b16 %v3269
  %v3675 = vunpack.c.h.b16 %v3269
  %v3676 = vunpack.c.l.b16 %v3270
  %v3677 = vunpack.c.h.b16 %v3270
  %v3678 = vunpack.c.l.b16 %v3271
  %v3679 = vunpack.c.h.b16 %v3271
  %v3680 = vunpack.c.l.b16 %v3272
  %v3681 = vunpack.c.h.b16 %v3272
  %v3682 = vunpack.c.l.b16 %v3273
  %v3683 = vunpack.c.h.b16 %v3273
  %v3684 = vunpack.c.l.b16 %v3274
  %v3685 = vunpack.c.h.b16 %v3274
  %v3686 = vunpack.c.l.b16 %v3275
  %v3687 = vunpack.c.h.b16 %v3275
  %v3688 = vpack.c.b16 %v3434, %v3432
  %v3689 = vpack.c.b16 %v3435, %v3433
  %v3690 = vpack.c.b16 %v3438, %v3436
  %v3691 = vpack.c.b16 %v3439, %v3437
  %v3692 = vpack.c.b16 %v3442, %v3440
  %v3693 = vpack.c.b16 %v3443, %v3441
  %v3694 = vpack.c.b16 %v3446, %v3444
  %v3695 = vpack.c.b16 %v3447, %v3445
  %v3696 = vpack.c.b16 %v3450, %v3448
  %v3697 = vpack.c.b16 %v3451, %v3449
  %v3698 = vpack.c.b16 %v3454, %v3452
  %v3699 = vpack.c.b16 %v3455, %v3453
  %v3700 = vpack.c.b16 %v3458, %v3456
  %v3701 = vpack.c.b16 %v3459, %v3457
  %v3702 = vpack.c.b16 %v3462, %v3460
  %v3703 = vpack.c.b16 %v3463, %v3461
  %v3704 = vpack.c.b16 %v3466, %v3464
  %v3705 = vpack.c.b16 %v3467, %v3465
  %v3706 = vpack.c.b16 %v3470, %v3468
  %v3707 = vpack.c.b16 %v3471, %v3469
  %v3708 = vpack.c.b16 %v3474, %v3472
  %v3709 = vpack.c.b16 %v3475, %v3473
  %v3710 = vpack.c.b16 %v3478, %v3476
  %v3711 = vpack.c.b16 %v3479, %v3477
  %v3712 = vpack.c.b16 %v3482, %v3480
  %v3713 = vpack.c.b16 %v3483, %v3481
  %v3714 = vpack.c.b16 %v3486, %v3484
  %v3715 = vpack.c.b16 %v3487, %v3485
  %v3716 = vpack.c.b16 %v3490, %v3488
  %v3717 = vpack.c.b16 %v3491, %v3489
  %v3718 = vpack.c.b16 %v3494, %v3492
  %v3719 = vpack.c.b16 %v3495, %v3493
  %v3720 = vpack.c.b16 %v3498, %v3496
  %v3721 = vpack.c.b16 %v3499, %v3497
  %v3722 = vpack.c.b16 %v3502, %v3500
  %v3723 = vpack.c.b16 %v3503, %v3501
  %v3724 = vpack.c.b16 %v3506, %v3504
  %v3725 = vpack.c.b16 %v3507, %v3505
  %v3726 = vpack.c.b16 %v3510, %v3508
  %v3727 = vpack.c.b16 %v3511, %v3509
  %v3728 = vpack.c.b16 %v3514, %v3512
  %v3729 = vpack.c.b16 %v3515, %v3513
  %v3730 = vpack.c.b16 %v3518, %v3516
  %v3731 = vpack.c.b16 %v3519, %v3517
  %v3732 = vpack.c.b16 %v3522, %v3520
  %v3733 = vpack.c.b16 %v3523, %v3521
  %v3734 = vpack.c.b16 %v3526, %v3524
  %v3735 = vpack.c.b16 %v3527, %v3525
  %v3736 = vpack.c.b16 %v3530, %v3528
  %v3737 = vpack.c.b16 %v3531, %v3529
  %v3738 = vpack.c.b16 %v3534, %v3532
  %v3739 = vpack.c.b16 %v3535, %v3533
  %v3740 = vpack.c.b16 %v3538, %v3536
  %v3741 = vpack.c.b16 %v3539, %v3537
  %v3742 = vpack.c.b16 %v3542, %v3540
  %v3743 = vpack.c.b16 %v3543, %v3541
  %v3744 = vpack.c.b16 %v3546, %v3544
  %v3745 = vpack.c.b16 %v3547, %v3545
  %v3746 = vpack.c.b16 %v3550, %v3548
  %v3747 = vpack.c.b16 %v3551, %v3549
  %v3748 = vpack.c.b16 %v3554, %v3552
  %v3749 = vpack.c.b16 %v3555, %v3553
  %v3750 = vpack.c.b16 %v3558, %v3556
  %v3751 = vpack.c.b16 %v3559, %v3557
  %v3752 = vpack.c.b16 %v3562, %v3560
  %v3753 = vpack.c.b16 %v3563, %v3561
  %v3754 = vpack.c.b16 %v3566, %v3564
  %v3755 = vpack.c.b16 %v3567, %v3565
  %v3756 = vpack.c.b16 %v3570, %v3568
  %v3757 = vpack.c.b16 %v3571, %v3569
  %v3758 = vpack.c.b16 %v3574, %v3572
  %v3759 = vpack.c.b16 %v3575, %v3573
  %v3760 = vpack.c.b16 %v3578, %v3576
  %v3761 = vpack.c.b16 %v3579, %v3577
  %v3762 = vpack.c.b16 %v3582, %v3580
  %v3763 = vpack.c.b16 %v3583, %v3581
  %v3764 = vpack.c.b16 %v3586, %v3584
  %v3765 = vpack.c.b16 %v3587, %v3585
  %v3766 = vpack.c.b16 %v3590, %v3588
  %v3767 = vpack.c.b16 %v3591, %v3589
  %v3768 = vpack.c.b16 %v3594, %v3592
  %v3769 = vpack.c.b16 %v3595, %v3593
  %v3770 = vpack.c.b16 %v3598, %v3596
  %v3771 = vpack.c.b16 %v3599, %v3597
  %v3772 = vpack.c.b16 %v3602, %v3600
  %v3773 = vpack.c.b16 %v3603, %v3601
  %v3774 = vpack.c.b16 %v3606, %v3604
  %v3775 = vpack.c.b16 %v3607, %v3605
  %v3776 = vpack.c.b16 %v3610, %v3608
  %v3777 = vpack.c.b16 %v3611, %v3609
  %v3778 = vpack.c.b16 %v3614, %v3612
  %v3779 = vpack.c.b16 %v3615, %v3613
  %v3780 = vpack.c.b16 %v3618, %v3616
  %v3781 = vpack.c.b16 %v3619, %v3617
  %v3782 = vpack.c.b16 %v3622, %v3620
  %v3783 = vpack.c.b16 %v3623, %v3621
  %v3784 = vpack.c.b16 %v3626, %v3624
  %v3785 = vpack.c.b16 %v3627, %v3625
  %v3786 = vpack.c.b16 %v3630, %v3628
  %v3787 = vpack.c.b16 %v3631, %v3629
  %v3788 = vpack.c.b16 %v3634, %v3632
  %v3789 = vpack.c.b16 %v3635, %v3633
  %v3790 = vpack.c.b16 %v3638, %v3636
  %v3791 = vpack.c.b16 %v3639, %v3637
  %v3792 = vpack.c.b16 %v3642, %v3640
  %v3793 = vpack.c.b16 %v3643, %v3641
  %v3794 = vpack.c.b16 %v3646, %v3644
  %v3795 = vpack.c.b16 %v3647, %v3645
  %v3796 = vpack.c.b16 %v3650, %v3648
  %v3797 = vpack.c.b16 %v3651, %v3649
  %v3798 = vpack.c.b16 %v3654, %v3652
  %v3799 = vpack.c.b16 %v3655, %v3653
  %v3800 = vpack.c.b16 %v3658, %v3656
  %v3801 = vpack.c.b16 %v3659, %v3657
  %v3802 = vpack.c.b16 %v3662, %v3660
  %v3803 = vpack.c.b16 %v3663, %v3661
  %v3804 = vpack.c.b16 %v3666, %v3664
  %v3805 = vpack.c.b16 %v3667, %v3665
  %v3806 = vpack.c.b16 %v3670, %v3668
  %v3807 = vpack.c.b16 %v3671, %v3669
  %v3808 = vpack.c.b16 %v3674, %v3672
  %v3809 = vpack.c.b16 %v3675, %v3673
  %v3810 = vpack.c.b16 %v3678, %v3676
  %v3811 = vpack.c.b16 %v3679, %v3677
  %v3812 = vpack.c.b16 %v3682, %v3680
  %v3813 = vpack.c.b16 %v3683, %v3681
  %v3814 = vpack.c.b16 %v3686, %v3684
  %v3815 = vpack.c.b16 %v3687, %v3685
  %3944 = vmatpush.bf16.msra.mxu0 %v3702
  %3945 = vmatpush.bf16.msra.mxu0 %v3700
  %3946 = vmatpush.bf16.msra.mxu0 %v3698
  %3947 = vmatpush.bf16.msra.mxu0 %v3696
  %3948 = vmatpush.bf16.msra.mxu0 %v3694
  %3949 = vmatpush.bf16.msra.mxu0 %v3692
  %3950 = vmatpush.bf16.msra.mxu0 %v3690
  %3951 = vmatpush.bf16.msra.mxu0 %v3688
  %3952 = vmatmul.bf16.gmra.mxu0 %v3288
  %v3953 = vpop.f32.mrf.mxu0
  %v3954 = vadd.f32 0.0, %v3953
  %v3955 = vpop.f32.mrf.mxu0
  %3956 = vdwg.mxu0
  %3957 = vmatpush.bf16.msra.mxu0 %v3718
  %3958 = vmatpush.bf16.msra.mxu0 %v3716
  %3959 = vmatpush.bf16.msra.mxu0 %v3714
  %3960 = vmatpush.bf16.msra.mxu0 %v3712
  %3961 = vmatpush.bf16.msra.mxu0 %v3710
  %3962 = vmatpush.bf16.msra.mxu0 %v3708
  %3963 = vmatpush.bf16.msra.mxu0 %v3706
  %3964 = vmatpush.bf16.msra.mxu0 %v3704
  %3965 = vmatmul.bf16.gmra.mxu0 %v3289
  %v3966 = vpop.f32.mrf.mxu0
  %v3967 = vadd.f32 %v3954, %v3966
  %v3968 = vpop.f32.mrf.mxu0
  %3969 = vdwg.mxu0
  %3970 = vmatpush.bf16.msra.mxu0 %v3734
  %3971 = vmatpush.bf16.msra.mxu0 %v3732
  %3972 = vmatpush.bf16.msra.mxu0 %v3730
  %3973 = vmatpush.bf16.msra.mxu0 %v3728
  %3974 = vmatpush.bf16.msra.mxu0 %v3726
  %3975 = vmatpush.bf16.msra.mxu0 %v3724
  %3976 = vmatpush.bf16.msra.mxu0 %v3722
  %3977 = vmatpush.bf16.msra.mxu0 %v3720
  %3978 = vmatmul.bf16.gmra.mxu0 %v3290
  %v3979 = vpop.f32.mrf.mxu0
  %v3980 = vadd.f32 %v3967, %v3979
  %v3981 = vpop.f32.mrf.mxu0
  %3982 = vdwg.mxu0
  %3983 = vmatpush.bf16.msra.mxu0 %v3750
  %3984 = vmatpush.bf16.msra.mxu0 %v3748
  %3985 = vmatpush.bf16.msra.mxu0 %v3746
  %3986 = vmatpush.bf16.msra.mxu0 %v3744
  %3987 = vmatpush.bf16.msra.mxu0 %v3742
  %3988 = vmatpush.bf16.msra.mxu0 %v3740
  %3989 = vmatpush.bf16.msra.mxu0 %v3738
  %3990 = vmatpush.bf16.msra.mxu0 %v3736
  %3991 = vmatmul.bf16.gmra.mxu0 %v3291
  %v3992 = vpop.f32.mrf.mxu0
  %v3993 = vadd.f32 %v3980, %v3992
  %v3994 = vpop.f32.mrf.mxu0
  %3995 = vdwg.mxu0
  %3996 = vmatpush.bf16.msra.mxu0 %v3766
  %3997 = vmatpush.bf16.msra.mxu0 %v3764
  %3998 = vmatpush.bf16.msra.mxu0 %v3762
  %3999 = vmatpush.bf16.msra.mxu0 %v3760
  %4000 = vmatpush.bf16.msra.mxu0 %v3758
  %4001 = vmatpush.bf16.msra.mxu0 %v3756
  %4002 = vmatpush.bf16.msra.mxu0 %v3754
  %4003 = vmatpush.bf16.msra.mxu0 %v3752
  %4004 = vmatmul.bf16.gmra.mxu0 %v3292
  %v4005 = vpop.f32.mrf.mxu0
  %v4006 = vadd.f32 %v3993, %v4005
  %v4007 = vpop.f32.mrf.mxu0
  %4008 = vdwg.mxu0
  %4009 = vmatpush.bf16.msra.mxu0 %v3782
  %4010 = vmatpush.bf16.msra.mxu0 %v3780
  %4011 = vmatpush.bf16.msra.mxu0 %v3778
  %4012 = vmatpush.bf16.msra.mxu0 %v3776
  %4013 = vmatpush.bf16.msra.mxu0 %v3774
  %4014 = vmatpush.bf16.msra.mxu0 %v3772
  %4015 = vmatpush.bf16.msra.mxu0 %v3770
  %4016 = vmatpush.bf16.msra.mxu0 %v3768
  %4017 = vmatmul.bf16.gmra.mxu0 %v3293
  %v4018 = vpop.f32.mrf.mxu0
  %v4019 = vadd.f32 %v4006, %v4018
  %v4020 = vpop.f32.mrf.mxu0
  %4021 = vdwg.mxu0
  %4022 = vmatpush.bf16.msra.mxu0 %v3798
  %4023 = vmatpush.bf16.msra.mxu0 %v3796
  %4024 = vmatpush.bf16.msra.mxu0 %v3794
  %4025 = vmatpush.bf16.msra.mxu0 %v3792
  %4026 = vmatpush.bf16.msra.mxu0 %v3790
  %4027 = vmatpush.bf16.msra.mxu0 %v3788
  %4028 = vmatpush.bf16.msra.mxu0 %v3786
  %4029 = vmatpush.bf16.msra.mxu0 %v3784
  %4030 = vmatmul.bf16.gmra.mxu0 %v3294
  %v4031 = vpop.f32.mrf.mxu0
  %v4032 = vadd.f32 %v4019, %v4031
  %v4033 = vpop.f32.mrf.mxu0
  %4034 = vdwg.mxu0
  %4035 = vmatpush.bf16.msra.mxu0 %v3814
  %4036 = vmatpush.bf16.msra.mxu0 %v3812
  %4037 = vmatpush.bf16.msra.mxu0 %v3810
  %4038 = vmatpush.bf16.msra.mxu0 %v3808
  %4039 = vmatpush.bf16.msra.mxu0 %v3806
  %4040 = vmatpush.bf16.msra.mxu0 %v3804
  %4041 = vmatpush.bf16.msra.mxu0 %v3802
  %4042 = vmatpush.bf16.msra.mxu0 %v3800
  %4043 = vmatmul.bf16.gmra.mxu0 %v3295
  %v4044 = vpop.f32.mrf.mxu0
  %v4045 = vadd.f32 %v4032, %v4044
  %v4046 = vpop.f32.mrf.mxu0
  %4047 = vdwg.mxu0
  %4048 = vmatpush.bf16.msra.mxu0 %v3703
  %4049 = vmatpush.bf16.msra.mxu0 %v3701
  %4050 = vmatpush.bf16.msra.mxu0 %v3699
  %4051 = vmatpush.bf16.msra.mxu0 %v3697
  %4052 = vmatpush.bf16.msra.mxu0 %v3695
  %4053 = vmatpush.bf16.msra.mxu0 %v3693
  %4054 = vmatpush.bf16.msra.mxu0 %v3691
  %4055 = vmatpush.bf16.msra.mxu0 %v3689
  %4056 = vmatmul.bf16.gmra.mxu0 %v3288
  %v4057 = vpop.f32.mrf.mxu0
  %v4058 = vadd.f32 0.0, %v4057
  %v4059 = vpop.f32.mrf.mxu0
  %4060 = vdwg.mxu0
  %4061 = vmatpush.bf16.msra.mxu0 %v3719
  %4062 = vmatpush.bf16.msra.mxu0 %v3717
  %4063 = vmatpush.bf16.msra.mxu0 %v3715
  %4064 = vmatpush.bf16.msra.mxu0 %v3713
  %4065 = vmatpush.bf16.msra.mxu0 %v3711
  %4066 = vmatpush.bf16.msra.mxu0 %v3709
  %4067 = vmatpush.bf16.msra.mxu0 %v3707
  %4068 = vmatpush.bf16.msra.mxu0 %v3705
  %4069 = vmatmul.bf16.gmra.mxu0 %v3289
  %v4070 = vpop.f32.mrf.mxu0
  %v4071 = vadd.f32 %v4058, %v4070
  %v4072 = vpop.f32.mrf.mxu0
  %4073 = vdwg.mxu0
  %4074 = vmatpush.bf16.msra.mxu0 %v3735
  %4075 = vmatpush.bf16.msra.mxu0 %v3733
  %4076 = vmatpush.bf16.msra.mxu0 %v3731
  %4077 = vmatpush.bf16.msra.mxu0 %v3729
  %4078 = vmatpush.bf16.msra.mxu0 %v3727
  %4079 = vmatpush.bf16.msra.mxu0 %v3725
  %4080 = vmatpush.bf16.msra.mxu0 %v3723
  %4081 = vmatpush.bf16.msra.mxu0 %v3721
  %4082 = vmatmul.bf16.gmra.mxu0 %v3290
  %v4083 = vpop.f32.mrf.mxu0
  %v4084 = vadd.f32 %v4071, %v4083
  %v4085 = vpop.f32.mrf.mxu0
  %4086 = vdwg.mxu0
  %4087 = vmatpush.bf16.msra.mxu0 %v3751
  %4088 = vmatpush.bf16.msra.mxu0 %v3749
  %4089 = vmatpush.bf16.msra.mxu0 %v3747
  %4090 = vmatpush.bf16.msra.mxu0 %v3745
  %4091 = vmatpush.bf16.msra.mxu0 %v3743
  %4092 = vmatpush.bf16.msra.mxu0 %v3741
  %4093 = vmatpush.bf16.msra.mxu0 %v3739
  %4094 = vmatpush.bf16.msra.mxu0 %v3737
  %4095 = vmatmul.bf16.gmra.mxu0 %v3291
  %v4096 = vpop.f32.mrf.mxu0
  %v4097 = vadd.f32 %v4084, %v4096
  %v4098 = vpop.f32.mrf.mxu0
  %4099 = vdwg.mxu0
  %4100 = vmatpush.bf16.msra.mxu0 %v3767
  %4101 = vmatpush.bf16.msra.mxu0 %v3765
  %4102 = vmatpush.bf16.msra.mxu0 %v3763
  %4103 = vmatpush.bf16.msra.mxu0 %v3761
  %4104 = vmatpush.bf16.msra.mxu0 %v3759
  %4105 = vmatpush.bf16.msra.mxu0 %v3757
  %4106 = vmatpush.bf16.msra.mxu0 %v3755
  %4107 = vmatpush.bf16.msra.mxu0 %v3753
  %4108 = vmatmul.bf16.gmra.mxu0 %v3292
  %v4109 = vpop.f32.mrf.mxu0
  %v4110 = vadd.f32 %v4097, %v4109
  %v4111 = vpop.f32.mrf.mxu0
  %4112 = vdwg.mxu0
  %4113 = vmatpush.bf16.msra.mxu0 %v3783
  %4114 = vmatpush.bf16.msra.mxu0 %v3781
  %4115 = vmatpush.bf16.msra.mxu0 %v3779
  %4116 = vmatpush.bf16.msra.mxu0 %v3777
  %4117 = vmatpush.bf16.msra.mxu0 %v3775
  %4118 = vmatpush.bf16.msra.mxu0 %v3773
  %4119 = vmatpush.bf16.msra.mxu0 %v3771
  %4120 = vmatpush.bf16.msra.mxu0 %v3769
  %4121 = vmatmul.bf16.gmra.mxu0 %v3293
  %v4122 = vpop.f32.mrf.mxu0
  %v4123 = vadd.f32 %v4110, %v4122
  %v4124 = vpop.f32.mrf.mxu0
  %4125 = vdwg.mxu0
  %4126 = vmatpush.bf16.msra.mxu0 %v3799
  %4127 = vmatpush.bf16.msra.mxu0 %v3797
  %4128 = vmatpush.bf16.msra.mxu0 %v3795
  %4129 = vmatpush.bf16.msra.mxu0 %v3793
  %4130 = vmatpush.bf16.msra.mxu0 %v3791
  %4131 = vmatpush.bf16.msra.mxu0 %v3789
  %4132 = vmatpush.bf16.msra.mxu0 %v3787
  %4133 = vmatpush.bf16.msra.mxu0 %v3785
  %4134 = vmatmul.bf16.gmra.mxu0 %v3294
  %v4135 = vpop.f32.mrf.mxu0
  %v4136 = vadd.f32 %v4123, %v4135
  %v4137 = vpop.f32.mrf.mxu0
  %4138 = vdwg.mxu0
  %4139 = vmatpush.bf16.msra.mxu0 %v3815
  %4140 = vmatpush.bf16.msra.mxu0 %v3813
  %4141 = vmatpush.bf16.msra.mxu0 %v3811
  %4142 = vmatpush.bf16.msra.mxu0 %v3809
  %4143 = vmatpush.bf16.msra.mxu0 %v3807
  %4144 = vmatpush.bf16.msra.mxu0 %v3805
  %4145 = vmatpush.bf16.msra.mxu0 %v3803
  %4146 = vmatpush.bf16.msra.mxu0 %v3801
  %4147 = vmatmul.bf16.gmra.mxu0 %v3295
  %v4148 = vpop.f32.mrf.mxu0
  %v4149 = vadd.f32 %v4136, %v4148
  %v4150 = vpop.f32.mrf.mxu0
  %4151 = vdwg.mxu0
  %v4154 = vunpack.c.l.b16 %v3144
  %v4155 = vunpack.c.h.b16 %v3144
  %v4156 = vunpack.c.l.b16 %v3145
  %v4157 = vunpack.c.h.b16 %v3145
  %v4158 = vpack.c.b16 %v4154, %v4154
  %v4159 = vpack.c.b16 %v4155, %v4155
  %v4160 = vpack.c.b16 %v4156, %v4156
  %v4161 = vpack.c.b16 %v4157, %v4157
  %4166 = vmatpush.bf16.msra.mxu0 %v3702
  %4167 = vmatpush.bf16.msra.mxu0 %v3700
  %4168 = vmatpush.bf16.msra.mxu0 %v3698
  %4169 = vmatpush.bf16.msra.mxu0 %v3696
  %4170 = vmatpush.bf16.msra.mxu0 %v3694
  %4171 = vmatpush.bf16.msra.mxu0 %v3692
  %4172 = vmatpush.bf16.msra.mxu0 %v3690
  %4173 = vmatpush.bf16.msra.mxu0 %v3688
  %4174 = vmatmul.bf16.gmra.mxu0 %v3292
  %v4175 = vpop.f32.mrf.mxu0
  %v4176 = vadd.f32 0.0, %v4175
  %v4177 = vpop.f32.mrf.mxu0
  %4178 = vdwg.mxu0
  %4179 = vmatpush.bf16.msra.mxu0 %v3718
  %4180 = vmatpush.bf16.msra.mxu0 %v3716
  %4181 = vmatpush.bf16.msra.mxu0 %v3714
  %4182 = vmatpush.bf16.msra.mxu0 %v3712
  %4183 = vmatpush.bf16.msra.mxu0 %v3710
  %4184 = vmatpush.bf16.msra.mxu0 %v3708
  %4185 = vmatpush.bf16.msra.mxu0 %v3706
  %4186 = vmatpush.bf16.msra.mxu0 %v3704
  %4187 = vmatmul.bf16.gmra.mxu0 %v3293
  %v4188 = vpop.f32.mrf.mxu0
  %v4189 = vadd.f32 %v4176, %v4188
  %v4190 = vpop.f32.mrf.mxu0
  %4191 = vdwg.mxu0
  %4192 = vmatpush.bf16.msra.mxu0 %v3734
  %4193 = vmatpush.bf16.msra.mxu0 %v3732
  %4194 = vmatpush.bf16.msra.mxu0 %v3730
  %4195 = vmatpush.bf16.msra.mxu0 %v3728
  %4196 = vmatpush.bf16.msra.mxu0 %v3726
  %4197 = vmatpush.bf16.msra.mxu0 %v3724
  %4198 = vmatpush.bf16.msra.mxu0 %v3722
  %4199 = vmatpush.bf16.msra.mxu0 %v3720
  %4200 = vmatmul.bf16.gmra.mxu0 %v3294
  %v4201 = vpop.f32.mrf.mxu0
  %v4202 = vadd.f32 %v4189, %v4201
  %v4203 = vpop.f32.mrf.mxu0
  %4204 = vdwg.mxu0
  %4205 = vmatpush.bf16.msra.mxu0 %v3750
  %4206 = vmatpush.bf16.msra.mxu0 %v3748
  %4207 = vmatpush.bf16.msra.mxu0 %v3746
  %4208 = vmatpush.bf16.msra.mxu0 %v3744
  %4209 = vmatpush.bf16.msra.mxu0 %v3742
  %4210 = vmatpush.bf16.msra.mxu0 %v3740
  %4211 = vmatpush.bf16.msra.mxu0 %v3738
  %4212 = vmatpush.bf16.msra.mxu0 %v3736
  %4213 = vmatmul.bf16.gmra.mxu0 %v3295
  %v4214 = vpop.f32.mrf.mxu0
  %v4215 = vadd.f32 %v4202, %v4214
  %v4216 = vpop.f32.mrf.mxu0
  %4217 = vdwg.mxu0
  %4218 = vmatpush.bf16.msra.mxu0 %v3766
  %4219 = vmatpush.bf16.msra.mxu0 %v3764
  %4220 = vmatpush.bf16.msra.mxu0 %v3762
  %4221 = vmatpush.bf16.msra.mxu0 %v3760
  %4222 = vmatpush.bf16.msra.mxu0 %v3758
  %4223 = vmatpush.bf16.msra.mxu0 %v3756
  %4224 = vmatpush.bf16.msra.mxu0 %v3754
  %4225 = vmatpush.bf16.msra.mxu0 %v3752
  %4226 = vmatmul.bf16.gmra.mxu0 %v4158
  %v4227 = vpop.f32.mrf.mxu0
  %v4228 = vadd.f32 %v4215, %v4227
  %v4229 = vpop.f32.mrf.mxu0
  %4230 = vdwg.mxu0
  %4231 = vmatpush.bf16.msra.mxu0 %v3782
  %4232 = vmatpush.bf16.msra.mxu0 %v3780
  %4233 = vmatpush.bf16.msra.mxu0 %v3778
  %4234 = vmatpush.bf16.msra.mxu0 %v3776
  %4235 = vmatpush.bf16.msra.mxu0 %v3774
  %4236 = vmatpush.bf16.msra.mxu0 %v3772
  %4237 = vmatpush.bf16.msra.mxu0 %v3770
  %4238 = vmatpush.bf16.msra.mxu0 %v3768
  %4239 = vmatmul.bf16.gmra.mxu0 %v4159
  %v4240 = vpop.f32.mrf.mxu0
  %v4241 = vadd.f32 %v4228, %v4240
  %v4242 = vpop.f32.mrf.mxu0
  %4243 = vdwg.mxu0
  %4244 = vmatpush.bf16.msra.mxu0 %v3798
  %4245 = vmatpush.bf16.msra.mxu0 %v3796
  %4246 = vmatpush.bf16.msra.mxu0 %v3794
  %4247 = vmatpush.bf16.msra.mxu0 %v3792
  %4248 = vmatpush.bf16.msra.mxu0 %v3790
  %4249 = vmatpush.bf16.msra.mxu0 %v3788
  %4250 = vmatpush.bf16.msra.mxu0 %v3786
  %4251 = vmatpush.bf16.msra.mxu0 %v3784
  %4252 = vmatmul.bf16.gmra.mxu0 %v4160
  %v4253 = vpop.f32.mrf.mxu0
  %v4254 = vadd.f32 %v4241, %v4253
  %v4255 = vpop.f32.mrf.mxu0
  %4256 = vdwg.mxu0
  %4257 = vmatpush.bf16.msra.mxu0 %v3814
  %4258 = vmatpush.bf16.msra.mxu0 %v3812
  %4259 = vmatpush.bf16.msra.mxu0 %v3810
  %4260 = vmatpush.bf16.msra.mxu0 %v3808
  %4261 = vmatpush.bf16.msra.mxu0 %v3806
  %4262 = vmatpush.bf16.msra.mxu0 %v3804
  %4263 = vmatpush.bf16.msra.mxu0 %v3802
  %4264 = vmatpush.bf16.msra.mxu0 %v3800
  %4265 = vmatmul.bf16.gmra.mxu0 %v4161
  %v4266 = vpop.f32.mrf.mxu0
  %v4267 = vadd.f32 %v4254, %v4266
  %v4268 = vpop.f32.mrf.mxu0
  %4269 = vdwg.mxu0
  %4270 = vmatpush.bf16.msra.mxu0 %v3703
  %4271 = vmatpush.bf16.msra.mxu0 %v3701
  %4272 = vmatpush.bf16.msra.mxu0 %v3699
  %4273 = vmatpush.bf16.msra.mxu0 %v3697
  %4274 = vmatpush.bf16.msra.mxu0 %v3695
  %4275 = vmatpush.bf16.msra.mxu0 %v3693
  %4276 = vmatpush.bf16.msra.mxu0 %v3691
  %4277 = vmatpush.bf16.msra.mxu0 %v3689
  %4278 = vmatmul.bf16.gmra.mxu0 %v3292
  %v4279 = vpop.f32.mrf.mxu0
  %v4280 = vadd.f32 0.0, %v4279
  %v4281 = vpop.f32.mrf.mxu0
  %4282 = vdwg.mxu0
  %4283 = vmatpush.bf16.msra.mxu0 %v3719
  %4284 = vmatpush.bf16.msra.mxu0 %v3717
  %4285 = vmatpush.bf16.msra.mxu0 %v3715
  %4286 = vmatpush.bf16.msra.mxu0 %v3713
  %4287 = vmatpush.bf16.msra.mxu0 %v3711
  %4288 = vmatpush.bf16.msra.mxu0 %v3709
  %4289 = vmatpush.bf16.msra.mxu0 %v3707
  %4290 = vmatpush.bf16.msra.mxu0 %v3705
  %4291 = vmatmul.bf16.gmra.mxu0 %v3293
  %v4292 = vpop.f32.mrf.mxu0
  %v4293 = vadd.f32 %v4280, %v4292
  %v4294 = vpop.f32.mrf.mxu0
  %4295 = vdwg.mxu0
  %4296 = vmatpush.bf16.msra.mxu0 %v3735
  %4297 = vmatpush.bf16.msra.mxu0 %v3733
  %4298 = vmatpush.bf16.msra.mxu0 %v3731
  %4299 = vmatpush.bf16.msra.mxu0 %v3729
  %4300 = vmatpush.bf16.msra.mxu0 %v3727
  %4301 = vmatpush.bf16.msra.mxu0 %v3725
  %4302 = vmatpush.bf16.msra.mxu0 %v3723
  %4303 = vmatpush.bf16.msra.mxu0 %v3721
  %4304 = vmatmul.bf16.gmra.mxu0 %v3294
  %v4305 = vpop.f32.mrf.mxu0
  %v4306 = vadd.f32 %v4293, %v4305
  %v4307 = vpop.f32.mrf.mxu0
  %4308 = vdwg.mxu0
  %4309 = vmatpush.bf16.msra.mxu0 %v3751
  %4310 = vmatpush.bf16.msra.mxu0 %v3749
  %4311 = vmatpush.bf16.msra.mxu0 %v3747
  %4312 = vmatpush.bf16.msra.mxu0 %v3745
  %4313 = vmatpush.bf16.msra.mxu0 %v3743
  %4314 = vmatpush.bf16.msra.mxu0 %v3741
  %4315 = vmatpush.bf16.msra.mxu0 %v3739
  %4316 = vmatpush.bf16.msra.mxu0 %v3737
  %4317 = vmatmul.bf16.gmra.mxu0 %v3295
  %v4318 = vpop.f32.mrf.mxu0
  %v4319 = vadd.f32 %v4306, %v4318
  %v4320 = vpop.f32.mrf.mxu0
  %4321 = vdwg.mxu0
  %4322 = vmatpush.bf16.msra.mxu0 %v3767
  %4323 = vmatpush.bf16.msra.mxu0 %v3765
  %4324 = vmatpush.bf16.msra.mxu0 %v3763
  %4325 = vmatpush.bf16.msra.mxu0 %v3761
  %4326 = vmatpush.bf16.msra.mxu0 %v3759
  %4327 = vmatpush.bf16.msra.mxu0 %v3757
  %4328 = vmatpush.bf16.msra.mxu0 %v3755
  %4329 = vmatpush.bf16.msra.mxu0 %v3753
  %4330 = vmatmul.bf16.gmra.mxu0 %v4158
  %v4331 = vpop.f32.mrf.mxu0
  %v4332 = vadd.f32 %v4319, %v4331
  %v4333 = vpop.f32.mrf.mxu0
  %4334 = vdwg.mxu0
  %4335 = vmatpush.bf16.msra.mxu0 %v3783
  %4336 = vmatpush.bf16.msra.mxu0 %v3781
  %4337 = vmatpush.bf16.msra.mxu0 %v3779
  %4338 = vmatpush.bf16.msra.mxu0 %v3777
  %4339 = vmatpush.bf16.msra.mxu0 %v3775
  %4340 = vmatpush.bf16.msra.mxu0 %v3773
  %4341 = vmatpush.bf16.msra.mxu0 %v3771
  %4342 = vmatpush.bf16.msra.mxu0 %v3769
  %4343 = vmatmul.bf16.gmra.mxu0 %v4159
  %v4344 = vpop.f32.mrf.mxu0
  %v4345 = vadd.f32 %v4332, %v4344
  %v4346 = vpop.f32.mrf.mxu0
  %4347 = vdwg.mxu0
  %4348 = vmatpush.bf16.msra.mxu0 %v3799
  %4349 = vmatpush.bf16.msra.mxu0 %v3797
  %4350 = vmatpush.bf16.msra.mxu0 %v3795
  %4351 = vmatpush.bf16.msra.mxu0 %v3793
  %4352 = vmatpush.bf16.msra.mxu0 %v3791
  %4353 = vmatpush.bf16.msra.mxu0 %v3789
  %4354 = vmatpush.bf16.msra.mxu0 %v3787
  %4355 = vmatpush.bf16.msra.mxu0 %v3785
  %4356 = vmatmul.bf16.gmra.mxu0 %v4160
  %v4357 = vpop.f32.mrf.mxu0
  %v4358 = vadd.f32 %v4345, %v4357
  %v4359 = vpop.f32.mrf.mxu0
  %4360 = vdwg.mxu0
  %4361 = vmatpush.bf16.msra.mxu0 %v3815
  %4362 = vmatpush.bf16.msra.mxu0 %v3813
  %4363 = vmatpush.bf16.msra.mxu0 %v3811
  %4364 = vmatpush.bf16.msra.mxu0 %v3809
  %4365 = vmatpush.bf16.msra.mxu0 %v3807
  %4366 = vmatpush.bf16.msra.mxu0 %v3805
  %4367 = vmatpush.bf16.msra.mxu0 %v3803
  %4368 = vmatpush.bf16.msra.mxu0 %v3801
  %4369 = vmatmul.bf16.gmra.mxu0 %v4161
  %v4370 = vpop.f32.mrf.mxu0
  %v4371 = vadd.f32 %v4358, %v4370
  %v4372 = vpop.f32.mrf.mxu0
  %4373 = vdwg.mxu0
  %v4376 = vunpack.c.l.b16 %v3146
  %v4377 = vunpack.c.h.b16 %v3146
  %v4378 = vunpack.c.l.b16 %v3147
  %v4379 = vunpack.c.h.b16 %v3147
  %v4380 = vpack.c.b16 %v4376, %v4376
  %v4381 = vpack.c.b16 %v4377, %v4377
  %v4382 = vpack.c.b16 %v4378, %v4378
  %v4383 = vpack.c.b16 %v4379, %v4379
  %4388 = vmatpush.bf16.msra.mxu0 %v3702
  %4389 = vmatpush.bf16.msra.mxu0 %v3700
  %4390 = vmatpush.bf16.msra.mxu0 %v3698
  %4391 = vmatpush.bf16.msra.mxu0 %v3696
  %4392 = vmatpush.bf16.msra.mxu0 %v3694
  %4393 = vmatpush.bf16.msra.mxu0 %v3692
  %4394 = vmatpush.bf16.msra.mxu0 %v3690
  %4395 = vmatpush.bf16.msra.mxu0 %v3688
  %4396 = vmatmul.bf16.gmra.mxu0 %v4158
  %v4397 = vpop.f32.mrf.mxu0
  %v4398 = vadd.f32 0.0, %v4397
  %v4399 = vpop.f32.mrf.mxu0
  %4400 = vdwg.mxu0
  %4401 = vmatpush.bf16.msra.mxu0 %v3718
  %4402 = vmatpush.bf16.msra.mxu0 %v3716
  %4403 = vmatpush.bf16.msra.mxu0 %v3714
  %4404 = vmatpush.bf16.msra.mxu0 %v3712
  %4405 = vmatpush.bf16.msra.mxu0 %v3710
  %4406 = vmatpush.bf16.msra.mxu0 %v3708
  %4407 = vmatpush.bf16.msra.mxu0 %v3706
  %4408 = vmatpush.bf16.msra.mxu0 %v3704
  %4409 = vmatmul.bf16.gmra.mxu0 %v4159
  %v4410 = vpop.f32.mrf.mxu0
  %v4411 = vadd.f32 %v4398, %v4410
  %v4412 = vpop.f32.mrf.mxu0
  %4413 = vdwg.mxu0
  %4414 = vmatpush.bf16.msra.mxu0 %v3734
  %4415 = vmatpush.bf16.msra.mxu0 %v3732
  %4416 = vmatpush.bf16.msra.mxu0 %v3730
  %4417 = vmatpush.bf16.msra.mxu0 %v3728
  %4418 = vmatpush.bf16.msra.mxu0 %v3726
  %4419 = vmatpush.bf16.msra.mxu0 %v3724
  %4420 = vmatpush.bf16.msra.mxu0 %v3722
  %4421 = vmatpush.bf16.msra.mxu0 %v3720
  %4422 = vmatmul.bf16.gmra.mxu0 %v4160
  %v4423 = vpop.f32.mrf.mxu0
  %v4424 = vadd.f32 %v4411, %v4423
  %v4425 = vpop.f32.mrf.mxu0
  %4426 = vdwg.mxu0
  %4427 = vmatpush.bf16.msra.mxu0 %v3750
  %4428 = vmatpush.bf16.msra.mxu0 %v3748
  %4429 = vmatpush.bf16.msra.mxu0 %v3746
  %4430 = vmatpush.bf16.msra.mxu0 %v3744
  %4431 = vmatpush.bf16.msra.mxu0 %v3742
  %4432 = vmatpush.bf16.msra.mxu0 %v3740
  %4433 = vmatpush.bf16.msra.mxu0 %v3738
  %4434 = vmatpush.bf16.msra.mxu0 %v3736
  %4435 = vmatmul.bf16.gmra.mxu0 %v4161
  %v4436 = vpop.f32.mrf.mxu0
  %v4437 = vadd.f32 %v4424, %v4436
  %v4438 = vpop.f32.mrf.mxu0
  %4439 = vdwg.mxu0
  %4440 = vmatpush.bf16.msra.mxu0 %v3766
  %4441 = vmatpush.bf16.msra.mxu0 %v3764
  %4442 = vmatpush.bf16.msra.mxu0 %v3762
  %4443 = vmatpush.bf16.msra.mxu0 %v3760
  %4444 = vmatpush.bf16.msra.mxu0 %v3758
  %4445 = vmatpush.bf16.msra.mxu0 %v3756
  %4446 = vmatpush.bf16.msra.mxu0 %v3754
  %4447 = vmatpush.bf16.msra.mxu0 %v3752
  %4448 = vmatmul.bf16.gmra.mxu0 %v4380
  %v4449 = vpop.f32.mrf.mxu0
  %v4450 = vadd.f32 %v4437, %v4449
  %v4451 = vpop.f32.mrf.mxu0
  %4452 = vdwg.mxu0
  %4453 = vmatpush.bf16.msra.mxu0 %v3782
  %4454 = vmatpush.bf16.msra.mxu0 %v3780
  %4455 = vmatpush.bf16.msra.mxu0 %v3778
  %4456 = vmatpush.bf16.msra.mxu0 %v3776
  %4457 = vmatpush.bf16.msra.mxu0 %v3774
  %4458 = vmatpush.bf16.msra.mxu0 %v3772
  %4459 = vmatpush.bf16.msra.mxu0 %v3770
  %4460 = vmatpush.bf16.msra.mxu0 %v3768
  %4461 = vmatmul.bf16.gmra.mxu0 %v4381
  %v4462 = vpop.f32.mrf.mxu0
  %v4463 = vadd.f32 %v4450, %v4462
  %v4464 = vpop.f32.mrf.mxu0
  %4465 = vdwg.mxu0
  %4466 = vmatpush.bf16.msra.mxu0 %v3798
  %4467 = vmatpush.bf16.msra.mxu0 %v3796
  %4468 = vmatpush.bf16.msra.mxu0 %v3794
  %4469 = vmatpush.bf16.msra.mxu0 %v3792
  %4470 = vmatpush.bf16.msra.mxu0 %v3790
  %4471 = vmatpush.bf16.msra.mxu0 %v3788
  %4472 = vmatpush.bf16.msra.mxu0 %v3786
  %4473 = vmatpush.bf16.msra.mxu0 %v3784
  %4474 = vmatmul.bf16.gmra.mxu0 %v4382
  %v4475 = vpop.f32.mrf.mxu0
  %v4476 = vadd.f32 %v4463, %v4475
  %v4477 = vpop.f32.mrf.mxu0
  %4478 = vdwg.mxu0
  %4479 = vmatpush.bf16.msra.mxu0 %v3814
  %4480 = vmatpush.bf16.msra.mxu0 %v3812
  %4481 = vmatpush.bf16.msra.mxu0 %v3810
  %4482 = vmatpush.bf16.msra.mxu0 %v3808
  %4483 = vmatpush.bf16.msra.mxu0 %v3806
  %4484 = vmatpush.bf16.msra.mxu0 %v3804
  %4485 = vmatpush.bf16.msra.mxu0 %v3802
  %4486 = vmatpush.bf16.msra.mxu0 %v3800
  %4487 = vmatmul.bf16.gmra.mxu0 %v4383
  %v4488 = vpop.f32.mrf.mxu0
  %v4489 = vadd.f32 %v4476, %v4488
  %v4490 = vpop.f32.mrf.mxu0
  %4491 = vdwg.mxu0
  %4492 = vmatpush.bf16.msra.mxu0 %v3703
  %4493 = vmatpush.bf16.msra.mxu0 %v3701
  %4494 = vmatpush.bf16.msra.mxu0 %v3699
  %4495 = vmatpush.bf16.msra.mxu0 %v3697
  %4496 = vmatpush.bf16.msra.mxu0 %v3695
  %4497 = vmatpush.bf16.msra.mxu0 %v3693
  %4498 = vmatpush.bf16.msra.mxu0 %v3691
  %4499 = vmatpush.bf16.msra.mxu0 %v3689
  %4500 = vmatmul.bf16.gmra.mxu0 %v4158
  %v4501 = vpop.f32.mrf.mxu0
  %v4502 = vadd.f32 0.0, %v4501
  %v4503 = vpop.f32.mrf.mxu0
  %4504 = vdwg.mxu0
  %4505 = vmatpush.bf16.msra.mxu0 %v3719
  %4506 = vmatpush.bf16.msra.mxu0 %v3717
  %4507 = vmatpush.bf16.msra.mxu0 %v3715
  %4508 = vmatpush.bf16.msra.mxu0 %v3713
  %4509 = vmatpush.bf16.msra.mxu0 %v3711
  %4510 = vmatpush.bf16.msra.mxu0 %v3709
  %4511 = vmatpush.bf16.msra.mxu0 %v3707
  %4512 = vmatpush.bf16.msra.mxu0 %v3705
  %4513 = vmatmul.bf16.gmra.mxu0 %v4159
  %v4514 = vpop.f32.mrf.mxu0
  %v4515 = vadd.f32 %v4502, %v4514
  %v4516 = vpop.f32.mrf.mxu0
  %4517 = vdwg.mxu0
  %4518 = vmatpush.bf16.msra.mxu0 %v3735
  %4519 = vmatpush.bf16.msra.mxu0 %v3733
  %4520 = vmatpush.bf16.msra.mxu0 %v3731
  %4521 = vmatpush.bf16.msra.mxu0 %v3729
  %4522 = vmatpush.bf16.msra.mxu0 %v3727
  %4523 = vmatpush.bf16.msra.mxu0 %v3725
  %4524 = vmatpush.bf16.msra.mxu0 %v3723
  %4525 = vmatpush.bf16.msra.mxu0 %v3721
  %4526 = vmatmul.bf16.gmra.mxu0 %v4160
  %v4527 = vpop.f32.mrf.mxu0
  %v4528 = vadd.f32 %v4515, %v4527
  %v4529 = vpop.f32.mrf.mxu0
  %4530 = vdwg.mxu0
  %4531 = vmatpush.bf16.msra.mxu0 %v3751
  %4532 = vmatpush.bf16.msra.mxu0 %v3749
  %4533 = vmatpush.bf16.msra.mxu0 %v3747
  %4534 = vmatpush.bf16.msra.mxu0 %v3745
  %4535 = vmatpush.bf16.msra.mxu0 %v3743
  %4536 = vmatpush.bf16.msra.mxu0 %v3741
  %4537 = vmatpush.bf16.msra.mxu0 %v3739
  %4538 = vmatpush.bf16.msra.mxu0 %v3737
  %4539 = vmatmul.bf16.gmra.mxu0 %v4161
  %v4540 = vpop.f32.mrf.mxu0
  %v4541 = vadd.f32 %v4528, %v4540
  %v4542 = vpop.f32.mrf.mxu0
  %4543 = vdwg.mxu0
  %4544 = vmatpush.bf16.msra.mxu0 %v3767
  %4545 = vmatpush.bf16.msra.mxu0 %v3765
  %4546 = vmatpush.bf16.msra.mxu0 %v3763
  %4547 = vmatpush.bf16.msra.mxu0 %v3761
  %4548 = vmatpush.bf16.msra.mxu0 %v3759
  %4549 = vmatpush.bf16.msra.mxu0 %v3757
  %4550 = vmatpush.bf16.msra.mxu0 %v3755
  %4551 = vmatpush.bf16.msra.mxu0 %v3753
  %4552 = vmatmul.bf16.gmra.mxu0 %v4380
  %v4553 = vpop.f32.mrf.mxu0
  %v4554 = vadd.f32 %v4541, %v4553
  %v4555 = vpop.f32.mrf.mxu0
  %4556 = vdwg.mxu0
  %4557 = vmatpush.bf16.msra.mxu0 %v3783
  %4558 = vmatpush.bf16.msra.mxu0 %v3781
  %4559 = vmatpush.bf16.msra.mxu0 %v3779
  %4560 = vmatpush.bf16.msra.mxu0 %v3777
  %4561 = vmatpush.bf16.msra.mxu0 %v3775
  %4562 = vmatpush.bf16.msra.mxu0 %v3773
  %4563 = vmatpush.bf16.msra.mxu0 %v3771
  %4564 = vmatpush.bf16.msra.mxu0 %v3769
  %4565 = vmatmul.bf16.gmra.mxu0 %v4381
  %v4566 = vpop.f32.mrf.mxu0
  %v4567 = vadd.f32 %v4554, %v4566
  %v4568 = vpop.f32.mrf.mxu0
  %4569 = vdwg.mxu0
  %4570 = vmatpush.bf16.msra.mxu0 %v3799
  %4571 = vmatpush.bf16.msra.mxu0 %v3797
  %4572 = vmatpush.bf16.msra.mxu0 %v3795
  %4573 = vmatpush.bf16.msra.mxu0 %v3793
  %4574 = vmatpush.bf16.msra.mxu0 %v3791
  %4575 = vmatpush.bf16.msra.mxu0 %v3789
  %4576 = vmatpush.bf16.msra.mxu0 %v3787
  %4577 = vmatpush.bf16.msra.mxu0 %v3785
  %4578 = vmatmul.bf16.gmra.mxu0 %v4382
  %v4579 = vpop.f32.mrf.mxu0
  %v4580 = vadd.f32 %v4567, %v4579
  %v4581 = vpop.f32.mrf.mxu0
  %4582 = vdwg.mxu0
  %4583 = vmatpush.bf16.msra.mxu0 %v3815
  %4584 = vmatpush.bf16.msra.mxu0 %v3813
  %4585 = vmatpush.bf16.msra.mxu0 %v3811
  %4586 = vmatpush.bf16.msra.mxu0 %v3809
  %4587 = vmatpush.bf16.msra.mxu0 %v3807
  %4588 = vmatpush.bf16.msra.mxu0 %v3805
  %4589 = vmatpush.bf16.msra.mxu0 %v3803
  %4590 = vmatpush.bf16.msra.mxu0 %v3801
  %4591 = vmatmul.bf16.gmra.mxu0 %v4383
  %v4592 = vpop.f32.mrf.mxu0
  %v4593 = vadd.f32 %v4580, %v4592
  %v4594 = vpop.f32.mrf.mxu0
  %4595 = vdwg.mxu0
  %4598 = vrot.lane.b32.xlu0 %v4267, 64
  %v4599 = vpop.permute.xlu0 %4598
  %4600 = vrot.lane.b32.xlu0 %v4371, 64
  %v4601 = vpop.permute.xlu0 %4600
  %vm4602 = vcmask 523264
  %v4603 = vsel %vm4602, %v4599, %v4601
  %v4606 = vsel %vm4602, %v4149, %v4599
  %v4607 = vld [vmem:[%s6] sm:$0x1f]
  %v4609 = vperm.slane %v4607, 0
  %v4610 = vperm.slane %v4607, 1
  %v4611 = vperm.slane %v4607, 2
  %v4612 = vperm.slane %v4607, 3
  %v4613 = vperm.slane %v4607, 4
  %v4619 = vadd.f32 %v4045, %v4609
  %v4620 = vadd.f32 %v4606, %v4610
  %v4621 = vadd.f32 %v4603, %v4611
  %v4622 = vadd.f32 %v4489, %v4612
  %v4623 = vadd.f32 %v4593, %v4613
  %v4624 = vmax.f32 %v4619, 0.0
  %v4625 = vmax.f32 %v4620, 0.0
  %v4626 = vmax.f32 %v4621, 0.0
  %v4627 = vmax.f32 %v4622, 0.0
  %v4628 = vmax.f32 %v4623, 0.0
  %v4629 = vpack.c.bf16 %v4624, %v4624
  %v4630 = vpack.c.bf16 %v4625, %v4625
  %v4631 = vpack.c.bf16 %v4626, %v4626
  %v4632 = vpack.c.bf16 %v4627, %v4627
  %v4633 = vpack.c.bf16 %v4628, %v4628
  %v4634 = vld [vmem:[%s3] sm:$0xf]
  %v4635 = vld [vmem:[%s3 + $0x4] sm:$0xf]
  %v4636 = vld [vmem:[%s3 + $0x8] sm:$0xf]
  %v4637 = vld [vmem:[%s3 + $0xc] sm:$0xf]
  %v4638 = vld [vmem:[%s3 + $0x10] sm:$0xf]
  %v4639 = vld [vmem:[%s3 + $0x14] sm:$0xf]
  %v4640 = vld [vmem:[%s3 + $0x18] sm:$0xf]
  %v4641 = vld [vmem:[%s3 + $0x1c] sm:$0xf]
  %v4642 = vld [vmem:[%s3 + $0x20] sm:$0xf]
  %v4643 = vld [vmem:[%s3 + $0x24] sm:$0xf]
  %v4644 = vld [vmem:[%s3 + $0x28] sm:$0xf]
  %v4645 = vld [vmem:[%s3 + $0x2c] sm:$0xf]
  %v4646 = vld [vmem:[%s3 + $0x30] sm:$0xf]
  %v4647 = vld [vmem:[%s3 + $0x34] sm:$0xf]
  %v4648 = vld [vmem:[%s3 + $0x38] sm:$0xf]
  %v4649 = vld [vmem:[%s3 + $0x3c] sm:$0xf]
  %v4650 = vld [vmem:[%s3 + $0x40] sm:$0xf]
  %v4651 = vld [vmem:[%s3 + $0x44] sm:$0xf]
  %v4652 = vld [vmem:[%s3 + $0x48] sm:$0xf]
  %v4653 = vld [vmem:[%s3 + $0x4c] sm:$0xf]
  %v4654 = vld [vmem:[%s3 + $0x50] sm:$0xf]
  %v4655 = vld [vmem:[%s3 + $0x54] sm:$0xf]
  %v4656 = vld [vmem:[%s3 + $0x58] sm:$0xf]
  %v4657 = vld [vmem:[%s3 + $0x5c] sm:$0xf]
  %v4658 = vld [vmem:[%s3 + $0x60] sm:$0xf]
  %v4659 = vld [vmem:[%s3 + $0x64] sm:$0xf]
  %v4660 = vld [vmem:[%s3 + $0x68] sm:$0xf]
  %v4661 = vld [vmem:[%s3 + $0x6c] sm:$0xf]
  %v4662 = vld [vmem:[%s3 + $0x70] sm:$0xf]
  %v4663 = vld [vmem:[%s3 + $0x74] sm:$0xf]
  %v4664 = vld [vmem:[%s3 + $0x78] sm:$0xf]
  %v4665 = vld [vmem:[%s3 + $0x7c] sm:$0xf]
  %v4666 = vld [vmem:[%s3 + $0x80] sm:$0xf]
  %v4667 = vld [vmem:[%s3 + $0x84] sm:$0xf]
  %v4668 = vld [vmem:[%s3 + $0x88] sm:$0xf]
  %v4669 = vld [vmem:[%s3 + $0x8c] sm:$0xf]
  %v4670 = vld [vmem:[%s3 + $0x90] sm:$0xf]
  %v4671 = vld [vmem:[%s3 + $0x94] sm:$0xf]
  %v4672 = vld [vmem:[%s3 + $0x98] sm:$0xf]
  %v4673 = vld [vmem:[%s3 + $0x9c] sm:$0xf]
  %v4674 = vld [vmem:[%s3 + $0xa0] sm:$0xf]
  %v4675 = vld [vmem:[%s3 + $0xa4] sm:$0xf]
  %v4676 = vld [vmem:[%s3 + $0xa8] sm:$0xf]
  %v4677 = vld [vmem:[%s3 + $0xac] sm:$0xf]
  %v4678 = vld [vmem:[%s3 + $0xb0] sm:$0xf]
  %v4679 = vld [vmem:[%s3 + $0xb4] sm:$0xf]
  %v4680 = vld [vmem:[%s3 + $0xb8] sm:$0xf]
  %v4681 = vld [vmem:[%s3 + $0xbc] sm:$0xf]
  %v4682 = vld [vmem:[%s3 + $0xc0] sm:$0xf]
  %v4683 = vld [vmem:[%s3 + $0xc4] sm:$0xf]
  %v4684 = vld [vmem:[%s3 + $0xc8] sm:$0xf]
  %v4685 = vld [vmem:[%s3 + $0xcc] sm:$0xf]
  %v4686 = vld [vmem:[%s3 + $0xd0] sm:$0xf]
  %v4687 = vld [vmem:[%s3 + $0xd4] sm:$0xf]
  %v4688 = vld [vmem:[%s3 + $0xd8] sm:$0xf]
  %v4689 = vld [vmem:[%s3 + $0xdc] sm:$0xf]
  %v4690 = vld [vmem:[%s3 + $0xe0] sm:$0xf]
  %v4691 = vld [vmem:[%s3 + $0xe4] sm:$0xf]
  %v4692 = vld [vmem:[%s3 + $0xe8] sm:$0xf]
  %v4693 = vld [vmem:[%s3 + $0xec] sm:$0xf]
  %v4694 = vld [vmem:[%s3 + $0xf0] sm:$0xf]
  %v4695 = vld [vmem:[%s3 + $0xf4] sm:$0xf]
  %v4696 = vld [vmem:[%s3 + $0xf8] sm:$0xf]
  %v4697 = vld [vmem:[%s3 + $0xfc] sm:$0xf]
  %v4698 = vld [vmem:[%s3 + $0x100] sm:$0xf]
  %v4699 = vld [vmem:[%s3 + $0x104] sm:$0xf]
  %v4700 = vld [vmem:[%s3 + $0x108] sm:$0xf]
  %v4701 = vld [vmem:[%s3 + $0x10c] sm:$0xf]
  %v4702 = vld [vmem:[%s3 + $0x110] sm:$0xf]
  %v4703 = vld [vmem:[%s3 + $0x114] sm:$0xf]
  %v4704 = vld [vmem:[%s3 + $0x118] sm:$0xf]
  %v4705 = vld [vmem:[%s3 + $0x11c] sm:$0xf]
  %v4706 = vld [vmem:[%s7] sm:$0x1]
  %v4708 = vperm.slane %v4706, 0
  %v4782 = vunpack.c.l.b16 %v4634
  %v4783 = vunpack.c.l.b16 %v4635
  %v4784 = vunpack.c.l.b16 %v4636
  %v4785 = vunpack.c.l.b16 %v4637
  %v4786 = vunpack.c.l.b16 %v4638
  %v4787 = vunpack.c.l.b16 %v4639
  %v4788 = vunpack.c.l.b16 %v4640
  %v4789 = vunpack.c.l.b16 %v4641
  %v4790 = vunpack.c.l.b16 %v4642
  %v4791 = vunpack.c.l.b16 %v4643
  %v4792 = vunpack.c.l.b16 %v4644
  %v4793 = vunpack.c.l.b16 %v4645
  %v4794 = vunpack.c.l.b16 %v4646
  %v4795 = vunpack.c.l.b16 %v4647
  %v4796 = vunpack.c.l.b16 %v4648
  %v4797 = vunpack.c.l.b16 %v4649
  %v4798 = vunpack.c.l.b16 %v4650
  %v4799 = vunpack.c.l.b16 %v4651
  %v4800 = vunpack.c.l.b16 %v4652
  %v4801 = vunpack.c.l.b16 %v4653
  %v4802 = vunpack.c.l.b16 %v4654
  %v4803 = vunpack.c.l.b16 %v4655
  %v4804 = vunpack.c.l.b16 %v4656
  %v4805 = vunpack.c.l.b16 %v4657
  %v4806 = vunpack.c.l.b16 %v4658
  %v4807 = vunpack.c.l.b16 %v4659
  %v4808 = vunpack.c.l.b16 %v4660
  %v4809 = vunpack.c.l.b16 %v4661
  %v4810 = vunpack.c.l.b16 %v4662
  %v4811 = vunpack.c.l.b16 %v4663
  %v4812 = vunpack.c.l.b16 %v4664
  %v4813 = vunpack.c.l.b16 %v4665
  %v4814 = vunpack.c.l.b16 %v4666
  %v4815 = vunpack.c.l.b16 %v4667
  %v4816 = vunpack.c.l.b16 %v4668
  %v4817 = vunpack.c.l.b16 %v4669
  %v4818 = vunpack.c.l.b16 %v4670
  %v4819 = vunpack.c.l.b16 %v4671
  %v4820 = vunpack.c.l.b16 %v4672
  %v4821 = vunpack.c.l.b16 %v4673
  %v4822 = vunpack.c.l.b16 %v4674
  %v4823 = vunpack.c.l.b16 %v4675
  %v4824 = vunpack.c.l.b16 %v4676
  %v4825 = vunpack.c.l.b16 %v4677
  %v4826 = vunpack.c.l.b16 %v4678
  %v4827 = vunpack.c.l.b16 %v4679
  %v4828 = vunpack.c.l.b16 %v4680
  %v4829 = vunpack.c.l.b16 %v4681
  %v4830 = vunpack.c.l.b16 %v4682
  %v4831 = vunpack.c.l.b16 %v4683
  %v4832 = vunpack.c.l.b16 %v4684
  %v4833 = vunpack.c.l.b16 %v4685
  %v4834 = vunpack.c.l.b16 %v4686
  %v4835 = vunpack.c.l.b16 %v4687
  %v4836 = vunpack.c.l.b16 %v4688
  %v4837 = vunpack.c.l.b16 %v4689
  %v4838 = vunpack.c.l.b16 %v4690
  %v4839 = vunpack.c.l.b16 %v4691
  %v4840 = vunpack.c.l.b16 %v4692
  %v4841 = vunpack.c.l.b16 %v4693
  %v4842 = vunpack.c.l.b16 %v4694
  %v4843 = vunpack.c.l.b16 %v4695
  %v4844 = vunpack.c.l.b16 %v4696
  %v4845 = vunpack.c.l.b16 %v4697
  %v4846 = vunpack.c.l.b16 %v4698
  %v4847 = vunpack.c.l.b16 %v4699
  %v4848 = vunpack.c.l.b16 %v4700
  %v4849 = vunpack.c.l.b16 %v4701
  %v4850 = vunpack.c.l.b16 %v4702
  %v4851 = vunpack.c.l.b16 %v4703
  %v4852 = vunpack.c.l.b16 %v4704
  %v4853 = vunpack.c.l.b16 %v4705
  %v4854 = vpack.c.b16 %v4783, %v4782
  %v4855 = vpack.c.b16 %v4785, %v4784
  %v4856 = vpack.c.b16 %v4787, %v4786
  %v4857 = vpack.c.b16 %v4789, %v4788
  %v4858 = vpack.c.b16 %v4791, %v4790
  %v4859 = vpack.c.b16 %v4793, %v4792
  %v4860 = vpack.c.b16 %v4795, %v4794
  %v4861 = vpack.c.b16 %v4797, %v4796
  %v4862 = vpack.c.b16 %v4799, %v4798
  %v4863 = vpack.c.b16 %v4801, %v4800
  %v4864 = vpack.c.b16 %v4803, %v4802
  %v4865 = vpack.c.b16 %v4805, %v4804
  %v4866 = vpack.c.b16 %v4807, %v4806
  %v4867 = vpack.c.b16 %v4809, %v4808
  %v4868 = vpack.c.b16 %v4811, %v4810
  %v4869 = vpack.c.b16 %v4813, %v4812
  %v4870 = vpack.c.b16 %v4815, %v4814
  %v4871 = vpack.c.b16 %v4817, %v4816
  %v4872 = vpack.c.b16 %v4819, %v4818
  %v4873 = vpack.c.b16 %v4821, %v4820
  %v4874 = vpack.c.b16 %v4823, %v4822
  %v4875 = vpack.c.b16 %v4825, %v4824
  %v4876 = vpack.c.b16 %v4827, %v4826
  %v4877 = vpack.c.b16 %v4829, %v4828
  %v4878 = vpack.c.b16 %v4831, %v4830
  %v4879 = vpack.c.b16 %v4833, %v4832
  %v4880 = vpack.c.b16 %v4835, %v4834
  %v4881 = vpack.c.b16 %v4837, %v4836
  %v4882 = vpack.c.b16 %v4839, %v4838
  %v4883 = vpack.c.b16 %v4841, %v4840
  %v4884 = vpack.c.b16 %v4843, %v4842
  %v4885 = vpack.c.b16 %v4845, %v4844
  %v4886 = vpack.c.b16 %v4847, %v4846
  %v4887 = vpack.c.b16 %v4849, %v4848
  %v4888 = vpack.c.b16 %v4851, %v4850
  %v4889 = vpack.c.b16 %v4853, %v4852
  %v4927 = vsel %vm4602, %v4633, 0
  %4929 = vmatpush.bf16.msra.mxu0 %v4861
  %4930 = vmatpush.bf16.msra.mxu0 %v4860
  %4931 = vmatpush.bf16.msra.mxu0 %v4859
  %4932 = vmatpush.bf16.msra.mxu0 %v4858
  %4933 = vmatpush.bf16.msra.mxu0 %v4857
  %4934 = vmatpush.bf16.msra.mxu0 %v4856
  %4935 = vmatpush.bf16.msra.mxu0 %v4855
  %4936 = vmatpush.bf16.msra.mxu0 %v4854
  %4937 = vmatmul.bf16.gmra.mxu0 %v4629
  %v4938 = vpop.f32.mrf.mxu0
  %v4939 = vadd.f32 %v4708, %v4938
  %v4940 = vpop.f32.mrf.mxu0
  %4941 = vdwg.mxu0
  %4942 = vmatpush.bf16.msra.mxu0 %v4869
  %4943 = vmatpush.bf16.msra.mxu0 %v4868
  %4944 = vmatpush.bf16.msra.mxu0 %v4867
  %4945 = vmatpush.bf16.msra.mxu0 %v4866
  %4946 = vmatpush.bf16.msra.mxu0 %v4865
  %4947 = vmatpush.bf16.msra.mxu0 %v4864
  %4948 = vmatpush.bf16.msra.mxu0 %v4863
  %4949 = vmatpush.bf16.msra.mxu0 %v4862
  %4950 = vmatmul.bf16.gmra.mxu0 %v4630
  %v4951 = vpop.f32.mrf.mxu0
  %v4952 = vadd.f32 %v4939, %v4951
  %v4953 = vpop.f32.mrf.mxu0
  %4954 = vdwg.mxu0
  %4955 = vmatpush.bf16.msra.mxu0 %v4877
  %4956 = vmatpush.bf16.msra.mxu0 %v4876
  %4957 = vmatpush.bf16.msra.mxu0 %v4875
  %4958 = vmatpush.bf16.msra.mxu0 %v4874
  %4959 = vmatpush.bf16.msra.mxu0 %v4873
  %4960 = vmatpush.bf16.msra.mxu0 %v4872
  %4961 = vmatpush.bf16.msra.mxu0 %v4871
  %4962 = vmatpush.bf16.msra.mxu0 %v4870
  %4963 = vmatmul.bf16.gmra.mxu0 %v4631
  %v4964 = vpop.f32.mrf.mxu0
  %v4965 = vadd.f32 %v4952, %v4964
  %v4966 = vpop.f32.mrf.mxu0
  %4967 = vdwg.mxu0
  %4968 = vmatpush.bf16.msra.mxu0 %v4885
  %4969 = vmatpush.bf16.msra.mxu0 %v4884
  %4970 = vmatpush.bf16.msra.mxu0 %v4883
  %4971 = vmatpush.bf16.msra.mxu0 %v4882
  %4972 = vmatpush.bf16.msra.mxu0 %v4881
  %4973 = vmatpush.bf16.msra.mxu0 %v4880
  %4974 = vmatpush.bf16.msra.mxu0 %v4879
  %4975 = vmatpush.bf16.msra.mxu0 %v4878
  %4976 = vmatmul.bf16.gmra.mxu0 %v4632
  %v4977 = vpop.f32.mrf.mxu0
  %v4978 = vadd.f32 %v4965, %v4977
  %v4979 = vpop.f32.mrf.mxu0
  %4980 = vdwg.mxu0
  %4981 = vmatpush.bf16.msra.mxu0 0
  %4982 = vmatpush.bf16.msra.mxu0 0
  %4983 = vmatpush.bf16.msra.mxu0 0
  %4984 = vmatpush.bf16.msra.mxu0 0
  %4985 = vmatpush.bf16.msra.mxu0 %v4889
  %4986 = vmatpush.bf16.msra.mxu0 %v4888
  %4987 = vmatpush.bf16.msra.mxu0 %v4887
  %4988 = vmatpush.bf16.msra.mxu0 %v4886
  %4989 = vmatmul.bf16.gmra.mxu0 %v4927
  %v4990 = vpop.f32.mrf.mxu0
  %v4991 = vadd.f32 %v4978, %v4990
  %v4992 = vpop.f32.mrf.mxu0
  %4993 = vdwg.mxu0
  %v4994 = vmax.f32 %v4991, 0.0
  %v4995 = vpack.c.bf16 %v4994, %v4994
  %v4996 = vld [vmem:[%s4] sm:$0xf]
  %v4997 = vld [vmem:[%s4 + $0x4] sm:$0xf]
  %v4998 = vld [vmem:[%s4 + $0x8] sm:$0xf]
  %v4999 = vld [vmem:[%s4 + $0xc] sm:$0xf]
  %v5000 = vld [vmem:[%s4 + $0x10] sm:$0xf]
  %v5001 = vld [vmem:[%s4 + $0x14] sm:$0xf]
  %v5002 = vld [vmem:[%s4 + $0x18] sm:$0xf]
  %v5003 = vld [vmem:[%s4 + $0x1c] sm:$0xf]
  %v5004 = vld [vmem:[%s8] sm:$0x1]
  %v5006 = vperm.slane %v5004, 0
  %v5016 = vunpack.c.l.b16 %v4996
  %v5017 = vunpack.c.l.b16 %v4997
  %v5018 = vunpack.c.l.b16 %v4998
  %v5019 = vunpack.c.l.b16 %v4999
  %v5020 = vunpack.c.l.b16 %v5000
  %v5021 = vunpack.c.l.b16 %v5001
  %v5022 = vunpack.c.l.b16 %v5002
  %v5023 = vunpack.c.l.b16 %v5003
  %v5024 = vpack.c.b16 %v5017, %v5016
  %v5025 = vpack.c.b16 %v5019, %v5018
  %v5026 = vpack.c.b16 %v5021, %v5020
  %v5027 = vpack.c.b16 %v5023, %v5022
  %v5033 = vsel %vm4602, %v4995, 0
  %5035 = vmatpush.bf16.msra.mxu0 0
  %5036 = vmatpush.bf16.msra.mxu0 0
  %5037 = vmatpush.bf16.msra.mxu0 0
  %5038 = vmatpush.bf16.msra.mxu0 0
  %5039 = vmatpush.bf16.msra.mxu0 %v5027
  %5040 = vmatpush.bf16.msra.mxu0 %v5026
  %5041 = vmatpush.bf16.msra.mxu0 %v5025
  %5042 = vmatpush.bf16.msra.mxu0 %v5024
  %5043 = vmatmul.bf16.gmra.mxu0 %v5033
  %v5044 = vpop.f32.mrf.mxu0
  %v5045 = vadd.f32 %v5006, %v5044
  %v5046 = vpop.f32.mrf.mxu0
  %5047 = vdwg.mxu0
  %v5048 = vmax.f32 %v5045, 0.0
  %vm5049 = vcmask 261120
  %5050 = vst.msk [vmem:[%s9] sm:$0xff] %vm5049, %v5048
  // Predicated region
  $region38: #{forward.1} parent=0 // pred_check
    _
  $region39: #{forward.1} parent=0 // pred_check_branch
    %5052 = sbr.rel (0) target = $region41
  $region40: #{forward.1} parent=0 // pred_region
    _
  $region41: #{forward.1} parent=0 // pred_fallthru
    _
  // Predicated region
  $region42: #{forward.1} parent=0 // pred_check
    _
  $region43: #{forward.1} parent=0 // pred_check_branch
    %5054 = sbr.rel (0) target = $region45
  $region44: #{forward.1} parent=0 // pred_region
    _
  $region45: #{forward.1} parent=0 // pred_fallthru
    _

</llo_original>
